<compile_context>
chip_gen: v7x
topology: tpu7x:2x2x1
jax: 0.10.0
libtpu: 0.0.40
codegen_flags: <defaults>
</compile_context>

<pallas_src>
import functools

import jax
import jax.numpy as jnp
from jax import lax
from jax.experimental import pallas as pl
from jax.experimental.pallas import tpu as pltpu


def _meta_task_kernel(hs_spt_ref, hs_qry_ref, yoh_ref,
                      w1_ref, b1_ref, w2t_ref, b2_ref,
                      adj_out_ref, logits_out_ref, *, update_lr):
    """Fused per-task MAML inner loop.

    hs_*_ref : [1, n*V, C]   per-sample joint features (already mean-pooled over T, M)
    yoh_ref  : [1, Ns, K]    one-hot support labels
    w1 / b1  : [C, D] / [1, D]    GCN weight / bias
    w2t / b2 : [K, D] / [1, K]    classifier weight (stored transposed, lane-dense) / bias
    adj_out  : [1, V, V]     query adjacency (pass-through "learned" adjacency)
    logits   : [1, NE, Nq, K]  query logits before and after each fast-weight update
    """
    V = adj_out_ref.shape[1]
    n_evals = logits_out_ref.shape[1]                 # update_step + 1
    hs_spt = hs_spt_ref[0]                            # [Ns*V, C]
    hs_qry = hs_qry_ref[0]                            # [Nq*V, C]
    yoh = yoh_ref[0]                                  # [Ns, K]
    w1 = w1_ref[...]
    b1 = b1_ref[...]
    w2t = w2t_ref[...]
    b2 = b2_ref[...]
    C = hs_spt.shape[1]
    Ns = hs_spt.shape[0] // V
    Nq = hs_qry.shape[0] // V

    f32 = jnp.float32
    cdims = (((0,), (0,)), ((), ()))                  # contract dim 0 of both operands
    rdims = (((1,), (1,)), ((), ()))                  # contract dim 1 of both operands

    def joint_indicator(n):                           # E [n*V, V]: 1 where row % V == col
        r = lax.broadcasted_iota(jnp.int32, (n * V, V), 0)
        c = lax.broadcasted_iota(jnp.int32, (n * V, V), 1)
        m = r == c
        for s in range(1, n):
            m = jnp.logical_or(m, r == c + s * V)
        return jnp.where(m, 1.0, 0.0).astype(f32)

    def group_indicator(n):                           # G [n*V, n]: 1 where row // V == col
        r = lax.broadcasted_iota(jnp.int32, (n * V, n), 0)
        c = lax.broadcasted_iota(jnp.int32, (n * V, n), 1)
        m = jnp.logical_and(r >= c * V, r < (c + 1) * V)
        return jnp.where(m, 1.0, 0.0).astype(f32)

    E_s, G_s = joint_indicator(Ns), group_indicator(Ns)
    E_q, G_q = joint_indicator(Nq), group_indicator(Nq)

    # ---- GraphGenerator: similarity softmax over set-mean joint features -------------
    def make_adj(hs, E, n):
        f = lax.dot_general(E, hs, cdims, preferred_element_type=f32) * (1.0 / n)       # [V, C]
        sim = lax.dot_general(f, f, rdims, preferred_element_type=f32) * (float(C) ** -0.5)
        sim = sim - jnp.max(sim, axis=-1, keepdims=True)
        e = jnp.exp(sim)
        return e / jnp.sum(e, axis=-1, keepdims=True)                                   # [V, V]

    # ---- adjacency applied to all samples with one matmul (block-diagonal trick) -----
    def apply_adj(adj, hs, E, G):
        ea = jnp.dot(E, adj, preferred_element_type=f32)                                # [nV, V]
        big = lax.dot_general(ea, E, rdims, preferred_element_type=f32)                 # [nV, nV]
        mask = lax.dot_general(G, G, rdims, preferred_element_type=f32)                 # [nV, nV]
        return jnp.dot(big * mask, hs, preferred_element_type=f32)                      # [nV, C]

    adj_spt = make_adj(hs_spt, E_s, Ns)
    adj_qry = make_adj(hs_qry, E_q, Nq)
    adj_out_ref[0] = adj_qry

    # Weight-independent: hoisted out of the inner update loop (computed once per task).
    ag_spt = apply_adj(adj_spt, hs_spt, E_s, G_s)                                       # [Ns*V, C]
    ag_qry = apply_adj(adj_qry, hs_qry, E_q, G_q)                                       # [Nq*V, C]

    # ---- Learner forward (all samples batched into single matmuls) -------------------
    def fwd(ag, G, params):
        w1_, b1_, w2t_, b2_ = params
        z1 = jnp.dot(ag, w1_, preferred_element_type=f32) + b1_                         # [nV, D]
        h1 = jnp.maximum(z1, 0.0)
        pooled = lax.dot_general(G, h1, cdims, preferred_element_type=f32) * (1.0 / V)  # [n, D]
        logits = lax.dot_general(pooled, w2t_, rdims, preferred_element_type=f32) + b2_ # [n, K]
        return z1, pooled, logits

    # ---- support CE loss gradients (manual backward, kept entirely in vregs) ---------
    def support_grads(params):
        _, _, w2t_, _ = params
        z1, pooled, logits = fwd(ag_spt, G_s, params)
        m = jnp.max(logits, axis=-1, keepdims=True)
        e = jnp.exp(logits - m)
        prob = e / jnp.sum(e, axis=-1, keepdims=True)
        dlogits = (prob - yoh) * (1.0 / Ns)                                             # [Ns, K]
        dw2t = lax.dot_general(dlogits, pooled, cdims, preferred_element_type=f32)      # [K, D]
        db2 = jnp.sum(dlogits, axis=0, keepdims=True)                                   # [1, K]
        dpooled = jnp.dot(dlogits, w2t_, preferred_element_type=f32)                    # [Ns, D]
        spread = jnp.dot(G_s, dpooled, preferred_element_type=f32) * (1.0 / V)          # [Ns*V, D]
        dz1 = jnp.where(z1 > 0.0, spread, 0.0)
        dw1 = lax.dot_general(ag_spt, dz1, cdims, preferred_element_type=f32)           # [C, D]
        db1 = jnp.sum(dz1, axis=0, keepdims=True)                                       # [1, D]
        return dw1, db1, dw2t, db2

    fast = (w1, b1, w2t, b2)
    _, _, lq = fwd(ag_qry, G_q, fast)              # eval 0: original meta parameters
    logits_out_ref[0, 0, :, :] = lq
    # TODO(synk): the reference zips grads with a freshly-emptied fast_weights list at
    # k>=1 (a bug that leaves it empty); standard MAML fast-weight semantics are used.
    for j in range(1, n_evals):                    # static unroll; update_step is small
        grads = support_grads(fast)
        fast = tuple(p - update_lr * g for p, g in zip(fast, grads))
        _, _, lq = fwd(ag_qry, G_q, fast)
        logits_out_ref[0, j, :, :] = lq


def _meta_forward(params, x_spt, y_spt, x_qry, y_qry, *, n_way, update_step, update_lr):
    w1, b1, w2t, b2 = params
    b, Ns, C, _, V, _ = x_spt.shape
    Nq = x_qry.shape[1]
    D = w1.shape[1]
    K = n_way
    NE = update_step + 1

    # Hoisted weight-independent preprocessing (jitted XLA): mean over (T, M) and
    # channels-last flatten so each task is one [set*V, C] slab for the kernel.
    hs_spt = jnp.transpose(jnp.mean(x_spt.astype(jnp.float32), axis=(3, 5)),
                           (0, 1, 3, 2)).reshape(b, Ns * V, C)
    hs_qry = jnp.transpose(jnp.mean(x_qry.astype(jnp.float32), axis=(3, 5)),
                           (0, 1, 3, 2)).reshape(b, Nq * V, C)
    yoh_spt = jax.nn.one_hot(y_spt, K, dtype=jnp.float32)                               # [b, Ns, K]

    kernel = functools.partial(_meta_task_kernel, update_lr=update_lr)
    adj_qry, logits_all = pl.pallas_call(
        kernel,
        out_shape=(jax.ShapeDtypeStruct((b, V, V), jnp.float32),
                   jax.ShapeDtypeStruct((b, NE, Nq, K), jnp.float32)),
        grid=(b,),
        in_specs=[
            pl.BlockSpec((1, Ns * V, C), lambda i: (i, 0, 0)),
            pl.BlockSpec((1, Nq * V, C), lambda i: (i, 0, 0)),
            pl.BlockSpec((1, Ns, K), lambda i: (i, 0, 0)),
            pl.BlockSpec((C, D), lambda i: (0, 0)),
            pl.BlockSpec((1, D), lambda i: (0, 0)),
            pl.BlockSpec((K, D), lambda i: (0, 0)),
            pl.BlockSpec((1, K), lambda i: (0, 0)),
        ],
        out_specs=(
            pl.BlockSpec((1, V, V), lambda i: (i, 0, 0)),
            pl.BlockSpec((1, NE, Nq, K), lambda i: (i, 0, 0, 0)),
        ),
        compiler_params=pltpu.CompilerParams(dimension_semantics=("parallel",)),
    )(hs_spt, hs_qry, yoh_spt, w1, b1, w2t, b2)

    # Query CE loss / accuracy per eval step, summed over tasks (as in the reference).
    logp = jax.nn.log_softmax(logits_all, axis=-1)                                      # [b, NE, Nq, K]
    yq = jnp.broadcast_to(y_qry[:, None, :, None], (b, NE, Nq, 1))
    ce = -jnp.take_along_axis(logp, yq, axis=-1)[..., 0]                                # [b, NE, Nq]
    losses_q = jnp.sum(jnp.mean(ce, axis=-1), axis=0)                                   # [NE]
    pred = jnp.argmax(jax.nn.softmax(logits_all, axis=-1), axis=-1)                     # [b, NE, Nq]
    _accs_q = jnp.sum(jnp.mean((pred == y_qry[:, None, :]).astype(jnp.float32),
                               axis=-1), axis=0)  # computed as in reference, not returned

    loss_q = losses_q[update_step] / b
    learned_adj = jnp.zeros_like(adj_qry)
    if update_step > 0:
        # Learner passes its adjacency through; reference assigns only the last task.
        learned_adj = learned_adj.at[b - 1].set(adj_qry[b - 1])
    return loss_q, learned_adj


class MetaPallas:
    """MAML meta-learner over a synthesized GCN learner; the whole per-task inner loop
    (graph gen + support grads + fast-weight updates + query evals) is one Pallas kernel."""

    def __init__(self, args):
        self.update_lr = args["update_lr"] * 0.1
        self.meta_lr = args["meta_lr"] * 0.1
        self.n_way = args["n_way"]
        self.k_spt = args["k_spt"]
        self.k_qry = args["k_qry"]
        self.task_num = args["task_num"]
        self.update_step = args["update_step"]
        self.update_step_test = args["update_step_test"]
        model_args = args["model_args"]
        self.num_nodes = model_args["num_nodes"]
        in_channels, out_channels = 3, 128

        # Deterministic parameter init (Learner: GCN weight + classifier, lane-dense).
        k1, k2 = jax.random.split(jax.random.PRNGKey(0))
        w1 = jax.random.normal(k1, (in_channels, out_channels), jnp.float32) * (2.0 / in_channels) ** 0.5
        b1 = jnp.zeros((1, out_channels), jnp.float32)
        w2t = jax.random.normal(k2, (self.n_way, out_channels), jnp.float32) * (1.0 / out_channels) ** 0.5
        b2 = jnp.zeros((1, self.n_way), jnp.float32)
        self.params = (w1, b1, w2t, b2)
        # TODO(synk): the meta Adam optimizer step (self.meta_optim.step()) is a training
        # side effect that does not change the values returned by forward(); omitted.

        self._forward = jax.jit(functools.partial(
            _meta_forward, n_way=self.n_way, update_step=self.update_step,
            update_lr=self.update_lr))

    def forward(self, x_spt, y_spt, x_qry, y_qry):
        return self._forward(self.params, x_spt, y_spt, x_qry, y_qry)


if __name__ == "__main__":
    n_way = 4
    args = {
        "update_lr": 0.01,
        "meta_lr": 0.001,
        "n_way": n_way,
        "k_spt": 1,
        "k_qry": 1,
        "task_num": 2,
        "update_step": 2,
        "update_step_test": 3,
        "model_args": {"num_nodes": 16,
                       "learner_config": [("gcn", [3, 128]), ("fc", [128, n_way])]},
    }

    b, setsz, querysz = args["task_num"], n_way * args["k_spt"], n_way * args["k_qry"]
    c, t, v, m = 3, 8, args["model_args"]["num_nodes"], 1

    key = jax.random.PRNGKey(0)
    kx1, kx2, ky1, ky2 = jax.random.split(key, 4)
    x_spt = jax.random.normal(kx1, (b, setsz, c, t, v, m), jnp.float32)
    x_qry = jax.random.normal(kx2, (b, querysz, c, t, v, m), jnp.float32)
    y_spt = jax.random.randint(ky1, (b, setsz), 0, n_way, dtype=jnp.int32)
    y_qry = jax.random.randint(ky2, (b, querysz), 0, n_way, dtype=jnp.int32)

    meta = MetaPallas(args)
    loss_q, learned_adj = meta.forward(x_spt, y_spt, x_qry, y_qry)
    jax.block_until_ready((loss_q, learned_adj))
    assert learned_adj.shape == (b, v, v)
    assert bool(jnp.isfinite(loss_q))
    print("KERNEL_OK")
</pallas_src>

<mosaic_0001>
module attributes {stable_mosaic.version = 11 : i64} {
  func.func @_meta_task_kernel(%arg0: i32, %arg1: memref<1x64x3xf32, #tpu.memory_space<vmem>>, %arg2: memref<1x64x3xf32, #tpu.memory_space<vmem>>, %arg3: memref<1x4x4xf32, #tpu.memory_space<vmem>>, %arg4: memref<3x128xf32, #tpu.memory_space<vmem>>, %arg5: memref<1x128xf32, #tpu.memory_space<vmem>>, %arg6: memref<4x128xf32, #tpu.memory_space<vmem>>, %arg7: memref<1x4xf32, #tpu.memory_space<vmem>>, %arg8: memref<1x16x16xf32, #tpu.memory_space<vmem>>, %arg9: memref<1x3x4x4xf32, #tpu.memory_space<vmem>>) attributes {dimension_semantics = [#tpu.dimension_semantics<parallel>], iteration_bounds = array<i64: 2>, scalar_prefetch = 0 : i64, scratch_operands = 0 : i64, tpu.core_type = #tpu.core_type<tc>, window_params = [{transform_indices = @transform_0, window_bounds = array<i64: 1, 64, 3>}, {transform_indices = @transform_1, window_bounds = array<i64: 1, 64, 3>}, {transform_indices = @transform_2, window_bounds = array<i64: 1, 4, 4>}, {pipeline_mode = #tpu.pipeline_mode<synchronous>, transform_indices = @transform_3, window_bounds = array<i64: 3, 128>}, {pipeline_mode = #tpu.pipeline_mode<synchronous>, transform_indices = @transform_4, window_bounds = array<i64: 1, 128>}, {pipeline_mode = #tpu.pipeline_mode<synchronous>, transform_indices = @transform_5, window_bounds = array<i64: 4, 128>}, {pipeline_mode = #tpu.pipeline_mode<synchronous>, transform_indices = @transform_6, window_bounds = array<i64: 1, 4>}, {transform_indices = @transform_7, window_bounds = array<i64: 1, 16, 16>}, {transform_indices = @transform_8, window_bounds = array<i64: 1, 3, 4, 4>}]} {
    %c0 = arith.constant 0 : index
    %c0_0 = arith.constant 0 : index
    %c0_1 = arith.constant 0 : index
    %0 = vector.load %arg1[%c0, %c0_0, %c0_1] : memref<1x64x3xf32, #tpu.memory_space<vmem>>, vector<1x64x3xf32>
    %1 = vector.shape_cast %0 : vector<1x64x3xf32> to vector<64x3xf32>
    %c0_2 = arith.constant 0 : index
    %c0_3 = arith.constant 0 : index
    %c0_4 = arith.constant 0 : index
    %2 = vector.load %arg2[%c0_2, %c0_3, %c0_4] : memref<1x64x3xf32, #tpu.memory_space<vmem>>, vector<1x64x3xf32>
    %3 = vector.shape_cast %2 : vector<1x64x3xf32> to vector<64x3xf32>
    %c0_5 = arith.constant 0 : index
    %c0_6 = arith.constant 0 : index
    %c0_7 = arith.constant 0 : index
    %4 = vector.load %arg3[%c0_5, %c0_6, %c0_7] : memref<1x4x4xf32, #tpu.memory_space<vmem>>, vector<1x4x4xf32>
    %5 = vector.shape_cast %4 : vector<1x4x4xf32> to vector<4x4xf32>
    %c0_8 = arith.constant 0 : index
    %c0_9 = arith.constant 0 : index
    %6 = vector.load %arg4[%c0_8, %c0_9] : memref<3x128xf32, #tpu.memory_space<vmem>>, vector<3x128xf32>
    %c0_10 = arith.constant 0 : index
    %c0_11 = arith.constant 0 : index
    %7 = vector.load %arg5[%c0_10, %c0_11] : memref<1x128xf32, #tpu.memory_space<vmem>>, vector<1x128xf32>
    %c0_12 = arith.constant 0 : index
    %c0_13 = arith.constant 0 : index
    %8 = vector.load %arg6[%c0_12, %c0_13] : memref<4x128xf32, #tpu.memory_space<vmem>>, vector<4x128xf32>
    %c0_14 = arith.constant 0 : index
    %c0_15 = arith.constant 0 : index
    %9 = vector.load %arg7[%c0_14, %c0_15] : memref<1x4xf32, #tpu.memory_space<vmem>>, vector<1x4xf32>
    %10 = tpu.iota {dimensions = array<i32: 0>} : vector<64x16xi32>
    %11 = tpu.iota {dimensions = array<i32: 1>} : vector<64x16xi32>
    %12 = arith.cmpi eq, %10, %11 : vector<64x16xi32>
    %c16_i32 = arith.constant 16 : i32
    %13 = vector.broadcast %c16_i32 : i32 to vector<64x16xi32>
    %14 = arith.addi %11, %13 : vector<64x16xi32>
    %15 = arith.cmpi eq, %10, %14 : vector<64x16xi32>
    %16 = arith.ori %12, %15 : vector<64x16xi1>
    %c32_i32 = arith.constant 32 : i32
    %17 = vector.broadcast %c32_i32 : i32 to vector<64x16xi32>
    %18 = arith.addi %11, %17 : vector<64x16xi32>
    %19 = arith.cmpi eq, %10, %18 : vector<64x16xi32>
    %20 = arith.ori %16, %19 : vector<64x16xi1>
    %c48_i32 = arith.constant 48 : i32
    %21 = vector.broadcast %c48_i32 : i32 to vector<64x16xi32>
    %22 = arith.addi %11, %21 : vector<64x16xi32>
    %23 = arith.cmpi eq, %10, %22 : vector<64x16xi32>
    %24 = arith.ori %20, %23 : vector<64x16xi1>
    %cst = arith.constant 1.000000e+00 : f32
    %cst_16 = arith.constant 0.000000e+00 : f32
    %25 = vector.broadcast %cst : f32 to vector<64x16xf32>
    %26 = vector.broadcast %cst_16 : f32 to vector<64x16xf32>
    %27 = arith.select %24, %25, %26 : vector<64x16xi1>, vector<64x16xf32>
    %28 = tpu.iota {dimensions = array<i32: 0>} : vector<64x4xi32>
    %29 = tpu.iota {dimensions = array<i32: 1>} : vector<64x4xi32>
    %c16_i32_17 = arith.constant 16 : i32
    %30 = vector.broadcast %c16_i32_17 : i32 to vector<64x4xi32>
    %31 = arith.muli %29, %30 : vector<64x4xi32>
    %32 = arith.cmpi sge, %28, %31 : vector<64x4xi32>
    %c1_i32 = arith.constant 1 : i32
    %33 = vector.broadcast %c1_i32 : i32 to vector<64x4xi32>
    %34 = arith.addi %29, %33 : vector<64x4xi32>
    %c16_i32_18 = arith.constant 16 : i32
    %35 = vector.broadcast %c16_i32_18 : i32 to vector<64x4xi32>
    %36 = arith.muli %34, %35 : vector<64x4xi32>
    %37 = arith.cmpi slt, %28, %36 : vector<64x4xi32>
    %38 = arith.andi %32, %37 : vector<64x4xi1>
    %cst_19 = arith.constant 1.000000e+00 : f32
    %cst_20 = arith.constant 0.000000e+00 : f32
    %39 = vector.broadcast %cst_19 : f32 to vector<64x4xf32>
    %40 = vector.broadcast %cst_20 : f32 to vector<64x4xf32>
    %41 = arith.select %38, %39, %40 : vector<64x4xi1>, vector<64x4xf32>
    %42 = tpu.iota {dimensions = array<i32: 0>} : vector<64x16xi32>
    %43 = tpu.iota {dimensions = array<i32: 1>} : vector<64x16xi32>
    %44 = arith.cmpi eq, %42, %43 : vector<64x16xi32>
    %c16_i32_21 = arith.constant 16 : i32
    %45 = vector.broadcast %c16_i32_21 : i32 to vector<64x16xi32>
    %46 = arith.addi %43, %45 : vector<64x16xi32>
    %47 = arith.cmpi eq, %42, %46 : vector<64x16xi32>
    %48 = arith.ori %44, %47 : vector<64x16xi1>
    %c32_i32_22 = arith.constant 32 : i32
    %49 = vector.broadcast %c32_i32_22 : i32 to vector<64x16xi32>
    %50 = arith.addi %43, %49 : vector<64x16xi32>
    %51 = arith.cmpi eq, %42, %50 : vector<64x16xi32>
    %52 = arith.ori %48, %51 : vector<64x16xi1>
    %c48_i32_23 = arith.constant 48 : i32
    %53 = vector.broadcast %c48_i32_23 : i32 to vector<64x16xi32>
    %54 = arith.addi %43, %53 : vector<64x16xi32>
    %55 = arith.cmpi eq, %42, %54 : vector<64x16xi32>
    %56 = arith.ori %52, %55 : vector<64x16xi1>
    %cst_24 = arith.constant 1.000000e+00 : f32
    %cst_25 = arith.constant 0.000000e+00 : f32
    %57 = vector.broadcast %cst_24 : f32 to vector<64x16xf32>
    %58 = vector.broadcast %cst_25 : f32 to vector<64x16xf32>
    %59 = arith.select %56, %57, %58 : vector<64x16xi1>, vector<64x16xf32>
    %60 = tpu.iota {dimensions = array<i32: 0>} : vector<64x4xi32>
    %61 = tpu.iota {dimensions = array<i32: 1>} : vector<64x4xi32>
    %c16_i32_26 = arith.constant 16 : i32
    %62 = vector.broadcast %c16_i32_26 : i32 to vector<64x4xi32>
    %63 = arith.muli %61, %62 : vector<64x4xi32>
    %64 = arith.cmpi sge, %60, %63 : vector<64x4xi32>
    %c1_i32_27 = arith.constant 1 : i32
    %65 = vector.broadcast %c1_i32_27 : i32 to vector<64x4xi32>
    %66 = arith.addi %61, %65 : vector<64x4xi32>
    %c16_i32_28 = arith.constant 16 : i32
    %67 = vector.broadcast %c16_i32_28 : i32 to vector<64x4xi32>
    %68 = arith.muli %66, %67 : vector<64x4xi32>
    %69 = arith.cmpi slt, %60, %68 : vector<64x4xi32>
    %70 = arith.andi %64, %69 : vector<64x4xi1>
    %cst_29 = arith.constant 1.000000e+00 : f32
    %cst_30 = arith.constant 0.000000e+00 : f32
    %71 = vector.broadcast %cst_29 : f32 to vector<64x4xf32>
    %72 = vector.broadcast %cst_30 : f32 to vector<64x4xf32>
    %73 = arith.select %70, %71, %72 : vector<64x4xi1>, vector<64x4xf32>
    %cst_31 = arith.constant dense<0.000000e+00> : vector<16x3xf32>
    %74 = tpu.matmul %27, %1, %cst_31 {dimension_numbers = #tpu.dot_dimension_numbers<[0], [0], [1], [1], [0, 1, 1, 1], [], []>} : vector<64x16xf32>, vector<64x3xf32>, vector<16x3xf32> -> vector<16x3xf32>
    %cst_32 = arith.constant 2.500000e-01 : f32
    %75 = vector.broadcast %cst_32 : f32 to vector<16x3xf32>
    %76 = arith.mulf %74, %75 : vector<16x3xf32>
    %cst_33 = arith.constant dense<0.000000e+00> : vector<16x16xf32>
    %77 = tpu.matmul %76, %76, %cst_33 {dimension_numbers = #tpu.dot_dimension_numbers<[1], [1], [0], [0], [0, 0, 1, 0], [], []>} : vector<16x3xf32>, vector<16x3xf32>, vector<16x16xf32> -> vector<16x16xf32>
    %cst_34 = arith.constant 0.577350259 : f32
    %78 = vector.broadcast %cst_34 : f32 to vector<16x16xf32>
    %79 = arith.mulf %77, %78 : vector<16x16xf32>
    %cst_35 = arith.constant dense<0xFF800000> : vector<16xf32>
    %80 = vector.multi_reduction <maximumf>, %79, %cst_35 [1] : vector<16x16xf32> to vector<16xf32>
    %81 = vector.shape_cast %80 : vector<16xf32> to vector<16x1xf32>
    %82 = vector.broadcast %81 : vector<16x1xf32> to vector<16x16xf32>
    %83 = arith.subf %79, %82 : vector<16x16xf32>
    %84 = math.exp %83 : vector<16x16xf32>
    %cst_36 = arith.constant dense<0.000000e+00> : vector<16xf32>
    %85 = vector.multi_reduction <add>, %84, %cst_36 [1] : vector<16x16xf32> to vector<16xf32>
    %86 = vector.shape_cast %85 : vector<16xf32> to vector<16x1xf32>
    %87 = vector.broadcast %86 : vector<16x1xf32> to vector<16x16xf32>
    %88 = arith.divf %84, %87 : vector<16x16xf32>
    %cst_37 = arith.constant dense<0.000000e+00> : vector<16x3xf32>
    %89 = tpu.matmul %59, %3, %cst_37 {dimension_numbers = #tpu.dot_dimension_numbers<[0], [0], [1], [1], [0, 1, 1, 1], [], []>} : vector<64x16xf32>, vector<64x3xf32>, vector<16x3xf32> -> vector<16x3xf32>
    %cst_38 = arith.constant 2.500000e-01 : f32
    %90 = vector.broadcast %cst_38 : f32 to vector<16x3xf32>
    %91 = arith.mulf %89, %90 : vector<16x3xf32>
    %cst_39 = arith.constant dense<0.000000e+00> : vector<16x16xf32>
    %92 = tpu.matmul %91, %91, %cst_39 {dimension_numbers = #tpu.dot_dimension_numbers<[1], [1], [0], [0], [0, 0, 1, 0], [], []>} : vector<16x3xf32>, vector<16x3xf32>, vector<16x16xf32> -> vector<16x16xf32>
    %cst_40 = arith.constant 0.577350259 : f32
    %93 = vector.broadcast %cst_40 : f32 to vector<16x16xf32>
    %94 = arith.mulf %92, %93 : vector<16x16xf32>
    %cst_41 = arith.constant dense<0xFF800000> : vector<16xf32>
    %95 = vector.multi_reduction <maximumf>, %94, %cst_41 [1] : vector<16x16xf32> to vector<16xf32>
    %96 = vector.shape_cast %95 : vector<16xf32> to vector<16x1xf32>
    %97 = vector.broadcast %96 : vector<16x1xf32> to vector<16x16xf32>
    %98 = arith.subf %94, %97 : vector<16x16xf32>
    %99 = math.exp %98 : vector<16x16xf32>
    %cst_42 = arith.constant dense<0.000000e+00> : vector<16xf32>
    %100 = vector.multi_reduction <add>, %99, %cst_42 [1] : vector<16x16xf32> to vector<16xf32>
    %101 = vector.shape_cast %100 : vector<16xf32> to vector<16x1xf32>
    %102 = vector.broadcast %101 : vector<16x1xf32> to vector<16x16xf32>
    %103 = arith.divf %99, %102 : vector<16x16xf32>
    %c0_43 = arith.constant 0 : index
    %c0_44 = arith.constant 0 : index
    %c0_45 = arith.constant 0 : index
    %104 = vector.load %arg8[%c0_43, %c0_44, %c0_45] : memref<1x16x16xf32, #tpu.memory_space<vmem>>, vector<1x16x16xf32>
    %105 = vector.shape_cast %104 : vector<1x16x16xf32> to vector<16x16xf32>
    %106 = vector.shape_cast %103 : vector<16x16xf32> to vector<1x16x16xf32>
    tpu.vector_store %arg8[%c0_43, %c0_44, %c0_45], %106 {strides = array<i32>} : memref<1x16x16xf32, #tpu.memory_space<vmem>>, vector<1x16x16xf32>,
    %cst_46 = arith.constant dense<0.000000e+00> : vector<64x16xf32>
    %107 = tpu.matmul %27, %88, %cst_46 {dimension_numbers = #tpu.dot_dimension_numbers<[1], [0], [0], [1], [0, 0, 1, 1], [], []>} : vector<64x16xf32>, vector<16x16xf32>, vector<64x16xf32> -> vector<64x16xf32>
    %cst_47 = arith.constant dense<0.000000e+00> : vector<64x64xf32>
    %108 = tpu.matmul %107, %27, %cst_47 {dimension_numbers = #tpu.dot_dimension_numbers<[1], [1], [0], [0], [0, 0, 1, 0], [], []>} : vector<64x16xf32>, vector<64x16xf32>, vector<64x64xf32> -> vector<64x64xf32>
    %cst_48 = arith.constant dense<0.000000e+00> : vector<64x64xf32>
    %109 = tpu.matmul %41, %41, %cst_48 {dimension_numbers = #tpu.dot_dimension_numbers<[1], [1], [0], [0], [0, 0, 1, 0], [], []>} : vector<64x4xf32>, vector<64x4xf32>, vector<64x64xf32> -> vector<64x64xf32>
    %110 = arith.mulf %108, %109 : vector<64x64xf32>
    %cst_49 = arith.constant dense<0.000000e+00> : vector<64x3xf32>
    %111 = tpu.matmul %110, %1, %cst_49 {dimension_numbers = #tpu.dot_dimension_numbers<[1], [0], [0], [1], [0, 0, 1, 1], [], []>} : vector<64x64xf32>, vector<64x3xf32>, vector<64x3xf32> -> vector<64x3xf32>
    %cst_50 = arith.constant dense<0.000000e+00> : vector<64x16xf32>
    %112 = tpu.matmul %59, %103, %cst_50 {dimension_numbers = #tpu.dot_dimension_numbers<[1], [0], [0], [1], [0, 0, 1, 1], [], []>} : vector<64x16xf32>, vector<16x16xf32>, vector<64x16xf32> -> vector<64x16xf32>
    %cst_51 = arith.constant dense<0.000000e+00> : vector<64x64xf32>
    %113 = tpu.matmul %112, %59, %cst_51 {dimension_numbers = #tpu.dot_dimension_numbers<[1], [1], [0], [0], [0, 0, 1, 0], [], []>} : vector<64x16xf32>, vector<64x16xf32>, vector<64x64xf32> -> vector<64x64xf32>
    %cst_52 = arith.constant dense<0.000000e+00> : vector<64x64xf32>
    %114 = tpu.matmul %73, %73, %cst_52 {dimension_numbers = #tpu.dot_dimension_numbers<[1], [1], [0], [0], [0, 0, 1, 0], [], []>} : vector<64x4xf32>, vector<64x4xf32>, vector<64x64xf32> -> vector<64x64xf32>
    %115 = arith.mulf %113, %114 : vector<64x64xf32>
    %cst_53 = arith.constant dense<0.000000e+00> : vector<64x3xf32>
    %116 = tpu.matmul %115, %3, %cst_53 {dimension_numbers = #tpu.dot_dimension_numbers<[1], [0], [0], [1], [0, 0, 1, 1], [], []>} : vector<64x64xf32>, vector<64x3xf32>, vector<64x3xf32> -> vector<64x3xf32>
    %cst_54 = arith.constant dense<0.000000e+00> : vector<64x128xf32>
    %117 = tpu.matmul %116, %6, %cst_54 {dimension_numbers = #tpu.dot_dimension_numbers<[1], [0], [0], [1], [0, 0, 1, 1], [], []>} : vector<64x3xf32>, vector<3x128xf32>, vector<64x128xf32> -> vector<64x128xf32>
    %118 = vector.broadcast %7 : vector<1x128xf32> to vector<64x128xf32>
    %119 = arith.addf %117, %118 : vector<64x128xf32>
    %cst_55 = arith.constant 0.000000e+00 : f32
    %120 = vector.broadcast %cst_55 : f32 to vector<64x128xf32>
    %121 = arith.maximumf %119, %120 : vector<64x128xf32>
    %cst_56 = arith.constant dense<0.000000e+00> : vector<4x128xf32>
    %122 = tpu.matmul %73, %121, %cst_56 {dimension_numbers = #tpu.dot_dimension_numbers<[0], [0], [1], [1], [0, 1, 1, 1], [], []>} : vector<64x4xf32>, vector<64x128xf32>, vector<4x128xf32> -> vector<4x128xf32>
    %cst_57 = arith.constant 6.250000e-02 : f32
    %123 = vector.broadcast %cst_57 : f32 to vector<4x128xf32>
    %124 = arith.mulf %122, %123 : vector<4x128xf32>
    %cst_58 = arith.constant dense<0.000000e+00> : vector<4x4xf32>
    %125 = tpu.matmul %124, %8, %cst_58 {dimension_numbers = #tpu.dot_dimension_numbers<[1], [1], [0], [0], [0, 0, 1, 0], [], []>} : vector<4x128xf32>, vector<4x128xf32>, vector<4x4xf32> -> vector<4x4xf32>
    %126 = vector.broadcast %9 : vector<1x4xf32> to vector<4x4xf32>
    %127 = arith.addf %125, %126 : vector<4x4xf32>
    %c0_59 = arith.constant 0 : index
    %c0_60 = arith.constant 0 : index
    %c0_61 = arith.constant 0 : index
    %c0_62 = arith.constant 0 : index
    %128 = vector.load %arg9[%c0_59, %c0_60, %c0_61, %c0_62] : memref<1x3x4x4xf32, #tpu.memory_space<vmem>>, vector<1x1x4x4xf32>
    %129 = vector.shape_cast %128 : vector<1x1x4x4xf32> to vector<4x4xf32>
    %130 = vector.shape_cast %127 : vector<4x4xf32> to vector<1x1x4x4xf32>
    tpu.vector_store %arg9[%c0_59, %c0_60, %c0_61, %c0_62], %130 {strides = array<i32>} : memref<1x3x4x4xf32, #tpu.memory_space<vmem>>, vector<1x1x4x4xf32>,
    %cst_63 = arith.constant dense<0.000000e+00> : vector<64x128xf32>
    %131 = tpu.matmul %111, %6, %cst_63 {dimension_numbers = #tpu.dot_dimension_numbers<[1], [0], [0], [1], [0, 0, 1, 1], [], []>} : vector<64x3xf32>, vector<3x128xf32>, vector<64x128xf32> -> vector<64x128xf32>
    %132 = vector.broadcast %7 : vector<1x128xf32> to vector<64x128xf32>
    %133 = arith.addf %131, %132 : vector<64x128xf32>
    %cst_64 = arith.constant 0.000000e+00 : f32
    %134 = vector.broadcast %cst_64 : f32 to vector<64x128xf32>
    %135 = arith.maximumf %133, %134 : vector<64x128xf32>
    %cst_65 = arith.constant dense<0.000000e+00> : vector<4x128xf32>
    %136 = tpu.matmul %41, %135, %cst_65 {dimension_numbers = #tpu.dot_dimension_numbers<[0], [0], [1], [1], [0, 1, 1, 1], [], []>} : vector<64x4xf32>, vector<64x128xf32>, vector<4x128xf32> -> vector<4x128xf32>
    %cst_66 = arith.constant 6.250000e-02 : f32
    %137 = vector.broadcast %cst_66 : f32 to vector<4x128xf32>
    %138 = arith.mulf %136, %137 : vector<4x128xf32>
    %cst_67 = arith.constant dense<0.000000e+00> : vector<4x4xf32>
    %139 = tpu.matmul %138, %8, %cst_67 {dimension_numbers = #tpu.dot_dimension_numbers<[1], [1], [0], [0], [0, 0, 1, 0], [], []>} : vector<4x128xf32>, vector<4x128xf32>, vector<4x4xf32> -> vector<4x4xf32>
    %140 = vector.broadcast %9 : vector<1x4xf32> to vector<4x4xf32>
    %141 = arith.addf %139, %140 : vector<4x4xf32>
    %cst_68 = arith.constant dense<0xFF800000> : vector<4xf32>
    %142 = vector.multi_reduction <maximumf>, %141, %cst_68 [1] : vector<4x4xf32> to vector<4xf32>
    %143 = vector.shape_cast %142 : vector<4xf32> to vector<4x1xf32>
    %144 = vector.broadcast %143 : vector<4x1xf32> to vector<4x4xf32>
    %145 = arith.subf %141, %144 : vector<4x4xf32>
    %146 = math.exp %145 : vector<4x4xf32>
    %cst_69 = arith.constant dense<0.000000e+00> : vector<4xf32>
    %147 = vector.multi_reduction <add>, %146, %cst_69 [1] : vector<4x4xf32> to vector<4xf32>
    %148 = vector.shape_cast %147 : vector<4xf32> to vector<4x1xf32>
    %149 = vector.broadcast %148 : vector<4x1xf32> to vector<4x4xf32>
    %150 = arith.divf %146, %149 : vector<4x4xf32>
    %151 = arith.subf %150, %5 : vector<4x4xf32>
    %cst_70 = arith.constant 2.500000e-01 : f32
    %152 = vector.broadcast %cst_70 : f32 to vector<4x4xf32>
    %153 = arith.mulf %151, %152 : vector<4x4xf32>
    %cst_71 = arith.constant dense<0.000000e+00> : vector<4x128xf32>
    %154 = tpu.matmul %153, %138, %cst_71 {dimension_numbers = #tpu.dot_dimension_numbers<[0], [0], [1], [1], [0, 1, 1, 1], [], []>} : vector<4x4xf32>, vector<4x128xf32>, vector<4x128xf32> -> vector<4x128xf32>
    %cst_72 = arith.constant dense<0.000000e+00> : vector<4xf32>
    %155 = vector.multi_reduction <add>, %153, %cst_72 [0] : vector<4x4xf32> to vector<4xf32>
    %156 = vector.shape_cast %155 : vector<4xf32> to vector<1x4xf32>
    %cst_73 = arith.constant dense<0.000000e+00> : vector<4x128xf32>
    %157 = tpu.matmul %153, %8, %cst_73 {dimension_numbers = #tpu.dot_dimension_numbers<[1], [0], [0], [1], [0, 0, 1, 1], [], []>} : vector<4x4xf32>, vector<4x128xf32>, vector<4x128xf32> -> vector<4x128xf32>
    %cst_74 = arith.constant dense<0.000000e+00> : vector<64x128xf32>
    %158 = tpu.matmul %41, %157, %cst_74 {dimension_numbers = #tpu.dot_dimension_numbers<[1], [0], [0], [1], [0, 0, 1, 1], [], []>} : vector<64x4xf32>, vector<4x128xf32>, vector<64x128xf32> -> vector<64x128xf32>
    %cst_75 = arith.constant 6.250000e-02 : f32
    %159 = vector.broadcast %cst_75 : f32 to vector<64x128xf32>
    %160 = arith.mulf %158, %159 : vector<64x128xf32>
    %cst_76 = arith.constant 0.000000e+00 : f32
    %161 = vector.broadcast %cst_76 : f32 to vector<64x128xf32>
    %162 = arith.cmpf ogt, %133, %161 : vector<64x128xf32>
    %cst_77 = arith.constant 0.000000e+00 : f32
    %163 = vector.broadcast %cst_77 : f32 to vector<64x128xf32>
    %164 = arith.select %162, %160, %163 : vector<64x128xi1>, vector<64x128xf32>
    %cst_78 = arith.constant dense<0.000000e+00> : vector<3x128xf32>
    %165 = tpu.matmul %111, %164, %cst_78 {dimension_numbers = #tpu.dot_dimension_numbers<[0], [0], [1], [1], [0, 1, 1, 1], [], []>} : vector<64x3xf32>, vector<64x128xf32>, vector<3x128xf32> -> vector<3x128xf32>
    %cst_79 = arith.constant dense<0.000000e+00> : vector<128xf32>
    %166 = vector.multi_reduction <add>, %164, %cst_79 [0] : vector<64x128xf32> to vector<128xf32>
    %167 = vector.shape_cast %166 : vector<128xf32> to vector<1x128xf32>
    %cst_80 = arith.constant 1.000000e-03 : f32
    %168 = vector.broadcast %cst_80 : f32 to vector<3x128xf32>
    %169 = arith.mulf %168, %165 : vector<3x128xf32>
    %170 = arith.subf %6, %169 : vector<3x128xf32>
    %cst_81 = arith.constant 1.000000e-03 : f32
    %171 = vector.broadcast %cst_81 : f32 to vector<1x128xf32>
    %172 = arith.mulf %171, %167 : vector<1x128xf32>
    %173 = arith.subf %7, %172 : vector<1x128xf32>
    %cst_82 = arith.constant 1.000000e-03 : f32
    %174 = vector.broadcast %cst_82 : f32 to vector<4x128xf32>
    %175 = arith.mulf %174, %154 : vector<4x128xf32>
    %176 = arith.subf %8, %175 : vector<4x128xf32>
    %cst_83 = arith.constant 1.000000e-03 : f32
    %177 = vector.broadcast %cst_83 : f32 to vector<1x4xf32>
    %178 = arith.mulf %177, %156 : vector<1x4xf32>
    %179 = arith.subf %9, %178 : vector<1x4xf32>
    %cst_84 = arith.constant dense<0.000000e+00> : vector<64x128xf32>
    %180 = tpu.matmul %116, %170, %cst_84 {dimension_numbers = #tpu.dot_dimension_numbers<[1], [0], [0], [1], [0, 0, 1, 1], [], []>} : vector<64x3xf32>, vector<3x128xf32>, vector<64x128xf32> -> vector<64x128xf32>
    %181 = vector.broadcast %173 : vector<1x128xf32> to vector<64x128xf32>
    %182 = arith.addf %180, %181 : vector<64x128xf32>
    %cst_85 = arith.constant 0.000000e+00 : f32
    %183 = vector.broadcast %cst_85 : f32 to vector<64x128xf32>
    %184 = arith.maximumf %182, %183 : vector<64x128xf32>
    %cst_86 = arith.constant dense<0.000000e+00> : vector<4x128xf32>
    %185 = tpu.matmul %73, %184, %cst_86 {dimension_numbers = #tpu.dot_dimension_numbers<[0], [0], [1], [1], [0, 1, 1, 1], [], []>} : vector<64x4xf32>, vector<64x128xf32>, vector<4x128xf32> -> vector<4x128xf32>
    %cst_87 = arith.constant 6.250000e-02 : f32
    %186 = vector.broadcast %cst_87 : f32 to vector<4x128xf32>
    %187 = arith.mulf %185, %186 : vector<4x128xf32>
    %cst_88 = arith.constant dense<0.000000e+00> : vector<4x4xf32>
    %188 = tpu.matmul %187, %176, %cst_88 {dimension_numbers = #tpu.dot_dimension_numbers<[1], [1], [0], [0], [0, 0, 1, 0], [], []>} : vector<4x128xf32>, vector<4x128xf32>, vector<4x4xf32> -> vector<4x4xf32>
    %189 = vector.broadcast %179 : vector<1x4xf32> to vector<4x4xf32>
    %190 = arith.addf %188, %189 : vector<4x4xf32>
    %c0_89 = arith.constant 0 : index
    %c1 = arith.constant 1 : index
    %c0_90 = arith.constant 0 : index
    %c0_91 = arith.constant 0 : index
    %191 = vector.load %arg9[%c0_89, %c1, %c0_90, %c0_91] : memref<1x3x4x4xf32, #tpu.memory_space<vmem>>, vector<1x1x4x4xf32>
    %192 = vector.shape_cast %191 : vector<1x1x4x4xf32> to vector<4x4xf32>
    %193 = vector.shape_cast %190 : vector<4x4xf32> to vector<1x1x4x4xf32>
    tpu.vector_store %arg9[%c0_89, %c1, %c0_90, %c0_91], %193 {strides = array<i32>} : memref<1x3x4x4xf32, #tpu.memory_space<vmem>>, vector<1x1x4x4xf32>,
    %cst_92 = arith.constant dense<0.000000e+00> : vector<64x128xf32>
    %194 = tpu.matmul %111, %170, %cst_92 {dimension_numbers = #tpu.dot_dimension_numbers<[1], [0], [0], [1], [0, 0, 1, 1], [], []>} : vector<64x3xf32>, vector<3x128xf32>, vector<64x128xf32> -> vector<64x128xf32>
    %195 = vector.broadcast %173 : vector<1x128xf32> to vector<64x128xf32>
    %196 = arith.addf %194, %195 : vector<64x128xf32>
    %cst_93 = arith.constant 0.000000e+00 : f32
    %197 = vector.broadcast %cst_93 : f32 to vector<64x128xf32>
    %198 = arith.maximumf %196, %197 : vector<64x128xf32>
    %cst_94 = arith.constant dense<0.000000e+00> : vector<4x128xf32>
    %199 = tpu.matmul %41, %198, %cst_94 {dimension_numbers = #tpu.dot_dimension_numbers<[0], [0], [1], [1], [0, 1, 1, 1], [], []>} : vector<64x4xf32>, vector<64x128xf32>, vector<4x128xf32> -> vector<4x128xf32>
    %cst_95 = arith.constant 6.250000e-02 : f32
    %200 = vector.broadcast %cst_95 : f32 to vector<4x128xf32>
    %201 = arith.mulf %199, %200 : vector<4x128xf32>
    %cst_96 = arith.constant dense<0.000000e+00> : vector<4x4xf32>
    %202 = tpu.matmul %201, %176, %cst_96 {dimension_numbers = #tpu.dot_dimension_numbers<[1], [1], [0], [0], [0, 0, 1, 0], [], []>} : vector<4x128xf32>, vector<4x128xf32>, vector<4x4xf32> -> vector<4x4xf32>
    %203 = vector.broadcast %179 : vector<1x4xf32> to vector<4x4xf32>
    %204 = arith.addf %202, %203 : vector<4x4xf32>
    %cst_97 = arith.constant dense<0xFF800000> : vector<4xf32>
    %205 = vector.multi_reduction <maximumf>, %204, %cst_97 [1] : vector<4x4xf32> to vector<4xf32>
    %206 = vector.shape_cast %205 : vector<4xf32> to vector<4x1xf32>
    %207 = vector.broadcast %206 : vector<4x1xf32> to vector<4x4xf32>
    %208 = arith.subf %204, %207 : vector<4x4xf32>
    %209 = math.exp %208 : vector<4x4xf32>
    %cst_98 = arith.constant dense<0.000000e+00> : vector<4xf32>
    %210 = vector.multi_reduction <add>, %209, %cst_98 [1] : vector<4x4xf32> to vector<4xf32>
    %211 = vector.shape_cast %210 : vector<4xf32> to vector<4x1xf32>
    %212 = vector.broadcast %211 : vector<4x1xf32> to vector<4x4xf32>
    %213 = arith.divf %209, %212 : vector<4x4xf32>
    %214 = arith.subf %213, %5 : vector<4x4xf32>
    %cst_99 = arith.constant 2.500000e-01 : f32
    %215 = vector.broadcast %cst_99 : f32 to vector<4x4xf32>
    %216 = arith.mulf %214, %215 : vector<4x4xf32>
    %cst_100 = arith.constant dense<0.000000e+00> : vector<4x128xf32>
    %217 = tpu.matmul %216, %201, %cst_100 {dimension_numbers = #tpu.dot_dimension_numbers<[0], [0], [1], [1], [0, 1, 1, 1], [], []>} : vector<4x4xf32>, vector<4x128xf32>, vector<4x128xf32> -> vector<4x128xf32>
    %cst_101 = arith.constant dense<0.000000e+00> : vector<4xf32>
    %218 = vector.multi_reduction <add>, %216, %cst_101 [0] : vector<4x4xf32> to vector<4xf32>
    %219 = vector.shape_cast %218 : vector<4xf32> to vector<1x4xf32>
    %cst_102 = arith.constant dense<0.000000e+00> : vector<4x128xf32>
    %220 = tpu.matmul %216, %176, %cst_102 {dimension_numbers = #tpu.dot_dimension_numbers<[1], [0], [0], [1], [0, 0, 1, 1], [], []>} : vector<4x4xf32>, vector<4x128xf32>, vector<4x128xf32> -> vector<4x128xf32>
    %cst_103 = arith.constant dense<0.000000e+00> : vector<64x128xf32>
    %221 = tpu.matmul %41, %220, %cst_103 {dimension_numbers = #tpu.dot_dimension_numbers<[1], [0], [0], [1], [0, 0, 1, 1], [], []>} : vector<64x4xf32>, vector<4x128xf32>, vector<64x128xf32> -> vector<64x128xf32>
    %cst_104 = arith.constant 6.250000e-02 : f32
    %222 = vector.broadcast %cst_104 : f32 to vector<64x128xf32>
    %223 = arith.mulf %221, %222 : vector<64x128xf32>
    %cst_105 = arith.constant 0.000000e+00 : f32
    %224 = vector.broadcast %cst_105 : f32 to vector<64x128xf32>
    %225 = arith.cmpf ogt, %196, %224 : vector<64x128xf32>
    %cst_106 = arith.constant 0.000000e+00 : f32
    %226 = vector.broadcast %cst_106 : f32 to vector<64x128xf32>
    %227 = arith.select %225, %223, %226 : vector<64x128xi1>, vector<64x128xf32>
    %cst_107 = arith.constant dense<0.000000e+00> : vector<3x128xf32>
    %228 = tpu.matmul %111, %227, %cst_107 {dimension_numbers = #tpu.dot_dimension_numbers<[0], [0], [1], [1], [0, 1, 1, 1], [], []>} : vector<64x3xf32>, vector<64x128xf32>, vector<3x128xf32> -> vector<3x128xf32>
    %cst_108 = arith.constant dense<0.000000e+00> : vector<128xf32>
    %229 = vector.multi_reduction <add>, %227, %cst_108 [0] : vector<64x128xf32> to vector<128xf32>
    %230 = vector.shape_cast %229 : vector<128xf32> to vector<1x128xf32>
    %cst_109 = arith.constant 1.000000e-03 : f32
    %231 = vector.broadcast %cst_109 : f32 to vector<3x128xf32>
    %232 = arith.mulf %231, %228 : vector<3x128xf32>
    %233 = arith.subf %170, %232 : vector<3x128xf32>
    %cst_110 = arith.constant 1.000000e-03 : f32
    %234 = vector.broadcast %cst_110 : f32 to vector<1x128xf32>
    %235 = arith.mulf %234, %230 : vector<1x128xf32>
    %236 = arith.subf %173, %235 : vector<1x128xf32>
    %cst_111 = arith.constant 1.000000e-03 : f32
    %237 = vector.broadcast %cst_111 : f32 to vector<4x128xf32>
    %238 = arith.mulf %237, %217 : vector<4x128xf32>
    %239 = arith.subf %176, %238 : vector<4x128xf32>
    %cst_112 = arith.constant 1.000000e-03 : f32
    %240 = vector.broadcast %cst_112 : f32 to vector<1x4xf32>
    %241 = arith.mulf %240, %219 : vector<1x4xf32>
    %242 = arith.subf %179, %241 : vector<1x4xf32>
    %cst_113 = arith.constant dense<0.000000e+00> : vector<64x128xf32>
    %243 = tpu.matmul %116, %233, %cst_113 {dimension_numbers = #tpu.dot_dimension_numbers<[1], [0], [0], [1], [0, 0, 1, 1], [], []>} : vector<64x3xf32>, vector<3x128xf32>, vector<64x128xf32> -> vector<64x128xf32>
    %244 = vector.broadcast %236 : vector<1x128xf32> to vector<64x128xf32>
    %245 = arith.addf %243, %244 : vector<64x128xf32>
    %cst_114 = arith.constant 0.000000e+00 : f32
    %246 = vector.broadcast %cst_114 : f32 to vector<64x128xf32>
    %247 = arith.maximumf %245, %246 : vector<64x128xf32>
    %cst_115 = arith.constant dense<0.000000e+00> : vector<4x128xf32>
    %248 = tpu.matmul %73, %247, %cst_115 {dimension_numbers = #tpu.dot_dimension_numbers<[0], [0], [1], [1], [0, 1, 1, 1], [], []>} : vector<64x4xf32>, vector<64x128xf32>, vector<4x128xf32> -> vector<4x128xf32>
    %cst_116 = arith.constant 6.250000e-02 : f32
    %249 = vector.broadcast %cst_116 : f32 to vector<4x128xf32>
    %250 = arith.mulf %248, %249 : vector<4x128xf32>
    %cst_117 = arith.constant dense<0.000000e+00> : vector<4x4xf32>
    %251 = tpu.matmul %250, %239, %cst_117 {dimension_numbers = #tpu.dot_dimension_numbers<[1], [1], [0], [0], [0, 0, 1, 0], [], []>} : vector<4x128xf32>, vector<4x128xf32>, vector<4x4xf32> -> vector<4x4xf32>
    %252 = vector.broadcast %242 : vector<1x4xf32> to vector<4x4xf32>
    %253 = arith.addf %251, %252 : vector<4x4xf32>
    %c0_118 = arith.constant 0 : index
    %c2 = arith.constant 2 : index
    %c0_119 = arith.constant 0 : index
    %c0_120 = arith.constant 0 : index
    %254 = vector.load %arg9[%c0_118, %c2, %c0_119, %c0_120] : memref<1x3x4x4xf32, #tpu.memory_space<vmem>>, vector<1x1x4x4xf32>
    %255 = vector.shape_cast %254 : vector<1x1x4x4xf32> to vector<4x4xf32>
    %256 = vector.shape_cast %253 : vector<4x4xf32> to vector<1x1x4x4xf32>
    tpu.vector_store %arg9[%c0_118, %c2, %c0_119, %c0_120], %256 {strides = array<i32>} : memref<1x3x4x4xf32, #tpu.memory_space<vmem>>, vector<1x1x4x4xf32>,
    return
  }
  func.func @transform_0(%arg0: i32) -> (i32, i32, i32) {
    %c0_i32 = arith.constant 0 : i32
    %c0_i32_0 = arith.constant 0 : i32
    %c0_i32_1 = arith.constant 0 : i32
    return %arg0, %c0_i32, %c0_i32_0 : i32, i32, i32
  }
  func.func @transform_1(%arg0: i32) -> (i32, i32, i32) {
    %c0_i32 = arith.constant 0 : i32
    %c0_i32_0 = arith.constant 0 : i32
    %c0_i32_1 = arith.constant 0 : i32
    return %arg0, %c0_i32, %c0_i32_0 : i32, i32, i32
  }
  func.func @transform_2(%arg0: i32) -> (i32, i32, i32) {
    %c0_i32 = arith.constant 0 : i32
    %c0_i32_0 = arith.constant 0 : i32
    %c0_i32_1 = arith.constant 0 : i32
    return %arg0, %c0_i32, %c0_i32_0 : i32, i32, i32
  }
  func.func @transform_3(%arg0: i32) -> (i32, i32) {
    %c0_i32 = arith.constant 0 : i32
    %c0_i32_0 = arith.constant 0 : i32
    %c0_i32_1 = arith.constant 0 : i32
    return %c0_i32, %c0_i32_0 : i32, i32
  }
  func.func @transform_4(%arg0: i32) -> (i32, i32) {
    %c0_i32 = arith.constant 0 : i32
    %c0_i32_0 = arith.constant 0 : i32
    %c0_i32_1 = arith.constant 0 : i32
    return %c0_i32, %c0_i32_0 : i32, i32
  }
  func.func @transform_5(%arg0: i32) -> (i32, i32) {
    %c0_i32 = arith.constant 0 : i32
    %c0_i32_0 = arith.constant 0 : i32
    %c0_i32_1 = arith.constant 0 : i32
    return %c0_i32, %c0_i32_0 : i32, i32
  }
  func.func @transform_6(%arg0: i32) -> (i32, i32) {
    %c0_i32 = arith.constant 0 : i32
    %c0_i32_0 = arith.constant 0 : i32
    %c0_i32_1 = arith.constant 0 : i32
    return %c0_i32, %c0_i32_0 : i32, i32
  }
  func.func @transform_7(%arg0: i32) -> (i32, i32, i32) {
    %c0_i32 = arith.constant 0 : i32
    %c0_i32_0 = arith.constant 0 : i32
    %c0_i32_1 = arith.constant 0 : i32
    return %arg0, %c0_i32, %c0_i32_0 : i32, i32, i32
  }
  func.func @transform_8(%arg0: i32) -> (i32, i32, i32, i32) {
    %c0_i32 = arith.constant 0 : i32
    %c0_i32_0 = arith.constant 0 : i32
    %c0_i32_1 = arith.constant 0 : i32
    %c0_i32_2 = arith.constant 0 : i32
    return %arg0, %c0_i32, %c0_i32_0, %c0_i32_1 : i32, i32, i32, i32
  }
}

</mosaic_0001>

<llo_original>
// kernel: _meta_forward.1
$region0: #{_meta_forward.1}
  #allocation0 [shape = 'u32[]', space=smem, size = 0x4, offset = 0x4, fixed_abs, tag = 'smem constant byte address 0x4 - core index']
  #allocation1 [shape = 'u32[144,128]{1,0:T(1,128)}', space=vmem, size = 0x12000, scoped, tag = 'internal scratch']
  %s0 = inlined_call_operand.vmem [shape: f32[2,64,3], index: 0, kind: input, shape index: {}]
  %s1 = inlined_call_operand.vmem [shape: f32[2,64,3], index: 1, kind: input, shape index: {}]
  %s2 = inlined_call_operand.vmem [shape: f32[2,4,4], index: 2, kind: input, shape index: {}]
  %s3 = inlined_call_operand.vmem [shape: f32[3,128], index: 3, kind: input, shape index: {}]
  %s4 = inlined_call_operand.vmem [shape: f32[1,128], index: 4, kind: input, shape index: {}]
  %s5 = inlined_call_operand.vmem [shape: f32[4,128], index: 5, kind: input, shape index: {}]
  %s6 = inlined_call_operand.vmem [shape: f32[1,4], index: 6, kind: input, shape index: {}]
  %s7 = inlined_call_operand.vmem [shape: f32[2,16,16], index: 7, kind: output, shape index: {0}]
  %s8 = inlined_call_operand.vmem [shape: f32[2,3,4,4], index: 8, kind: output, shape index: {1}]
  %9 = xla_tuple %s7, %s8
  %s10 = sld [smem:[#allocation0]]
  $region69: #{_meta_forward.1} parent=0
    _
  %s12 = ssub.s32 1, %s10
  %s13 = scalar_select 0, %s12, %s10
  loop: start=0, step=1, limit=4
  $region2: #{_meta_forward.1} parent=0 // loop_pre_header
    _
  $region3: #{_meta_forward.1} parent=0 // loop_header
    %s15 = sphi 0, %s19
    %p16 = scmp.ge.s32.totalorder %s15, 4
    %s25 = sphi 0, %s27
    %s28 = sphi 0, %s25
    %s29 = sphi 0, %s28
    %s45 = sphi 0, %s29
    %s51 = sphi 0, %s53
    %s54 = sphi 0, %s51
    %s55 = sphi 0, %s54
    %s71 = sphi 0, %s55
    %s77 = sphi 0, %s79
    %s80 = sphi 0, %s77
    %s81 = sphi 0, %s80
    %s97 = sphi 0, %s81
    %s101 = sphi 0, %s101
    %s103 = sphi 0, %s101
    %s104 = sphi 0, %s103
    %s118 = sphi 0, %s104
    %s122 = sphi 0, %s122
    %s124 = sphi 0, %s122
    %s125 = sphi 0, %s124
    %s139 = sphi 0, %s125
    %s143 = sphi 0, %s143
    %s145 = sphi 0, %s143
    %s146 = sphi 0, %s145
    %s160 = sphi 0, %s146
    %s164 = sphi 0, %s164
    %s166 = sphi 0, %s164
    %s167 = sphi 0, %s166
    %s181 = sphi 0, %s167
    %s187 = sphi 0, %s189
    %s190 = sphi 0, %s187
    %s191 = sphi 0, %s190
    %s207 = sphi 0, %s191
    %s213 = sphi 0, %s215
    %s216 = sphi 0, %s213
    %s217 = sphi 0, %s216
    %s233 = sphi 0, %s217
  $region4: #{_meta_forward.1} parent=0 // loop_header_branch
    %18 = sbr.rel (%p16) target = $region8
  $region5: #{_meta_forward.1} parent=0 // loop_body
    %s20 = ssub.s32 %s15, 1
    %s21 = ssub.s32 %s15, 2
    %s22 = sadd.s32 %s15, 1
    %s23 = ssub.s32 %s15, %s22
    %p24 = scmp.eq.s32.totalorder %s23, 0
    %s26 = sadd.s32 %s25, 1
    %s27 = scalar_select %p24, %s25, %s26
    %p30 = pneg %p24
    %p31 = scmp.eq.s32.totalorder %s15, 1
    %p32 = por %p30, %p31
    %p33 = scmp.ne.s32.totalorder %s25, %s28
    %p34 = scmp.eq.s32.totalorder %s15, 0
    %p35 = por %p33, %p34
    %p36 = scmp.ne.s32.totalorder %s25, %s28
    %p37 = scmp.eq.s32.totalorder %s20, 1
    %p38 = por %p36, %p37
    %p39 = scmp.ne.s32.totalorder %s28, %s29
    %p40 = scmp.eq.s32.totalorder %s20, 0
    %p41 = por %p39, %p40
    %p42 = scmp.ne.s32.totalorder %s28, %s29
    %p43 = scmp.eq.s32.totalorder %s21, 1
    %p44 = por %p42, %p43
    %p46 = scmp.ne.s32.totalorder %s29, %s45
    %p47 = scmp.eq.s32.totalorder %s21, 0
    %p48 = por %p46, %p47
    %s49 = ssub.s32 %s15, %s22
    %p50 = scmp.eq.s32.totalorder %s49, 0
    %s52 = sadd.s32 %s51, 1
    %s53 = scalar_select %p50, %s51, %s52
    %p56 = pneg %p50
    %p57 = scmp.eq.s32.totalorder %s15, 1
    %p58 = por %p56, %p57
    %p59 = scmp.ne.s32.totalorder %s51, %s54
    %p60 = scmp.eq.s32.totalorder %s15, 0
    %p61 = por %p59, %p60
    %p62 = scmp.ne.s32.totalorder %s51, %s54
    %p63 = scmp.eq.s32.totalorder %s20, 1
    %p64 = por %p62, %p63
    %p65 = scmp.ne.s32.totalorder %s54, %s55
    %p66 = scmp.eq.s32.totalorder %s20, 0
    %p67 = por %p65, %p66
    %p68 = scmp.ne.s32.totalorder %s54, %s55
    %p69 = scmp.eq.s32.totalorder %s21, 1
    %p70 = por %p68, %p69
    %p72 = scmp.ne.s32.totalorder %s55, %s71
    %p73 = scmp.eq.s32.totalorder %s21, 0
    %p74 = por %p72, %p73
    %s75 = ssub.s32 %s15, %s22
    %p76 = scmp.eq.s32.totalorder %s75, 0
    %s78 = sadd.s32 %s77, 1
    %s79 = scalar_select %p76, %s77, %s78
    %p82 = pneg %p76
    %p83 = scmp.eq.s32.totalorder %s15, 1
    %p84 = por %p82, %p83
    %p85 = scmp.ne.s32.totalorder %s77, %s80
    %p86 = scmp.eq.s32.totalorder %s15, 0
    %p87 = por %p85, %p86
    %p88 = scmp.ne.s32.totalorder %s77, %s80
    %p89 = scmp.eq.s32.totalorder %s20, 1
    %p90 = por %p88, %p89
    %p91 = scmp.ne.s32.totalorder %s80, %s81
    %p92 = scmp.eq.s32.totalorder %s20, 0
    %p93 = por %p91, %p92
    %p94 = scmp.ne.s32.totalorder %s80, %s81
    %p95 = scmp.eq.s32.totalorder %s21, 1
    %p96 = por %p94, %p95
    %p98 = scmp.ne.s32.totalorder %s81, %s97
    %p99 = scmp.eq.s32.totalorder %s21, 0
    %p100 = por %p98, %p99
    %s102 = sadd.s32 %s101, 1
    %p105 = scmp.eq.s32.totalorder %s15, 1
    %p106 = scmp.ne.s32.totalorder %s101, %s103
    %p107 = scmp.eq.s32.totalorder %s15, 0
    %p108 = por %p106, %p107
    %p109 = scmp.ne.s32.totalorder %s101, %s103
    %p110 = scmp.eq.s32.totalorder %s20, 1
    %p111 = por %p109, %p110
    %p112 = scmp.ne.s32.totalorder %s103, %s104
    %p113 = scmp.eq.s32.totalorder %s20, 0
    %p114 = por %p112, %p113
    %p115 = scmp.ne.s32.totalorder %s103, %s104
    %p116 = scmp.eq.s32.totalorder %s21, 1
    %p117 = por %p115, %p116
    %p119 = scmp.ne.s32.totalorder %s104, %s118
    %p120 = scmp.eq.s32.totalorder %s21, 0
    %p121 = por %p119, %p120
    %s123 = sadd.s32 %s122, 1
    %p126 = scmp.eq.s32.totalorder %s15, 1
    %p127 = scmp.ne.s32.totalorder %s122, %s124
    %p128 = scmp.eq.s32.totalorder %s15, 0
    %p129 = por %p127, %p128
    %p130 = scmp.ne.s32.totalorder %s122, %s124
    %p131 = scmp.eq.s32.totalorder %s20, 1
    %p132 = por %p130, %p131
    %p133 = scmp.ne.s32.totalorder %s124, %s125
    %p134 = scmp.eq.s32.totalorder %s20, 0
    %p135 = por %p133, %p134
    %p136 = scmp.ne.s32.totalorder %s124, %s125
    %p137 = scmp.eq.s32.totalorder %s21, 1
    %p138 = por %p136, %p137
    %p140 = scmp.ne.s32.totalorder %s125, %s139
    %p141 = scmp.eq.s32.totalorder %s21, 0
    %p142 = por %p140, %p141
    %s144 = sadd.s32 %s143, 1
    %p147 = scmp.eq.s32.totalorder %s15, 1
    %p148 = scmp.ne.s32.totalorder %s143, %s145
    %p149 = scmp.eq.s32.totalorder %s15, 0
    %p150 = por %p148, %p149
    %p151 = scmp.ne.s32.totalorder %s143, %s145
    %p152 = scmp.eq.s32.totalorder %s20, 1
    %p153 = por %p151, %p152
    %p154 = scmp.ne.s32.totalorder %s145, %s146
    %p155 = scmp.eq.s32.totalorder %s20, 0
    %p156 = por %p154, %p155
    %p157 = scmp.ne.s32.totalorder %s145, %s146
    %p158 = scmp.eq.s32.totalorder %s21, 1
    %p159 = por %p157, %p158
    %p161 = scmp.ne.s32.totalorder %s146, %s160
    %p162 = scmp.eq.s32.totalorder %s21, 0
    %p163 = por %p161, %p162
    %s165 = sadd.s32 %s164, 1
    %p168 = scmp.eq.s32.totalorder %s15, 1
    %p169 = scmp.ne.s32.totalorder %s164, %s166
    %p170 = scmp.eq.s32.totalorder %s15, 0
    %p171 = por %p169, %p170
    %p172 = scmp.ne.s32.totalorder %s164, %s166
    %p173 = scmp.eq.s32.totalorder %s20, 1
    %p174 = por %p172, %p173
    %p175 = scmp.ne.s32.totalorder %s166, %s167
    %p176 = scmp.eq.s32.totalorder %s20, 0
    %p177 = por %p175, %p176
    %p178 = scmp.ne.s32.totalorder %s166, %s167
    %p179 = scmp.eq.s32.totalorder %s21, 1
    %p180 = por %p178, %p179
    %p182 = scmp.ne.s32.totalorder %s167, %s181
    %p183 = scmp.eq.s32.totalorder %s21, 0
    %p184 = por %p182, %p183
    %s185 = ssub.s32 %s15, %s22
    %p186 = scmp.eq.s32.totalorder %s185, 0
    %s188 = sadd.s32 %s187, 1
    %s189 = scalar_select %p186, %s187, %s188
    %p192 = pneg %p186
    %p193 = scmp.eq.s32.totalorder %s15, 1
    %p194 = por %p192, %p193
    %p195 = scmp.ne.s32.totalorder %s187, %s190
    %p196 = scmp.eq.s32.totalorder %s15, 0
    %p197 = por %p195, %p196
    %p198 = scmp.ne.s32.totalorder %s187, %s190
    %p199 = scmp.eq.s32.totalorder %s20, 1
    %p200 = por %p198, %p199
    %p201 = scmp.ne.s32.totalorder %s190, %s191
    %p202 = scmp.eq.s32.totalorder %s20, 0
    %p203 = por %p201, %p202
    %p204 = scmp.ne.s32.totalorder %s190, %s191
    %p205 = scmp.eq.s32.totalorder %s21, 1
    %p206 = por %p204, %p205
    %p208 = scmp.ne.s32.totalorder %s191, %s207
    %p209 = scmp.eq.s32.totalorder %s21, 0
    %p210 = por %p208, %p209
    %s211 = ssub.s32 %s15, %s22
    %p212 = scmp.eq.s32.totalorder %s211, 0
    %s214 = sadd.s32 %s213, 1
    %s215 = scalar_select %p212, %s213, %s214
    %p218 = pneg %p212
    %p219 = scmp.eq.s32.totalorder %s15, 1
    %p220 = por %p218, %p219
    %p221 = scmp.ne.s32.totalorder %s213, %s216
    %p222 = scmp.eq.s32.totalorder %s15, 0
    %p223 = por %p221, %p222
    %p224 = scmp.ne.s32.totalorder %s213, %s216
    %p225 = scmp.eq.s32.totalorder %s20, 1
    %p226 = por %p224, %p225
    %p227 = scmp.ne.s32.totalorder %s216, %s217
    %p228 = scmp.eq.s32.totalorder %s20, 0
    %p229 = por %p227, %p228
    %p230 = scmp.ne.s32.totalorder %s216, %s217
    %p231 = scmp.eq.s32.totalorder %s21, 1
    %p232 = por %p230, %p231
    %p234 = scmp.ne.s32.totalorder %s217, %s233
    %p235 = scmp.eq.s32.totalorder %s21, 0
    %p236 = por %p234, %p235
    %p237 = scmp.le.s32.totalorder 1, %s15
    %p238 = scmp.lt.s32.totalorder %s15, 3
    %p239 = pnand %p237, %p238
    %p240 = pneg %p239
    // Predicated region
    $region9: #{_meta_forward.1} parent=5 // pred_check
      _
    $region10: #{_meta_forward.1} parent=5 // pred_check_branch
      %242 = sbr.rel (%p239) target = $region12
    $region11: #{_meta_forward.1} parent=5 // pred_region
      %s243 = ssub.s32 %s15, 1
      // Predicated region
      $region13: #{_meta_forward.1} parent=11 // pred_check
        %p244 = pneg %p114
      $region14: #{_meta_forward.1} parent=11 // pred_check_branch
        %246 = sbr.rel (%p244) target = $region16
      $region15: #{_meta_forward.1} parent=11 // pred_region
        _
      $region16: #{_meta_forward.1} parent=11 // pred_fallthru
        _
      // Predicated region
      $region17: #{_meta_forward.1} parent=11 // pred_check
        %p247 = pneg %p135
      $region18: #{_meta_forward.1} parent=11 // pred_check_branch
        %249 = sbr.rel (%p247) target = $region20
      $region19: #{_meta_forward.1} parent=11 // pred_region
        _
      $region20: #{_meta_forward.1} parent=11 // pred_fallthru
        _
      // Predicated region
      $region21: #{_meta_forward.1} parent=11 // pred_check
        %p250 = pneg %p156
      $region22: #{_meta_forward.1} parent=11 // pred_check_branch
        %252 = sbr.rel (%p250) target = $region24
      $region23: #{_meta_forward.1} parent=11 // pred_region
        _
      $region24: #{_meta_forward.1} parent=11 // pred_fallthru
        _
      // Predicated region
      $region25: #{_meta_forward.1} parent=11 // pred_check
        %p253 = pneg %p177
      $region26: #{_meta_forward.1} parent=11 // pred_check_branch
        %255 = sbr.rel (%p253) target = $region28
      $region27: #{_meta_forward.1} parent=11 // pred_region
        _
      $region28: #{_meta_forward.1} parent=11 // pred_fallthru
        _
    $region12: #{_meta_forward.1} parent=5 // pred_fallthru
      _
    %p256 = scmp.lt.s32.totalorder %s15, 2
    // Predicated region
    $region29: #{_meta_forward.1} parent=5 // pred_check
      %p257 = pneg %p256
    $region30: #{_meta_forward.1} parent=5 // pred_check_branch
      %259 = sbr.rel (%p257) target = $region32
    $region31: #{_meta_forward.1} parent=5 // pred_region
      // Predicated region
      $region33: #{_meta_forward.1} parent=31 // pred_check
        %p260 = pneg %p35
      $region34: #{_meta_forward.1} parent=31 // pred_check_branch
        %262 = sbr.rel (%p260) target = $region36
      $region35: #{_meta_forward.1} parent=31 // pred_region
        %p263 = scmp.lt.s32.totalorder %s15, 1
        %s264 = scalar_select %p263, %s15, 1
        %s265 = smul.addr %s264, 8
        %s266 = smul.addr %s265, 8
        %s267 = scalar_lea.vmem %s0, %s266
      $region36: #{_meta_forward.1} parent=31 // pred_fallthru
        _
      // Predicated region
      $region37: #{_meta_forward.1} parent=31 // pred_check
        %p268 = pneg %p61
      $region38: #{_meta_forward.1} parent=31 // pred_check_branch
        %270 = sbr.rel (%p268) target = $region40
      $region39: #{_meta_forward.1} parent=31 // pred_region
        %p271 = scmp.lt.s32.totalorder %s15, 1
        %s272 = scalar_select %p271, %s15, 1
        %s273 = smul.addr %s272, 8
        %s274 = smul.addr %s273, 8
        %s275 = scalar_lea.vmem %s1, %s274
      $region40: #{_meta_forward.1} parent=31 // pred_fallthru
        _
      // Predicated region
      $region41: #{_meta_forward.1} parent=31 // pred_check
        %p276 = pneg %p87
      $region42: #{_meta_forward.1} parent=31 // pred_check_branch
        %278 = sbr.rel (%p276) target = $region44
      $region43: #{_meta_forward.1} parent=31 // pred_region
        %p279 = scmp.lt.s32.totalorder %s15, 1
        %s280 = scalar_select %p279, %s15, 1
        %s281 = smul.addr %s280, 4
        %s282 = scalar_lea.vmem %s2, %s281
      $region44: #{_meta_forward.1} parent=31 // pred_fallthru
        _
    $region32: #{_meta_forward.1} parent=5 // pred_fallthru
      _
    %p283 = scmp.le.s32.totalorder 1, %s15
    %p284 = scmp.lt.s32.totalorder %s15, 3
    %p285 = pnand %p283, %p284
    %p286 = pneg %p285
    // Predicated region
    $region45: #{_meta_forward.1} parent=5 // pred_check
      _
    $region46: #{_meta_forward.1} parent=5 // pred_check_branch
      %288 = sbr.rel (%p285) target = $region48
    $region47: #{_meta_forward.1} parent=5 // pred_region
      %s289 = ssub.s32 %s15, 1
      %p290 = scmp.lt.s32.totalorder %s20, 1
      %s291 = scalar_select %p290, %s20, 1
      %s292 = smul.addr %s291, 8
      %s293 = smul.addr %s292, 8
      %s294 = scalar_lea.vmem %s0, %s293
      %p295 = pneg %p41
      %p296 = pneg %p38
      %p297 = scmp.lt.s32.totalorder %s20, 1
      %s298 = scalar_select %p297, %s20, 1
      %s299 = smul.addr %s298, 8
      %s300 = smul.addr %s299, 8
      %s301 = scalar_lea.vmem %s1, %s300
      %p302 = pneg %p67
      %p303 = pneg %p64
      %p304 = scmp.lt.s32.totalorder %s20, 1
      %s305 = scalar_select %p304, %s20, 1
      %s306 = smul.addr %s305, 4
      %s307 = scalar_lea.vmem %s2, %s306
      %p308 = pneg %p93
      %p309 = pneg %p90
      %p310 = pneg %p114
      %p311 = pneg %p111
      %p312 = pneg %p135
      %p313 = pneg %p132
      %p314 = pneg %p156
      %p315 = pneg %p153
      %p316 = pneg %p177
      %p317 = pneg %p174
      %p318 = pneg %p203
      %p319 = pneg %p200
      %p320 = scmp.lt.s32.totalorder %s20, 1
      %s321 = scalar_select %p320, %s20, 1
      %s322 = smul.addr %s321, 2
      %s323 = smul.addr %s322, 8
      %s324 = scalar_lea.vmem %s7, %s323
      %p325 = pneg %p229
      %p326 = pneg %p226
      %p327 = scmp.lt.s32.totalorder %s20, 1
      %s328 = scalar_select %p327, %s20, 1
      %s329 = smul.addr %s328, 3
      %s330 = smul.addr %s329, 4
      %s331 = scalar_lea.vmem %s8, %s330
      %p332 = scmp.lt.s32.totalorder %s20, 1
      %s333 = scalar_select %p332, %s20, 1
      %s334 = smul.addr %s333, 8
      %s335 = smul.addr %s334, 8
      %s336 = scalar_lea.vmem %s0, %s335
      %p337 = scmp.lt.s32.totalorder %s20, 1
      %s338 = scalar_select %p337, %s20, 1
      %s339 = smul.addr %s338, 8
      %s340 = smul.addr %s339, 8
      %s341 = scalar_lea.vmem %s1, %s340
      %p342 = scmp.lt.s32.totalorder %s20, 1
      %s343 = scalar_select %p342, %s20, 1
      %s344 = smul.addr %s343, 4
      %s345 = scalar_lea.vmem %s2, %s344
      %p346 = scmp.lt.s32.totalorder %s20, 1
      %s347 = scalar_select %p346, %s20, 1
      %s348 = smul.addr %s347, 2
      %s349 = smul.addr %s348, 8
      %s350 = scalar_lea.vmem %s7, %s349
      %p351 = scmp.lt.s32.totalorder %s20, 1
      %s352 = scalar_select %p351, %s20, 1
      %s353 = smul.addr %s352, 3
      %s354 = smul.addr %s353, 4
      %s355 = scalar_lea.vmem %s8, %s354
      %v356 = vld [vmem:[%s336] sm:$0xff]
      %v357 = vld [vmem:[%s336 + $0x8] sm:$0xff]
      %v358 = vld [vmem:[%s336 + $0x10] sm:$0xff]
      %v359 = vld [vmem:[%s336 + $0x18] sm:$0xff]
      %v360 = vld [vmem:[%s336 + $0x20] sm:$0xff]
      %v361 = vld [vmem:[%s336 + $0x28] sm:$0xff]
      %v362 = vld [vmem:[%s336 + $0x30] sm:$0xff]
      %v363 = vld [vmem:[%s336 + $0x38] sm:$0xff]
      %v364 = vld [vmem:[%s341] sm:$0xff]
      %v365 = vld [vmem:[%s341 + $0x8] sm:$0xff]
      %v366 = vld [vmem:[%s341 + $0x10] sm:$0xff]
      %v367 = vld [vmem:[%s341 + $0x18] sm:$0xff]
      %v368 = vld [vmem:[%s341 + $0x20] sm:$0xff]
      %v369 = vld [vmem:[%s341 + $0x28] sm:$0xff]
      %v370 = vld [vmem:[%s341 + $0x30] sm:$0xff]
      %v371 = vld [vmem:[%s341 + $0x38] sm:$0xff]
      %v372 = vld [vmem:[%s345] sm:$0xf]
      %v373 = vld [vmem:[%s3] sm:$0x7]
      %v374 = vld [vmem:[%s4] sm:$0x1]
      %v375 = vld [vmem:[%s5] sm:$0xf]
      %v376 = vld [vmem:[%s6] sm:$0x1]
      %v377 = vlaneseq
      %v378 = vshrl.u32 %v377, 7
      %v379 = vadd.s32 %v378, 8
      %v380 = vadd.s32 %v378, 16
      %v381 = vadd.s32 %v378, 24
      %v382 = vadd.s32 %v378, 32
      %v383 = vadd.s32 %v378, 40
      %v384 = vadd.s32 %v378, 48
      %v385 = vadd.s32 %v378, 56
      %v386 = vlaneseq
      %v387 = vand.u32 %v386, 127
      %vm388 = vcmp.eq.s32.totalorder %v378, %v387
      %vm389 = vcmp.eq.s32.totalorder %v379, %v387
      %vm390 = vcmp.eq.s32.totalorder %v380, %v387
      %vm391 = vcmp.eq.s32.totalorder %v381, %v387
      %vm392 = vcmp.eq.s32.totalorder %v382, %v387
      %vm393 = vcmp.eq.s32.totalorder %v383, %v387
      %vm394 = vcmp.eq.s32.totalorder %v384, %v387
      %vm395 = vcmp.eq.s32.totalorder %v385, %v387
      %v396 = vadd.s32 %v387, 16
      %vm397 = vcmp.eq.s32.totalorder %v378, %v396
      %vm398 = vcmp.eq.s32.totalorder %v379, %v396
      %vm399 = vcmp.eq.s32.totalorder %v380, %v396
      %vm400 = vcmp.eq.s32.totalorder %v381, %v396
      %vm401 = vcmp.eq.s32.totalorder %v382, %v396
      %vm402 = vcmp.eq.s32.totalorder %v383, %v396
      %vm403 = vcmp.eq.s32.totalorder %v384, %v396
      %vm404 = vcmp.eq.s32.totalorder %v385, %v396
      %vm405 = vmor %vm388, %vm397
      %vm406 = vmor %vm389, %vm398
      %vm407 = vmor %vm390, %vm399
      %vm408 = vmor %vm391, %vm400
      %vm409 = vmor %vm392, %vm401
      %vm410 = vmor %vm393, %vm402
      %vm411 = vmor %vm394, %vm403
      %vm412 = vmor %vm395, %vm404
      %v413 = vadd.s32 %v387, 32
      %vm414 = vcmp.eq.s32.totalorder %v378, %v413
      %vm415 = vcmp.eq.s32.totalorder %v379, %v413
      %vm416 = vcmp.eq.s32.totalorder %v380, %v413
      %vm417 = vcmp.eq.s32.totalorder %v381, %v413
      %vm418 = vcmp.eq.s32.totalorder %v382, %v413
      %vm419 = vcmp.eq.s32.totalorder %v383, %v413
      %vm420 = vcmp.eq.s32.totalorder %v384, %v413
      %vm421 = vcmp.eq.s32.totalorder %v385, %v413
      %vm422 = vmor %vm405, %vm414
      %vm423 = vmor %vm406, %vm415
      %vm424 = vmor %vm407, %vm416
      %vm425 = vmor %vm408, %vm417
      %vm426 = vmor %vm409, %vm418
      %vm427 = vmor %vm410, %vm419
      %vm428 = vmor %vm411, %vm420
      %vm429 = vmor %vm412, %vm421
      %v430 = vadd.s32 %v387, 48
      %vm431 = vcmp.eq.s32.totalorder %v378, %v430
      %vm432 = vcmp.eq.s32.totalorder %v379, %v430
      %vm433 = vcmp.eq.s32.totalorder %v380, %v430
      %vm434 = vcmp.eq.s32.totalorder %v381, %v430
      %vm435 = vcmp.eq.s32.totalorder %v382, %v430
      %vm436 = vcmp.eq.s32.totalorder %v383, %v430
      %vm437 = vcmp.eq.s32.totalorder %v384, %v430
      %vm438 = vcmp.eq.s32.totalorder %v385, %v430
      %vm439 = vmor %vm422, %vm431
      %vm440 = vmor %vm423, %vm432
      %vm441 = vmor %vm424, %vm433
      %vm442 = vmor %vm425, %vm434
      %vm443 = vmor %vm426, %vm435
      %vm444 = vmor %vm427, %vm436
      %vm445 = vmor %vm428, %vm437
      %vm446 = vmor %vm429, %vm438
      %v447 = vsel %vm439, 1.0, 0.0
      %v448 = vsel %vm440, 1.0, 0.0
      %v449 = vsel %vm441, 1.0, 0.0
      %v450 = vsel %vm442, 1.0, 0.0
      %v451 = vsel %vm443, 1.0, 0.0
      %v452 = vsel %vm444, 1.0, 0.0
      %v453 = vsel %vm445, 1.0, 0.0
      %v454 = vsel %vm446, 1.0, 0.0
      %v455 = vmul.u32 %v387, 16
      %vm456 = vcmp.ge.s32.totalorder %v378, %v455
      %vm457 = vcmp.ge.s32.totalorder %v379, %v455
      %vm458 = vcmp.ge.s32.totalorder %v380, %v455
      %vm459 = vcmp.ge.s32.totalorder %v381, %v455
      %vm460 = vcmp.ge.s32.totalorder %v382, %v455
      %vm461 = vcmp.ge.s32.totalorder %v383, %v455
      %vm462 = vcmp.ge.s32.totalorder %v384, %v455
      %vm463 = vcmp.ge.s32.totalorder %v385, %v455
      %v464 = vadd.s32 %v387, 1
      %v465 = vmul.u32 %v464, 16
      %vm466 = vcmp.lt.s32.totalorder %v378, %v465
      %vm467 = vcmp.lt.s32.totalorder %v379, %v465
      %vm468 = vcmp.lt.s32.totalorder %v380, %v465
      %vm469 = vcmp.lt.s32.totalorder %v381, %v465
      %vm470 = vcmp.lt.s32.totalorder %v382, %v465
      %vm471 = vcmp.lt.s32.totalorder %v383, %v465
      %vm472 = vcmp.lt.s32.totalorder %v384, %v465
      %vm473 = vcmp.lt.s32.totalorder %v385, %v465
      %vm474 = vmand %vm456, %vm466
      %vm475 = vmand %vm457, %vm467
      %vm476 = vmand %vm458, %vm468
      %vm477 = vmand %vm459, %vm469
      %vm478 = vmand %vm460, %vm470
      %vm479 = vmand %vm461, %vm471
      %vm480 = vmand %vm462, %vm472
      %vm481 = vmand %vm463, %vm473
      %v482 = vsel %vm474, 1.0, 0.0
      %v483 = vsel %vm475, 1.0, 0.0
      %v484 = vsel %vm476, 1.0, 0.0
      %v485 = vsel %vm477, 1.0, 0.0
      %v486 = vsel %vm478, 1.0, 0.0
      %v487 = vsel %vm479, 1.0, 0.0
      %v488 = vsel %vm480, 1.0, 0.0
      %v489 = vsel %vm481, 1.0, 0.0
      %490 = vxpose.xlu0.b32.start [1/16] %v447, 128
      %491 = vxpose.xlu0.b32.cont [2/16] %v448, 128
      %492 = vxpose.xlu0.b32.cont [3/16] %v449, 128
      %493 = vxpose.xlu0.b32.cont [4/16] %v450, 128
      %494 = vxpose.xlu0.b32.cont [5/16] %v451, 128
      %495 = vxpose.xlu0.b32.cont [6/16] %v452, 128
      %496 = vxpose.xlu0.b32.cont [7/16] %v453, 128
      %497 = vxpose.xlu0.b32.cont [8/16] %v454, 128
      %498 = vxpose.xlu0.b32.cont [9/16] 0.0, 128
      %499 = vxpose.xlu0.b32.cont [10/16] 0.0, 128
      %500 = vxpose.xlu0.b32.cont [11/16] 0.0, 128
      %501 = vxpose.xlu0.b32.cont [12/16] 0.0, 128
      %502 = vxpose.xlu0.b32.cont [13/16] 0.0, 128
      %503 = vxpose.xlu0.b32.cont [14/16] 0.0, 128
      %504 = vxpose.xlu0.b32.cont [15/16] 0.0, 128
      %505 = vxpose.xlu0.b32.end [16/16] 0.0, 128
      %v506 = vpop.trf.xlu0
      %v507 = vpop.trf.xlu0
      %v508 = vpop.trf.xlu0
      %v509 = vpop.trf.xlu0
      %v510 = vpop.trf.xlu0
      %v511 = vpop.trf.xlu0
      %v512 = vpop.trf.xlu0
      %v513 = vpop.trf.xlu0
      %v514 = vpop.trf.xlu0
      %v515 = vpop.trf.xlu0
      %v516 = vpop.trf.xlu0
      %v517 = vpop.trf.xlu0
      %v518 = vpop.trf.xlu0
      %v519 = vpop.trf.xlu0
      %v520 = vpop.trf.xlu0
      %v521 = vpop.trf.xlu0
      %vm522 = vcmask 523264
      %v524 = vsel %vm522, %v506, 0
      %v527 = vsel %vm522, %v507, 0
      %529 = vmatprep.subr.mxu0 0.0
      %530 = vmatpush1.msra.mxu0 %v356
      %531 = vmatprep.subr.mxu0 0.0
      %532 = vmatpush1.msra.mxu0 %v357
      %533 = vmatprep.subr.mxu0 0.0
      %534 = vmatpush1.msra.mxu0 %v358
      %535 = vmatprep.subr.mxu0 0.0
      %536 = vmatpush1.msra.mxu0 %v359
      %537 = vmatprep.subr.mxu0 0.0
      %538 = vmatpush1.msra.mxu0 %v360
      %539 = vmatprep.subr.mxu0 0.0
      %540 = vmatpush1.msra.mxu0 %v361
      %541 = vmatprep.subr.mxu0 0.0
      %542 = vmatpush1.msra.mxu0 %v362
      %543 = vmatprep.subr.mxu0 0.0
      %544 = vmatpush1.msra.mxu0 %v363
      %545 = vmatprep.subr.mxu0 0.0
      %546 = vmatpush1.msra.mxu0 0.0
      %547 = vmatprep.subr.mxu0 0.0
      %548 = vmatpush1.msra.mxu0 0.0
      %549 = vmatprep.subr.mxu0 0.0
      %550 = vmatpush1.msra.mxu0 0.0
      %551 = vmatprep.subr.mxu0 0.0
      %552 = vmatpush1.msra.mxu0 0.0
      %553 = vmatprep.subr.mxu0 0.0
      %554 = vmatpush1.msra.mxu0 0.0
      %555 = vmatprep.subr.mxu0 0.0
      %556 = vmatpush1.msra.mxu0 0.0
      %557 = vmatprep.subr.mxu0 0.0
      %558 = vmatpush1.msra.mxu0 0.0
      %559 = vmatprep.subr.mxu0 0.0
      %560 = vmatpush1.msra.mxu0 0.0
      %561 = vmatprep.subr.mxu0 0.0
      %562 = vmatpush1.msra.mxu0 0.0
      %563 = vmatprep.subr.mxu0 0.0
      %564 = vmatpush1.msra.mxu0 0.0
      %565 = vmatprep.subr.mxu0 0.0
      %566 = vmatpush1.msra.mxu0 0.0
      %567 = vmatprep.subr.mxu0 0.0
      %568 = vmatpush1.msra.mxu0 0.0
      %569 = vmatprep.subr.mxu0 0.0
      %570 = vmatpush1.msra.mxu0 0.0
      %571 = vmatprep.subr.mxu0 0.0
      %572 = vmatpush1.msra.mxu0 0.0
      %573 = vmatprep.subr.mxu0 0.0
      %574 = vmatpush1.msra.mxu0 0.0
      %575 = vmatprep.subr.mxu0 0.0
      %576 = vmatpush1.msra.mxu0 0.0
      %577 = vmatprep.subr.mxu0 0.0
      %578 = vmatpush1.msra.mxu0 0.0
      %579 = vmatprep.subr.mxu0 0.0
      %580 = vmatpush1.msra.mxu0 0.0
      %581 = vmatprep.subr.mxu0 0.0
      %582 = vmatpush1.msra.mxu0 0.0
      %583 = vmatprep.subr.mxu0 0.0
      %584 = vmatpush1.msra.mxu0 0.0
      %585 = vmatprep.subr.mxu0 0.0
      %586 = vmatpush1.msra.mxu0 0.0
      %587 = vmatprep.subr.mxu0 0.0
      %588 = vmatpush1.msra.mxu0 0.0
      %589 = vmatprep.subr.mxu0 0.0
      %590 = vmatpush1.msra.mxu0 0.0
      %591 = vmatprep.subr.mxu0 0.0
      %592 = vmatpush1.msra.mxu0 0.0
      %593 = vmatprep.mubr.f32.mxu0 0.0
      %594 = vmatmul.mubr.f32.gmra.mrb[0].mxu0 %v524
      %v595 = vpop.f32.mrb[0].mxu0
      %v596 = vadd.f32 0.0, %v595
      %v597 = vpop.f32.mrb[0].mxu0
      %598 = vmatprep.mubr.f32.mxu0 0.0
      %599 = vmatmul.mubr.f32.gmra.mrb[0].mxu0 %v527
      %v600 = vpop.f32.mrb[0].mxu0
      %v601 = vadd.f32 0.0, %v600
      %v602 = vpop.f32.mrb[0].mxu0
      %603 = vdwg.mxu0
      %v604 = vmul.f32 %v596, 0.25
      %v605 = vmul.f32 %v601, 0.25
      %vm606 = vcmask 23552
      %v608 = vsel %vm606, %v604, 0
      %v611 = vsel %vm606, %v605, 0
      %613 = vmatprep.subr.mxu0 0.0
      %614 = vmatpush1.xpose.msra.mxu0 %v608
      %615 = vmatprep.subr.mxu0 0.0
      %616 = vmatpush1.xpose.msra.mxu0 %v611
      %617 = vmatprep.subr.mxu0 0.0
      %618 = vmatpush1.xpose.msra.mxu0 0.0
      %619 = vmatprep.subr.mxu0 0.0
      %620 = vmatpush1.xpose.msra.mxu0 0.0
      %621 = vmatprep.subr.mxu0 0.0
      %622 = vmatpush1.xpose.msra.mxu0 0.0
      %623 = vmatprep.subr.mxu0 0.0
      %624 = vmatpush1.xpose.msra.mxu0 0.0
      %625 = vmatprep.subr.mxu0 0.0
      %626 = vmatpush1.xpose.msra.mxu0 0.0
      %627 = vmatprep.subr.mxu0 0.0
      %628 = vmatpush1.xpose.msra.mxu0 0.0
      %629 = vmatprep.subr.mxu0 0.0
      %630 = vmatpush1.xpose.msra.mxu0 0.0
      %631 = vmatprep.subr.mxu0 0.0
      %632 = vmatpush1.xpose.msra.mxu0 0.0
      %633 = vmatprep.subr.mxu0 0.0
      %634 = vmatpush1.xpose.msra.mxu0 0.0
      %635 = vmatprep.subr.mxu0 0.0
      %636 = vmatpush1.xpose.msra.mxu0 0.0
      %637 = vmatprep.subr.mxu0 0.0
      %638 = vmatpush1.xpose.msra.mxu0 0.0
      %639 = vmatprep.subr.mxu0 0.0
      %640 = vmatpush1.xpose.msra.mxu0 0.0
      %641 = vmatprep.subr.mxu0 0.0
      %642 = vmatpush1.xpose.msra.mxu0 0.0
      %643 = vmatprep.subr.mxu0 0.0
      %644 = vmatpush1.xpose.msra.mxu0 0.0
      %645 = vmatprep.subr.mxu0 0.0
      %646 = vmatpush1.xpose.msra.mxu0 0.0
      %647 = vmatprep.subr.mxu0 0.0
      %648 = vmatpush1.xpose.msra.mxu0 0.0
      %649 = vmatprep.subr.mxu0 0.0
      %650 = vmatpush1.xpose.msra.mxu0 0.0
      %651 = vmatprep.subr.mxu0 0.0
      %652 = vmatpush1.xpose.msra.mxu0 0.0
      %653 = vmatprep.subr.mxu0 0.0
      %654 = vmatpush1.xpose.msra.mxu0 0.0
      %655 = vmatprep.subr.mxu0 0.0
      %656 = vmatpush1.xpose.msra.mxu0 0.0
      %657 = vmatprep.subr.mxu0 0.0
      %658 = vmatpush1.xpose.msra.mxu0 0.0
      %659 = vmatprep.subr.mxu0 0.0
      %660 = vmatpush1.xpose.msra.mxu0 0.0
      %661 = vmatprep.subr.mxu0 0.0
      %662 = vmatpush1.xpose.msra.mxu0 0.0
      %663 = vmatprep.subr.mxu0 0.0
      %664 = vmatpush1.xpose.msra.mxu0 0.0
      %665 = vmatprep.subr.mxu0 0.0
      %666 = vmatpush1.xpose.msra.mxu0 0.0
      %667 = vmatprep.subr.mxu0 0.0
      %668 = vmatpush1.xpose.msra.mxu0 0.0
      %669 = vmatprep.subr.mxu0 0.0
      %670 = vmatpush1.xpose.msra.mxu0 0.0
      %671 = vmatprep.subr.mxu0 0.0
      %672 = vmatpush1.xpose.msra.mxu0 0.0
      %673 = vmatprep.subr.mxu0 0.0
      %674 = vmatpush1.xpose.msra.mxu0 0.0
      %675 = vmatprep.subr.mxu0 0.0
      %676 = vmatpush1.xpose.msra.mxu0 0.0
      %677 = vmatprep.mubr.f32.mxu0 0.0
      %678 = vmatmul.mubr.f32.gmra.mrb[0].mxu0 %v608
      %v679 = vpop.f32.mrb[0].mxu0
      %v680 = vadd.f32 0.0, %v679
      %v681 = vpop.f32.mrb[0].mxu0
      %682 = vmatprep.mubr.f32.mxu0 0.0
      %683 = vmatmul.mubr.f32.gmra.mrb[0].mxu0 %v611
      %v684 = vpop.f32.mrb[0].mxu0
      %v685 = vadd.f32 0.0, %v684
      %v686 = vpop.f32.mrb[0].mxu0
      %687 = vdwg.mxu0
      %v688 = vmul.f32 %v680, 0.57735026
      %v689 = vmul.f32 %v685, 0.57735026
      %vm690 = vcmask 130048
      %v691 = vsel %vm690, %v688, -inf
      %692 = vmax.xlane.f32.xlu0 %v691
      %v693 = vpop.xlane.xlu0 %692
      %v694 = vsel %vm690, %v689, -inf
      %695 = vmax.xlane.f32.xlu0 %v694
      %v696 = vpop.xlane.xlu0 %695
      %v697 = vsub.f32 %v688, %v693
      %v698 = vsub.f32 %v689, %v696
      %v699 = vmul.f32 %v697, 1.442695
      %v700 = vpow.pop %v699
      %v701 = vmul.f32 %v698, 1.442695
      %v702 = vpow.pop %v701
      %v703 = vsel %vm690, %v700, 0.0
      %704 = vadd.xlane.f32.xlu0 %v703
      %v705 = vpop.xlane.xlu0 %704
      %v706 = vsel %vm690, %v702, 0.0
      %707 = vadd.xlane.f32.xlu0 %v706
      %v708 = vpop.xlane.xlu0 %707
      %v709 = vrcp.pop %v705
      %v710 = vmul.f32 %v700, %v709
      %v711 = vrcp.pop %v708
      %v712 = vmul.f32 %v702, %v711
      %713 = vmatprep.subr.mxu0 0.0
      %714 = vmatpush1.msra.mxu0 %v364
      %715 = vmatprep.subr.mxu0 0.0
      %716 = vmatpush1.msra.mxu0 %v365
      %717 = vmatprep.subr.mxu0 0.0
      %718 = vmatpush1.msra.mxu0 %v366
      %719 = vmatprep.subr.mxu0 0.0
      %720 = vmatpush1.msra.mxu0 %v367
      %721 = vmatprep.subr.mxu0 0.0
      %722 = vmatpush1.msra.mxu0 %v368
      %723 = vmatprep.subr.mxu0 0.0
      %724 = vmatpush1.msra.mxu0 %v369
      %725 = vmatprep.subr.mxu0 0.0
      %726 = vmatpush1.msra.mxu0 %v370
      %727 = vmatprep.subr.mxu0 0.0
      %728 = vmatpush1.msra.mxu0 %v371
      %729 = vmatprep.subr.mxu0 0.0
      %730 = vmatpush1.msra.mxu0 0.0
      %731 = vmatprep.subr.mxu0 0.0
      %732 = vmatpush1.msra.mxu0 0.0
      %733 = vmatprep.subr.mxu0 0.0
      %734 = vmatpush1.msra.mxu0 0.0
      %735 = vmatprep.subr.mxu0 0.0
      %736 = vmatpush1.msra.mxu0 0.0
      %737 = vmatprep.subr.mxu0 0.0
      %738 = vmatpush1.msra.mxu0 0.0
      %739 = vmatprep.subr.mxu0 0.0
      %740 = vmatpush1.msra.mxu0 0.0
      %741 = vmatprep.subr.mxu0 0.0
      %742 = vmatpush1.msra.mxu0 0.0
      %743 = vmatprep.subr.mxu0 0.0
      %744 = vmatpush1.msra.mxu0 0.0
      %745 = vmatprep.subr.mxu0 0.0
      %746 = vmatpush1.msra.mxu0 0.0
      %747 = vmatprep.subr.mxu0 0.0
      %748 = vmatpush1.msra.mxu0 0.0
      %749 = vmatprep.subr.mxu0 0.0
      %750 = vmatpush1.msra.mxu0 0.0
      %751 = vmatprep.subr.mxu0 0.0
      %752 = vmatpush1.msra.mxu0 0.0
      %753 = vmatprep.subr.mxu0 0.0
      %754 = vmatpush1.msra.mxu0 0.0
      %755 = vmatprep.subr.mxu0 0.0
      %756 = vmatpush1.msra.mxu0 0.0
      %757 = vmatprep.subr.mxu0 0.0
      %758 = vmatpush1.msra.mxu0 0.0
      %759 = vmatprep.subr.mxu0 0.0
      %760 = vmatpush1.msra.mxu0 0.0
      %761 = vmatprep.subr.mxu0 0.0
      %762 = vmatpush1.msra.mxu0 0.0
      %763 = vmatprep.subr.mxu0 0.0
      %764 = vmatpush1.msra.mxu0 0.0
      %765 = vmatprep.subr.mxu0 0.0
      %766 = vmatpush1.msra.mxu0 0.0
      %767 = vmatprep.subr.mxu0 0.0
      %768 = vmatpush1.msra.mxu0 0.0
      %769 = vmatprep.subr.mxu0 0.0
      %770 = vmatpush1.msra.mxu0 0.0
      %771 = vmatprep.subr.mxu0 0.0
      %772 = vmatpush1.msra.mxu0 0.0
      %773 = vmatprep.subr.mxu0 0.0
      %774 = vmatpush1.msra.mxu0 0.0
      %775 = vmatprep.subr.mxu0 0.0
      %776 = vmatpush1.msra.mxu0 0.0
      %777 = vmatprep.mubr.f32.mxu0 0.0
      %778 = vmatmul.mubr.f32.gmra.mrb[0].mxu0 %v524
      %v779 = vpop.f32.mrb[0].mxu0
      %v780 = vadd.f32 0.0, %v779
      %v781 = vpop.f32.mrb[0].mxu0
      %782 = vmatprep.mubr.f32.mxu0 0.0
      %783 = vmatmul.mubr.f32.gmra.mrb[0].mxu0 %v527
      %v784 = vpop.f32.mrb[0].mxu0
      %v785 = vadd.f32 0.0, %v784
      %v786 = vpop.f32.mrb[0].mxu0
      %787 = vdwg.mxu0
      %v788 = vmul.f32 %v780, 0.25
      %v789 = vmul.f32 %v785, 0.25
      %v791 = vsel %vm606, %v788, 0
      %v794 = vsel %vm606, %v789, 0
      %796 = vmatprep.subr.mxu0 0.0
      %797 = vmatpush1.xpose.msra.mxu0 %v791
      %798 = vmatprep.subr.mxu0 0.0
      %799 = vmatpush1.xpose.msra.mxu0 %v794
      %800 = vmatprep.subr.mxu0 0.0
      %801 = vmatpush1.xpose.msra.mxu0 0.0
      %802 = vmatprep.subr.mxu0 0.0
      %803 = vmatpush1.xpose.msra.mxu0 0.0
      %804 = vmatprep.subr.mxu0 0.0
      %805 = vmatpush1.xpose.msra.mxu0 0.0
      %806 = vmatprep.subr.mxu0 0.0
      %807 = vmatpush1.xpose.msra.mxu0 0.0
      %808 = vmatprep.subr.mxu0 0.0
      %809 = vmatpush1.xpose.msra.mxu0 0.0
      %810 = vmatprep.subr.mxu0 0.0
      %811 = vmatpush1.xpose.msra.mxu0 0.0
      %812 = vmatprep.subr.mxu0 0.0
      %813 = vmatpush1.xpose.msra.mxu0 0.0
      %814 = vmatprep.subr.mxu0 0.0
      %815 = vmatpush1.xpose.msra.mxu0 0.0
      %816 = vmatprep.subr.mxu0 0.0
      %817 = vmatpush1.xpose.msra.mxu0 0.0
      %818 = vmatprep.subr.mxu0 0.0
      %819 = vmatpush1.xpose.msra.mxu0 0.0
      %820 = vmatprep.subr.mxu0 0.0
      %821 = vmatpush1.xpose.msra.mxu0 0.0
      %822 = vmatprep.subr.mxu0 0.0
      %823 = vmatpush1.xpose.msra.mxu0 0.0
      %824 = vmatprep.subr.mxu0 0.0
      %825 = vmatpush1.xpose.msra.mxu0 0.0
      %826 = vmatprep.subr.mxu0 0.0
      %827 = vmatpush1.xpose.msra.mxu0 0.0
      %828 = vmatprep.subr.mxu0 0.0
      %829 = vmatpush1.xpose.msra.mxu0 0.0
      %830 = vmatprep.subr.mxu0 0.0
      %831 = vmatpush1.xpose.msra.mxu0 0.0
      %832 = vmatprep.subr.mxu0 0.0
      %833 = vmatpush1.xpose.msra.mxu0 0.0
      %834 = vmatprep.subr.mxu0 0.0
      %835 = vmatpush1.xpose.msra.mxu0 0.0
      %836 = vmatprep.subr.mxu0 0.0
      %837 = vmatpush1.xpose.msra.mxu0 0.0
      %838 = vmatprep.subr.mxu0 0.0
      %839 = vmatpush1.xpose.msra.mxu0 0.0
      %840 = vmatprep.subr.mxu0 0.0
      %841 = vmatpush1.xpose.msra.mxu0 0.0
      %842 = vmatprep.subr.mxu0 0.0
      %843 = vmatpush1.xpose.msra.mxu0 0.0
      %844 = vmatprep.subr.mxu0 0.0
      %845 = vmatpush1.xpose.msra.mxu0 0.0
      %846 = vmatprep.subr.mxu0 0.0
      %847 = vmatpush1.xpose.msra.mxu0 0.0
      %848 = vmatprep.subr.mxu0 0.0
      %849 = vmatpush1.xpose.msra.mxu0 0.0
      %850 = vmatprep.subr.mxu0 0.0
      %851 = vmatpush1.xpose.msra.mxu0 0.0
      %852 = vmatprep.subr.mxu0 0.0
      %853 = vmatpush1.xpose.msra.mxu0 0.0
      %854 = vmatprep.subr.mxu0 0.0
      %855 = vmatpush1.xpose.msra.mxu0 0.0
      %856 = vmatprep.subr.mxu0 0.0
      %857 = vmatpush1.xpose.msra.mxu0 0.0
      %858 = vmatprep.subr.mxu0 0.0
      %859 = vmatpush1.xpose.msra.mxu0 0.0
      %860 = vmatprep.mubr.f32.mxu0 0.0
      %861 = vmatmul.mubr.f32.gmra.mrb[0].mxu0 %v791
      %v862 = vpop.f32.mrb[0].mxu0
      %v863 = vadd.f32 0.0, %v862
      %v864 = vpop.f32.mrb[0].mxu0
      %865 = vmatprep.mubr.f32.mxu0 0.0
      %866 = vmatmul.mubr.f32.gmra.mrb[0].mxu0 %v794
      %v867 = vpop.f32.mrb[0].mxu0
      %v868 = vadd.f32 0.0, %v867
      %v869 = vpop.f32.mrb[0].mxu0
      %870 = vdwg.mxu0
      %v871 = vmul.f32 %v863, 0.57735026
      %v872 = vmul.f32 %v868, 0.57735026
      %v873 = vsel %vm690, %v871, -inf
      %874 = vmax.xlane.f32.xlu0 %v873
      %v875 = vpop.xlane.xlu0 %874
      %v876 = vsel %vm690, %v872, -inf
      %877 = vmax.xlane.f32.xlu0 %v876
      %v878 = vpop.xlane.xlu0 %877
      %v879 = vsub.f32 %v871, %v875
      %v880 = vsub.f32 %v872, %v878
      %v881 = vmul.f32 %v879, 1.442695
      %v882 = vpow.pop %v881
      %v883 = vmul.f32 %v880, 1.442695
      %v884 = vpow.pop %v883
      %v885 = vsel %vm690, %v882, 0.0
      %886 = vadd.xlane.f32.xlu0 %v885
      %v887 = vpop.xlane.xlu0 %886
      %v888 = vsel %vm690, %v884, 0.0
      %889 = vadd.xlane.f32.xlu0 %v888
      %v890 = vpop.xlane.xlu0 %889
      %v891 = vrcp.pop %v887
      %v892 = vmul.f32 %v882, %v891
      %v893 = vrcp.pop %v890
      %v894 = vmul.f32 %v884, %v893
      %895 = vst.msk [vmem:[%s350] sm:$0xff] %vm690, %v892
      %896 = vst.msk [vmem:[%s350 + $0x8] sm:$0xff] %vm690, %v894
      %v898 = vsel %vm690, %v447, 0
      %v901 = vsel %vm690, %v448, 0
      %v904 = vsel %vm690, %v449, 0
      %v907 = vsel %vm690, %v450, 0
      %v910 = vsel %vm690, %v451, 0
      %v913 = vsel %vm690, %v452, 0
      %v916 = vsel %vm690, %v453, 0
      %v919 = vsel %vm690, %v454, 0
      %921 = vmatprep.subr.mxu0 0.0
      %922 = vmatpush1.msra.mxu0 %v710
      %923 = vmatprep.subr.mxu0 0.0
      %924 = vmatpush1.msra.mxu0 %v712
      %925 = vmatprep.subr.mxu0 0.0
      %926 = vmatpush1.msra.mxu0 0.0
      %927 = vmatprep.subr.mxu0 0.0
      %928 = vmatpush1.msra.mxu0 0.0
      %929 = vmatprep.subr.mxu0 0.0
      %930 = vmatpush1.msra.mxu0 0.0
      %931 = vmatprep.subr.mxu0 0.0
      %932 = vmatpush1.msra.mxu0 0.0
      %933 = vmatprep.subr.mxu0 0.0
      %934 = vmatpush1.msra.mxu0 0.0
      %935 = vmatprep.subr.mxu0 0.0
      %936 = vmatpush1.msra.mxu0 0.0
      %937 = vmatprep.subr.mxu0 0.0
      %938 = vmatpush1.msra.mxu0 0.0
      %939 = vmatprep.subr.mxu0 0.0
      %940 = vmatpush1.msra.mxu0 0.0
      %941 = vmatprep.subr.mxu0 0.0
      %942 = vmatpush1.msra.mxu0 0.0
      %943 = vmatprep.subr.mxu0 0.0
      %944 = vmatpush1.msra.mxu0 0.0
      %945 = vmatprep.subr.mxu0 0.0
      %946 = vmatpush1.msra.mxu0 0.0
      %947 = vmatprep.subr.mxu0 0.0
      %948 = vmatpush1.msra.mxu0 0.0
      %949 = vmatprep.subr.mxu0 0.0
      %950 = vmatpush1.msra.mxu0 0.0
      %951 = vmatprep.subr.mxu0 0.0
      %952 = vmatpush1.msra.mxu0 0.0
      %953 = vmatprep.subr.mxu0 0.0
      %954 = vmatpush1.msra.mxu0 0.0
      %955 = vmatprep.subr.mxu0 0.0
      %956 = vmatpush1.msra.mxu0 0.0
      %957 = vmatprep.subr.mxu0 0.0
      %958 = vmatpush1.msra.mxu0 0.0
      %959 = vmatprep.subr.mxu0 0.0
      %960 = vmatpush1.msra.mxu0 0.0
      %961 = vmatprep.subr.mxu0 0.0
      %962 = vmatpush1.msra.mxu0 0.0
      %963 = vmatprep.subr.mxu0 0.0
      %964 = vmatpush1.msra.mxu0 0.0
      %965 = vmatprep.subr.mxu0 0.0
      %966 = vmatpush1.msra.mxu0 0.0
      %967 = vmatprep.subr.mxu0 0.0
      %968 = vmatpush1.msra.mxu0 0.0
      %969 = vmatprep.subr.mxu0 0.0
      %970 = vmatpush1.msra.mxu0 0.0
      %971 = vmatprep.subr.mxu0 0.0
      %972 = vmatpush1.msra.mxu0 0.0
      %973 = vmatprep.subr.mxu0 0.0
      %974 = vmatpush1.msra.mxu0 0.0
      %975 = vmatprep.subr.mxu0 0.0
      %976 = vmatpush1.msra.mxu0 0.0
      %977 = vmatprep.subr.mxu0 0.0
      %978 = vmatpush1.msra.mxu0 0.0
      %979 = vmatprep.subr.mxu0 0.0
      %980 = vmatpush1.msra.mxu0 0.0
      %981 = vmatprep.subr.mxu0 0.0
      %982 = vmatpush1.msra.mxu0 0.0
      %983 = vmatprep.subr.mxu0 0.0
      %984 = vmatpush1.msra.mxu0 0.0
      %985 = vmatprep.mubr.f32.mxu0 0.0
      %986 = vmatmul.mubr.f32.gmra.mrb[0].mxu0 %v898
      %v987 = vpop.f32.mrb[0].mxu0
      %v988 = vadd.f32 0.0, %v987
      %v989 = vpop.f32.mrb[0].mxu0
      %990 = vmatprep.mubr.f32.mxu0 0.0
      %991 = vmatmul.mubr.f32.gmra.mrb[0].mxu0 %v901
      %v992 = vpop.f32.mrb[0].mxu0
      %v993 = vadd.f32 0.0, %v992
      %v994 = vpop.f32.mrb[0].mxu0
      %995 = vmatprep.mubr.f32.mxu0 0.0
      %996 = vmatmul.mubr.f32.gmra.mrb[0].mxu0 %v904
      %v997 = vpop.f32.mrb[0].mxu0
      %v998 = vadd.f32 0.0, %v997
      %v999 = vpop.f32.mrb[0].mxu0
      %1000 = vmatprep.mubr.f32.mxu0 0.0
      %1001 = vmatmul.mubr.f32.gmra.mrb[0].mxu0 %v907
      %v1002 = vpop.f32.mrb[0].mxu0
      %v1003 = vadd.f32 0.0, %v1002
      %v1004 = vpop.f32.mrb[0].mxu0
      %1005 = vmatprep.mubr.f32.mxu0 0.0
      %1006 = vmatmul.mubr.f32.gmra.mrb[0].mxu0 %v910
      %v1007 = vpop.f32.mrb[0].mxu0
      %v1008 = vadd.f32 0.0, %v1007
      %v1009 = vpop.f32.mrb[0].mxu0
      %1010 = vmatprep.mubr.f32.mxu0 0.0
      %1011 = vmatmul.mubr.f32.gmra.mrb[0].mxu0 %v913
      %v1012 = vpop.f32.mrb[0].mxu0
      %v1013 = vadd.f32 0.0, %v1012
      %v1014 = vpop.f32.mrb[0].mxu0
      %1015 = vmatprep.mubr.f32.mxu0 0.0
      %1016 = vmatmul.mubr.f32.gmra.mrb[0].mxu0 %v916
      %v1017 = vpop.f32.mrb[0].mxu0
      %v1018 = vadd.f32 0.0, %v1017
      %v1019 = vpop.f32.mrb[0].mxu0
      %1020 = vmatprep.mubr.f32.mxu0 0.0
      %1021 = vmatmul.mubr.f32.gmra.mrb[0].mxu0 %v919
      %v1022 = vpop.f32.mrb[0].mxu0
      %v1023 = vadd.f32 0.0, %v1022
      %v1024 = vpop.f32.mrb[0].mxu0
      %1025 = vdwg.mxu0
      %v1027 = vsel %vm690, %v988, 0
      %v1030 = vsel %vm690, %v993, 0
      %v1033 = vsel %vm690, %v998, 0
      %v1036 = vsel %vm690, %v1003, 0
      %v1039 = vsel %vm690, %v1008, 0
      %v1042 = vsel %vm690, %v1013, 0
      %v1045 = vsel %vm690, %v1018, 0
      %v1048 = vsel %vm690, %v1023, 0
      %1050 = vmatprep.subr.mxu0 0.0
      %1051 = vmatpush1.xpose.msra.mxu0 %v898
      %1052 = vmatprep.subr.mxu0 0.0
      %1053 = vmatpush1.xpose.msra.mxu0 %v901
      %1054 = vmatprep.subr.mxu0 0.0
      %1055 = vmatpush1.xpose.msra.mxu0 %v904
      %1056 = vmatprep.subr.mxu0 0.0
      %1057 = vmatpush1.xpose.msra.mxu0 %v907
      %1058 = vmatprep.subr.mxu0 0.0
      %1059 = vmatpush1.xpose.msra.mxu0 %v910
      %1060 = vmatprep.subr.mxu0 0.0
      %1061 = vmatpush1.xpose.msra.mxu0 %v913
      %1062 = vmatprep.subr.mxu0 0.0
      %1063 = vmatpush1.xpose.msra.mxu0 %v916
      %1064 = vmatprep.subr.mxu0 0.0
      %1065 = vmatpush1.xpose.msra.mxu0 %v919
      %1066 = vmatprep.subr.mxu0 0.0
      %1067 = vmatpush1.xpose.msra.mxu0 0.0
      %1068 = vmatprep.subr.mxu0 0.0
      %1069 = vmatpush1.xpose.msra.mxu0 0.0
      %1070 = vmatprep.subr.mxu0 0.0
      %1071 = vmatpush1.xpose.msra.mxu0 0.0
      %1072 = vmatprep.subr.mxu0 0.0
      %1073 = vmatpush1.xpose.msra.mxu0 0.0
      %1074 = vmatprep.subr.mxu0 0.0
      %1075 = vmatpush1.xpose.msra.mxu0 0.0
      %1076 = vmatprep.subr.mxu0 0.0
      %1077 = vmatpush1.xpose.msra.mxu0 0.0
      %1078 = vmatprep.subr.mxu0 0.0
      %1079 = vmatpush1.xpose.msra.mxu0 0.0
      %1080 = vmatprep.subr.mxu0 0.0
      %1081 = vmatpush1.xpose.msra.mxu0 0.0
      %1082 = vmatprep.subr.mxu0 0.0
      %1083 = vmatpush1.xpose.msra.mxu0 0.0
      %1084 = vmatprep.subr.mxu0 0.0
      %1085 = vmatpush1.xpose.msra.mxu0 0.0
      %1086 = vmatprep.subr.mxu0 0.0
      %1087 = vmatpush1.xpose.msra.mxu0 0.0
      %1088 = vmatprep.subr.mxu0 0.0
      %1089 = vmatpush1.xpose.msra.mxu0 0.0
      %1090 = vmatprep.subr.mxu0 0.0
      %1091 = vmatpush1.xpose.msra.mxu0 0.0
      %1092 = vmatprep.subr.mxu0 0.0
      %1093 = vmatpush1.xpose.msra.mxu0 0.0
      %1094 = vmatprep.subr.mxu0 0.0
      %1095 = vmatpush1.xpose.msra.mxu0 0.0
      %1096 = vmatprep.subr.mxu0 0.0
      %1097 = vmatpush1.xpose.msra.mxu0 0.0
      %1098 = vmatprep.subr.mxu0 0.0
      %1099 = vmatpush1.xpose.msra.mxu0 0.0
      %1100 = vmatprep.subr.mxu0 0.0
      %1101 = vmatpush1.xpose.msra.mxu0 0.0
      %1102 = vmatprep.subr.mxu0 0.0
      %1103 = vmatpush1.xpose.msra.mxu0 0.0
      %1104 = vmatprep.subr.mxu0 0.0
      %1105 = vmatpush1.xpose.msra.mxu0 0.0
      %1106 = vmatprep.subr.mxu0 0.0
      %1107 = vmatpush1.xpose.msra.mxu0 0.0
      %1108 = vmatprep.subr.mxu0 0.0
      %1109 = vmatpush1.xpose.msra.mxu0 0.0
      %1110 = vmatprep.subr.mxu0 0.0
      %1111 = vmatpush1.xpose.msra.mxu0 0.0
      %1112 = vmatprep.subr.mxu0 0.0
      %1113 = vmatpush1.xpose.msra.mxu0 0.0
      %1114 = vmatprep.mubr.f32.mxu0 0.0
      %1115 = vmatmul.mubr.f32.gmra.mrb[0].mxu0 %v1027
      %v1116 = vpop.f32.mrb[0].mxu0
      %v1117 = vadd.f32 0.0, %v1116
      %v1118 = vpop.f32.mrb[0].mxu0
      %1119 = vmatprep.mubr.f32.mxu0 0.0
      %1120 = vmatmul.mubr.f32.gmra.mrb[0].mxu0 %v1030
      %v1121 = vpop.f32.mrb[0].mxu0
      %v1122 = vadd.f32 0.0, %v1121
      %v1123 = vpop.f32.mrb[0].mxu0
      %1124 = vmatprep.mubr.f32.mxu0 0.0
      %1125 = vmatmul.mubr.f32.gmra.mrb[0].mxu0 %v1033
      %v1126 = vpop.f32.mrb[0].mxu0
      %v1127 = vadd.f32 0.0, %v1126
      %v1128 = vpop.f32.mrb[0].mxu0
      %1129 = vmatprep.mubr.f32.mxu0 0.0
      %1130 = vmatmul.mubr.f32.gmra.mrb[0].mxu0 %v1036
      %v1131 = vpop.f32.mrb[0].mxu0
      %v1132 = vadd.f32 0.0, %v1131
      %v1133 = vpop.f32.mrb[0].mxu0
      %1134 = vmatprep.mubr.f32.mxu0 0.0
      %1135 = vmatmul.mubr.f32.gmra.mrb[0].mxu0 %v1039
      %v1136 = vpop.f32.mrb[0].mxu0
      %v1137 = vadd.f32 0.0, %v1136
      %v1138 = vpop.f32.mrb[0].mxu0
      %1139 = vmatprep.mubr.f32.mxu0 0.0
      %1140 = vmatmul.mubr.f32.gmra.mrb[0].mxu0 %v1042
      %v1141 = vpop.f32.mrb[0].mxu0
      %v1142 = vadd.f32 0.0, %v1141
      %v1143 = vpop.f32.mrb[0].mxu0
      %1144 = vmatprep.mubr.f32.mxu0 0.0
      %1145 = vmatmul.mubr.f32.gmra.mrb[0].mxu0 %v1045
      %v1146 = vpop.f32.mrb[0].mxu0
      %v1147 = vadd.f32 0.0, %v1146
      %v1148 = vpop.f32.mrb[0].mxu0
      %1149 = vmatprep.mubr.f32.mxu0 0.0
      %1150 = vmatmul.mubr.f32.gmra.mrb[0].mxu0 %v1048
      %v1151 = vpop.f32.mrb[0].mxu0
      %v1152 = vadd.f32 0.0, %v1151
      %v1153 = vpop.f32.mrb[0].mxu0
      %1154 = vdwg.mxu0
      %vm1155 = vcmask 31744
      %v1157 = vsel %vm1155, %v482, 0
      %v1160 = vsel %vm1155, %v483, 0
      %v1163 = vsel %vm1155, %v484, 0
      %v1166 = vsel %vm1155, %v485, 0
      %v1169 = vsel %vm1155, %v486, 0
      %v1172 = vsel %vm1155, %v487, 0
      %v1175 = vsel %vm1155, %v488, 0
      %v1178 = vsel %vm1155, %v489, 0
      %1180 = vmatprep.subr.mxu0 0.0
      %1181 = vmatpush1.xpose.msra.mxu0 %v1157
      %1182 = vmatprep.subr.mxu0 0.0
      %1183 = vmatpush1.xpose.msra.mxu0 %v1160
      %1184 = vmatprep.subr.mxu0 0.0
      %1185 = vmatpush1.xpose.msra.mxu0 %v1163
      %1186 = vmatprep.subr.mxu0 0.0
      %1187 = vmatpush1.xpose.msra.mxu0 %v1166
      %1188 = vmatprep.subr.mxu0 0.0
      %1189 = vmatpush1.xpose.msra.mxu0 %v1169
      %1190 = vmatprep.subr.mxu0 0.0
      %1191 = vmatpush1.xpose.msra.mxu0 %v1172
      %1192 = vmatprep.subr.mxu0 0.0
      %1193 = vmatpush1.xpose.msra.mxu0 %v1175
      %1194 = vmatprep.subr.mxu0 0.0
      %1195 = vmatpush1.xpose.msra.mxu0 %v1178
      %1196 = vmatprep.subr.mxu0 0.0
      %1197 = vmatpush1.xpose.msra.mxu0 0.0
      %1198 = vmatprep.subr.mxu0 0.0
      %1199 = vmatpush1.xpose.msra.mxu0 0.0
      %1200 = vmatprep.subr.mxu0 0.0
      %1201 = vmatpush1.xpose.msra.mxu0 0.0
      %1202 = vmatprep.subr.mxu0 0.0
      %1203 = vmatpush1.xpose.msra.mxu0 0.0
      %1204 = vmatprep.subr.mxu0 0.0
      %1205 = vmatpush1.xpose.msra.mxu0 0.0
      %1206 = vmatprep.subr.mxu0 0.0
      %1207 = vmatpush1.xpose.msra.mxu0 0.0
      %1208 = vmatprep.subr.mxu0 0.0
      %1209 = vmatpush1.xpose.msra.mxu0 0.0
      %1210 = vmatprep.subr.mxu0 0.0
      %1211 = vmatpush1.xpose.msra.mxu0 0.0
      %1212 = vmatprep.subr.mxu0 0.0
      %1213 = vmatpush1.xpose.msra.mxu0 0.0
      %1214 = vmatprep.subr.mxu0 0.0
      %1215 = vmatpush1.xpose.msra.mxu0 0.0
      %1216 = vmatprep.subr.mxu0 0.0
      %1217 = vmatpush1.xpose.msra.mxu0 0.0
      %1218 = vmatprep.subr.mxu0 0.0
      %1219 = vmatpush1.xpose.msra.mxu0 0.0
      %1220 = vmatprep.subr.mxu0 0.0
      %1221 = vmatpush1.xpose.msra.mxu0 0.0
      %1222 = vmatprep.subr.mxu0 0.0
      %1223 = vmatpush1.xpose.msra.mxu0 0.0
      %1224 = vmatprep.subr.mxu0 0.0
      %1225 = vmatpush1.xpose.msra.mxu0 0.0
      %1226 = vmatprep.subr.mxu0 0.0
      %1227 = vmatpush1.xpose.msra.mxu0 0.0
      %1228 = vmatprep.subr.mxu0 0.0
      %1229 = vmatpush1.xpose.msra.mxu0 0.0
      %1230 = vmatprep.subr.mxu0 0.0
      %1231 = vmatpush1.xpose.msra.mxu0 0.0
      %1232 = vmatprep.subr.mxu0 0.0
      %1233 = vmatpush1.xpose.msra.mxu0 0.0
      %1234 = vmatprep.subr.mxu0 0.0
      %1235 = vmatpush1.xpose.msra.mxu0 0.0
      %1236 = vmatprep.subr.mxu0 0.0
      %1237 = vmatpush1.xpose.msra.mxu0 0.0
      %1238 = vmatprep.subr.mxu0 0.0
      %1239 = vmatpush1.xpose.msra.mxu0 0.0
      %1240 = vmatprep.subr.mxu0 0.0
      %1241 = vmatpush1.xpose.msra.mxu0 0.0
      %1242 = vmatprep.subr.mxu0 0.0
      %1243 = vmatpush1.xpose.msra.mxu0 0.0
      %1244 = vmatprep.mubr.f32.mxu0 0.0
      %1245 = vmatmul.mubr.f32.gmra.mrb[0].mxu0 %v1157
      %v1246 = vpop.f32.mrb[0].mxu0
      %v1247 = vadd.f32 0.0, %v1246
      %v1248 = vpop.f32.mrb[0].mxu0
      %1249 = vmatprep.mubr.f32.mxu0 0.0
      %1250 = vmatmul.mubr.f32.gmra.mrb[0].mxu0 %v1160
      %v1251 = vpop.f32.mrb[0].mxu0
      %v1252 = vadd.f32 0.0, %v1251
      %v1253 = vpop.f32.mrb[0].mxu0
      %1254 = vmatprep.mubr.f32.mxu0 0.0
      %1255 = vmatmul.mubr.f32.gmra.mrb[0].mxu0 %v1163
      %v1256 = vpop.f32.mrb[0].mxu0
      %v1257 = vadd.f32 0.0, %v1256
      %v1258 = vpop.f32.mrb[0].mxu0
      %1259 = vmatprep.mubr.f32.mxu0 0.0
      %1260 = vmatmul.mubr.f32.gmra.mrb[0].mxu0 %v1166
      %v1261 = vpop.f32.mrb[0].mxu0
      %v1262 = vadd.f32 0.0, %v1261
      %v1263 = vpop.f32.mrb[0].mxu0
      %1264 = vmatprep.mubr.f32.mxu0 0.0
      %1265 = vmatmul.mubr.f32.gmra.mrb[0].mxu0 %v1169
      %v1266 = vpop.f32.mrb[0].mxu0
      %v1267 = vadd.f32 0.0, %v1266
      %v1268 = vpop.f32.mrb[0].mxu0
      %1269 = vmatprep.mubr.f32.mxu0 0.0
      %1270 = vmatmul.mubr.f32.gmra.mrb[0].mxu0 %v1172
      %v1271 = vpop.f32.mrb[0].mxu0
      %v1272 = vadd.f32 0.0, %v1271
      %v1273 = vpop.f32.mrb[0].mxu0
      %1274 = vmatprep.mubr.f32.mxu0 0.0
      %1275 = vmatmul.mubr.f32.gmra.mrb[0].mxu0 %v1175
      %v1276 = vpop.f32.mrb[0].mxu0
      %v1277 = vadd.f32 0.0, %v1276
      %v1278 = vpop.f32.mrb[0].mxu0
      %1279 = vmatprep.mubr.f32.mxu0 0.0
      %1280 = vmatmul.mubr.f32.gmra.mrb[0].mxu0 %v1178
      %v1281 = vpop.f32.mrb[0].mxu0
      %v1282 = vadd.f32 0.0, %v1281
      %v1283 = vpop.f32.mrb[0].mxu0
      %1284 = vdwg.mxu0
      %v1285 = vmul.f32 %v1117, %v1247
      %v1286 = vmul.f32 %v1122, %v1252
      %v1287 = vmul.f32 %v1127, %v1257
      %v1288 = vmul.f32 %v1132, %v1262
      %v1289 = vmul.f32 %v1137, %v1267
      %v1290 = vmul.f32 %v1142, %v1272
      %v1291 = vmul.f32 %v1147, %v1277
      %v1292 = vmul.f32 %v1152, %v1282
      %v1294 = vsel %vm522, %v1285, 0
      %v1297 = vsel %vm522, %v1286, 0
      %v1300 = vsel %vm522, %v1287, 0
      %v1303 = vsel %vm522, %v1288, 0
      %v1306 = vsel %vm522, %v1289, 0
      %v1309 = vsel %vm522, %v1290, 0
      %v1312 = vsel %vm522, %v1291, 0
      %v1315 = vsel %vm522, %v1292, 0
      %1317 = vmatprep.subr.mxu0 0.0
      %1318 = vmatpush1.msra.mxu0 %v356
      %1319 = vmatprep.subr.mxu0 0.0
      %1320 = vmatpush1.msra.mxu0 %v357
      %1321 = vmatprep.subr.mxu0 0.0
      %1322 = vmatpush1.msra.mxu0 %v358
      %1323 = vmatprep.subr.mxu0 0.0
      %1324 = vmatpush1.msra.mxu0 %v359
      %1325 = vmatprep.subr.mxu0 0.0
      %1326 = vmatpush1.msra.mxu0 %v360
      %1327 = vmatprep.subr.mxu0 0.0
      %1328 = vmatpush1.msra.mxu0 %v361
      %1329 = vmatprep.subr.mxu0 0.0
      %1330 = vmatpush1.msra.mxu0 %v362
      %1331 = vmatprep.subr.mxu0 0.0
      %1332 = vmatpush1.msra.mxu0 %v363
      %1333 = vmatprep.subr.mxu0 0.0
      %1334 = vmatpush1.msra.mxu0 0.0
      %1335 = vmatprep.subr.mxu0 0.0
      %1336 = vmatpush1.msra.mxu0 0.0
      %1337 = vmatprep.subr.mxu0 0.0
      %1338 = vmatpush1.msra.mxu0 0.0
      %1339 = vmatprep.subr.mxu0 0.0
      %1340 = vmatpush1.msra.mxu0 0.0
      %1341 = vmatprep.subr.mxu0 0.0
      %1342 = vmatpush1.msra.mxu0 0.0
      %1343 = vmatprep.subr.mxu0 0.0
      %1344 = vmatpush1.msra.mxu0 0.0
      %1345 = vmatprep.subr.mxu0 0.0
      %1346 = vmatpush1.msra.mxu0 0.0
      %1347 = vmatprep.subr.mxu0 0.0
      %1348 = vmatpush1.msra.mxu0 0.0
      %1349 = vmatprep.subr.mxu0 0.0
      %1350 = vmatpush1.msra.mxu0 0.0
      %1351 = vmatprep.subr.mxu0 0.0
      %1352 = vmatpush1.msra.mxu0 0.0
      %1353 = vmatprep.subr.mxu0 0.0
      %1354 = vmatpush1.msra.mxu0 0.0
      %1355 = vmatprep.subr.mxu0 0.0
      %1356 = vmatpush1.msra.mxu0 0.0
      %1357 = vmatprep.subr.mxu0 0.0
      %1358 = vmatpush1.msra.mxu0 0.0
      %1359 = vmatprep.subr.mxu0 0.0
      %1360 = vmatpush1.msra.mxu0 0.0
      %1361 = vmatprep.subr.mxu0 0.0
      %1362 = vmatpush1.msra.mxu0 0.0
      %1363 = vmatprep.subr.mxu0 0.0
      %1364 = vmatpush1.msra.mxu0 0.0
      %1365 = vmatprep.subr.mxu0 0.0
      %1366 = vmatpush1.msra.mxu0 0.0
      %1367 = vmatprep.subr.mxu0 0.0
      %1368 = vmatpush1.msra.mxu0 0.0
      %1369 = vmatprep.subr.mxu0 0.0
      %1370 = vmatpush1.msra.mxu0 0.0
      %1371 = vmatprep.subr.mxu0 0.0
      %1372 = vmatpush1.msra.mxu0 0.0
      %1373 = vmatprep.subr.mxu0 0.0
      %1374 = vmatpush1.msra.mxu0 0.0
      %1375 = vmatprep.subr.mxu0 0.0
      %1376 = vmatpush1.msra.mxu0 0.0
      %1377 = vmatprep.subr.mxu0 0.0
      %1378 = vmatpush1.msra.mxu0 0.0
      %1379 = vmatprep.subr.mxu0 0.0
      %1380 = vmatpush1.msra.mxu0 0.0
      %1381 = vmatprep.mubr.f32.mxu0 0.0
      %1382 = vmatmul.mubr.f32.gmra.mrb[0].mxu0 %v1294
      %v1383 = vpop.f32.mrb[0].mxu0
      %v1384 = vadd.f32 0.0, %v1383
      %v1385 = vpop.f32.mrb[0].mxu0
      %1386 = vmatprep.mubr.f32.mxu0 0.0
      %1387 = vmatmul.mubr.f32.gmra.mrb[0].mxu0 %v1297
      %v1388 = vpop.f32.mrb[0].mxu0
      %v1389 = vadd.f32 0.0, %v1388
      %v1390 = vpop.f32.mrb[0].mxu0
      %1391 = vmatprep.mubr.f32.mxu0 0.0
      %1392 = vmatmul.mubr.f32.gmra.mrb[0].mxu0 %v1300
      %v1393 = vpop.f32.mrb[0].mxu0
      %v1394 = vadd.f32 0.0, %v1393
      %v1395 = vpop.f32.mrb[0].mxu0
      %1396 = vmatprep.mubr.f32.mxu0 0.0
      %1397 = vmatmul.mubr.f32.gmra.mrb[0].mxu0 %v1303
      %v1398 = vpop.f32.mrb[0].mxu0
      %v1399 = vadd.f32 0.0, %v1398
      %v1400 = vpop.f32.mrb[0].mxu0
      %1401 = vmatprep.mubr.f32.mxu0 0.0
      %1402 = vmatmul.mubr.f32.gmra.mrb[0].mxu0 %v1306
      %v1403 = vpop.f32.mrb[0].mxu0
      %v1404 = vadd.f32 0.0, %v1403
      %v1405 = vpop.f32.mrb[0].mxu0
      %1406 = vmatprep.mubr.f32.mxu0 0.0
      %1407 = vmatmul.mubr.f32.gmra.mrb[0].mxu0 %v1309
      %v1408 = vpop.f32.mrb[0].mxu0
      %v1409 = vadd.f32 0.0, %v1408
      %v1410 = vpop.f32.mrb[0].mxu0
      %1411 = vmatprep.mubr.f32.mxu0 0.0
      %1412 = vmatmul.mubr.f32.gmra.mrb[0].mxu0 %v1312
      %v1413 = vpop.f32.mrb[0].mxu0
      %v1414 = vadd.f32 0.0, %v1413
      %v1415 = vpop.f32.mrb[0].mxu0
      %1416 = vmatprep.mubr.f32.mxu0 0.0
      %1417 = vmatmul.mubr.f32.gmra.mrb[0].mxu0 %v1315
      %v1418 = vpop.f32.mrb[0].mxu0
      %v1419 = vadd.f32 0.0, %v1418
      %v1420 = vpop.f32.mrb[0].mxu0
      %1421 = vdwg.mxu0
      %1422 = vmatprep.subr.mxu0 0.0
      %1423 = vmatpush1.msra.mxu0 %v892
      %1424 = vmatprep.subr.mxu0 0.0
      %1425 = vmatpush1.msra.mxu0 %v894
      %1426 = vmatprep.subr.mxu0 0.0
      %1427 = vmatpush1.msra.mxu0 0.0
      %1428 = vmatprep.subr.mxu0 0.0
      %1429 = vmatpush1.msra.mxu0 0.0
      %1430 = vmatprep.subr.mxu0 0.0
      %1431 = vmatpush1.msra.mxu0 0.0
      %1432 = vmatprep.subr.mxu0 0.0
      %1433 = vmatpush1.msra.mxu0 0.0
      %1434 = vmatprep.subr.mxu0 0.0
      %1435 = vmatpush1.msra.mxu0 0.0
      %1436 = vmatprep.subr.mxu0 0.0
      %1437 = vmatpush1.msra.mxu0 0.0
      %1438 = vmatprep.subr.mxu0 0.0
      %1439 = vmatpush1.msra.mxu0 0.0
      %1440 = vmatprep.subr.mxu0 0.0
      %1441 = vmatpush1.msra.mxu0 0.0
      %1442 = vmatprep.subr.mxu0 0.0
      %1443 = vmatpush1.msra.mxu0 0.0
      %1444 = vmatprep.subr.mxu0 0.0
      %1445 = vmatpush1.msra.mxu0 0.0
      %1446 = vmatprep.subr.mxu0 0.0
      %1447 = vmatpush1.msra.mxu0 0.0
      %1448 = vmatprep.subr.mxu0 0.0
      %1449 = vmatpush1.msra.mxu0 0.0
      %1450 = vmatprep.subr.mxu0 0.0
      %1451 = vmatpush1.msra.mxu0 0.0
      %1452 = vmatprep.subr.mxu0 0.0
      %1453 = vmatpush1.msra.mxu0 0.0
      %1454 = vmatprep.subr.mxu0 0.0
      %1455 = vmatpush1.msra.mxu0 0.0
      %1456 = vmatprep.subr.mxu0 0.0
      %1457 = vmatpush1.msra.mxu0 0.0
      %1458 = vmatprep.subr.mxu0 0.0
      %1459 = vmatpush1.msra.mxu0 0.0
      %1460 = vmatprep.subr.mxu0 0.0
      %1461 = vmatpush1.msra.mxu0 0.0
      %1462 = vmatprep.subr.mxu0 0.0
      %1463 = vmatpush1.msra.mxu0 0.0
      %1464 = vmatprep.subr.mxu0 0.0
      %1465 = vmatpush1.msra.mxu0 0.0
      %1466 = vmatprep.subr.mxu0 0.0
      %1467 = vmatpush1.msra.mxu0 0.0
      %1468 = vmatprep.subr.mxu0 0.0
      %1469 = vmatpush1.msra.mxu0 0.0
      %1470 = vmatprep.subr.mxu0 0.0
      %1471 = vmatpush1.msra.mxu0 0.0
      %1472 = vmatprep.subr.mxu0 0.0
      %1473 = vmatpush1.msra.mxu0 0.0
      %1474 = vmatprep.subr.mxu0 0.0
      %1475 = vmatpush1.msra.mxu0 0.0
      %1476 = vmatprep.subr.mxu0 0.0
      %1477 = vmatpush1.msra.mxu0 0.0
      %1478 = vmatprep.subr.mxu0 0.0
      %1479 = vmatpush1.msra.mxu0 0.0
      %1480 = vmatprep.subr.mxu0 0.0
      %1481 = vmatpush1.msra.mxu0 0.0
      %1482 = vmatprep.subr.mxu0 0.0
      %1483 = vmatpush1.msra.mxu0 0.0
      %1484 = vmatprep.subr.mxu0 0.0
      %1485 = vmatpush1.msra.mxu0 0.0
      %1486 = vmatprep.mubr.f32.mxu0 0.0
      %1487 = vmatmul.mubr.f32.gmra.mrb[0].mxu0 %v898
      %v1488 = vpop.f32.mrb[0].mxu0
      %v1489 = vadd.f32 0.0, %v1488
      %v1490 = vpop.f32.mrb[0].mxu0
      %1491 = vmatprep.mubr.f32.mxu0 0.0
      %1492 = vmatmul.mubr.f32.gmra.mrb[0].mxu0 %v901
      %v1493 = vpop.f32.mrb[0].mxu0
      %v1494 = vadd.f32 0.0, %v1493
      %v1495 = vpop.f32.mrb[0].mxu0
      %1496 = vmatprep.mubr.f32.mxu0 0.0
      %1497 = vmatmul.mubr.f32.gmra.mrb[0].mxu0 %v904
      %v1498 = vpop.f32.mrb[0].mxu0
      %v1499 = vadd.f32 0.0, %v1498
      %v1500 = vpop.f32.mrb[0].mxu0
      %1501 = vmatprep.mubr.f32.mxu0 0.0
      %1502 = vmatmul.mubr.f32.gmra.mrb[0].mxu0 %v907
      %v1503 = vpop.f32.mrb[0].mxu0
      %v1504 = vadd.f32 0.0, %v1503
      %v1505 = vpop.f32.mrb[0].mxu0
      %1506 = vmatprep.mubr.f32.mxu0 0.0
      %1507 = vmatmul.mubr.f32.gmra.mrb[0].mxu0 %v910
      %v1508 = vpop.f32.mrb[0].mxu0
      %v1509 = vadd.f32 0.0, %v1508
      %v1510 = vpop.f32.mrb[0].mxu0
      %1511 = vmatprep.mubr.f32.mxu0 0.0
      %1512 = vmatmul.mubr.f32.gmra.mrb[0].mxu0 %v913
      %v1513 = vpop.f32.mrb[0].mxu0
      %v1514 = vadd.f32 0.0, %v1513
      %v1515 = vpop.f32.mrb[0].mxu0
      %1516 = vmatprep.mubr.f32.mxu0 0.0
      %1517 = vmatmul.mubr.f32.gmra.mrb[0].mxu0 %v916
      %v1518 = vpop.f32.mrb[0].mxu0
      %v1519 = vadd.f32 0.0, %v1518
      %v1520 = vpop.f32.mrb[0].mxu0
      %1521 = vmatprep.mubr.f32.mxu0 0.0
      %1522 = vmatmul.mubr.f32.gmra.mrb[0].mxu0 %v919
      %v1523 = vpop.f32.mrb[0].mxu0
      %v1524 = vadd.f32 0.0, %v1523
      %v1525 = vpop.f32.mrb[0].mxu0
      %1526 = vdwg.mxu0
      %v1528 = vsel %vm690, %v1489, 0
      %v1531 = vsel %vm690, %v1494, 0
      %v1534 = vsel %vm690, %v1499, 0
      %v1537 = vsel %vm690, %v1504, 0
      %v1540 = vsel %vm690, %v1509, 0
      %v1543 = vsel %vm690, %v1514, 0
      %v1546 = vsel %vm690, %v1519, 0
      %v1549 = vsel %vm690, %v1524, 0
      %1551 = vmatprep.subr.mxu0 0.0
      %1552 = vmatpush1.xpose.msra.mxu0 %v898
      %1553 = vmatprep.subr.mxu0 0.0
      %1554 = vmatpush1.xpose.msra.mxu0 %v901
      %1555 = vmatprep.subr.mxu0 0.0
      %1556 = vmatpush1.xpose.msra.mxu0 %v904
      %1557 = vmatprep.subr.mxu0 0.0
      %1558 = vmatpush1.xpose.msra.mxu0 %v907
      %1559 = vmatprep.subr.mxu0 0.0
      %1560 = vmatpush1.xpose.msra.mxu0 %v910
      %1561 = vmatprep.subr.mxu0 0.0
      %1562 = vmatpush1.xpose.msra.mxu0 %v913
      %1563 = vmatprep.subr.mxu0 0.0
      %1564 = vmatpush1.xpose.msra.mxu0 %v916
      %1565 = vmatprep.subr.mxu0 0.0
      %1566 = vmatpush1.xpose.msra.mxu0 %v919
      %1567 = vmatprep.subr.mxu0 0.0
      %1568 = vmatpush1.xpose.msra.mxu0 0.0
      %1569 = vmatprep.subr.mxu0 0.0
      %1570 = vmatpush1.xpose.msra.mxu0 0.0
      %1571 = vmatprep.subr.mxu0 0.0
      %1572 = vmatpush1.xpose.msra.mxu0 0.0
      %1573 = vmatprep.subr.mxu0 0.0
      %1574 = vmatpush1.xpose.msra.mxu0 0.0
      %1575 = vmatprep.subr.mxu0 0.0
      %1576 = vmatpush1.xpose.msra.mxu0 0.0
      %1577 = vmatprep.subr.mxu0 0.0
      %1578 = vmatpush1.xpose.msra.mxu0 0.0
      %1579 = vmatprep.subr.mxu0 0.0
      %1580 = vmatpush1.xpose.msra.mxu0 0.0
      %1581 = vmatprep.subr.mxu0 0.0
      %1582 = vmatpush1.xpose.msra.mxu0 0.0
      %1583 = vmatprep.subr.mxu0 0.0
      %1584 = vmatpush1.xpose.msra.mxu0 0.0
      %1585 = vmatprep.subr.mxu0 0.0
      %1586 = vmatpush1.xpose.msra.mxu0 0.0
      %1587 = vmatprep.subr.mxu0 0.0
      %1588 = vmatpush1.xpose.msra.mxu0 0.0
      %1589 = vmatprep.subr.mxu0 0.0
      %1590 = vmatpush1.xpose.msra.mxu0 0.0
      %1591 = vmatprep.subr.mxu0 0.0
      %1592 = vmatpush1.xpose.msra.mxu0 0.0
      %1593 = vmatprep.subr.mxu0 0.0
      %1594 = vmatpush1.xpose.msra.mxu0 0.0
      %1595 = vmatprep.subr.mxu0 0.0
      %1596 = vmatpush1.xpose.msra.mxu0 0.0
      %1597 = vmatprep.subr.mxu0 0.0
      %1598 = vmatpush1.xpose.msra.mxu0 0.0
      %1599 = vmatprep.subr.mxu0 0.0
      %1600 = vmatpush1.xpose.msra.mxu0 0.0
      %1601 = vmatprep.subr.mxu0 0.0
      %1602 = vmatpush1.xpose.msra.mxu0 0.0
      %1603 = vmatprep.subr.mxu0 0.0
      %1604 = vmatpush1.xpose.msra.mxu0 0.0
      %1605 = vmatprep.subr.mxu0 0.0
      %1606 = vmatpush1.xpose.msra.mxu0 0.0
      %1607 = vmatprep.subr.mxu0 0.0
      %1608 = vmatpush1.xpose.msra.mxu0 0.0
      %1609 = vmatprep.subr.mxu0 0.0
      %1610 = vmatpush1.xpose.msra.mxu0 0.0
      %1611 = vmatprep.subr.mxu0 0.0
      %1612 = vmatpush1.xpose.msra.mxu0 0.0
      %1613 = vmatprep.subr.mxu0 0.0
      %1614 = vmatpush1.xpose.msra.mxu0 0.0
      %1615 = vmatprep.mubr.f32.mxu0 0.0
      %1616 = vmatmul.mubr.f32.gmra.mrb[0].mxu0 %v1528
      %v1617 = vpop.f32.mrb[0].mxu0
      %v1618 = vadd.f32 0.0, %v1617
      %v1619 = vpop.f32.mrb[0].mxu0
      %1620 = vmatprep.mubr.f32.mxu0 0.0
      %1621 = vmatmul.mubr.f32.gmra.mrb[0].mxu0 %v1531
      %v1622 = vpop.f32.mrb[0].mxu0
      %v1623 = vadd.f32 0.0, %v1622
      %v1624 = vpop.f32.mrb[0].mxu0
      %1625 = vmatprep.mubr.f32.mxu0 0.0
      %1626 = vmatmul.mubr.f32.gmra.mrb[0].mxu0 %v1534
      %v1627 = vpop.f32.mrb[0].mxu0
      %v1628 = vadd.f32 0.0, %v1627
      %v1629 = vpop.f32.mrb[0].mxu0
      %1630 = vmatprep.mubr.f32.mxu0 0.0
      %1631 = vmatmul.mubr.f32.gmra.mrb[0].mxu0 %v1537
      %v1632 = vpop.f32.mrb[0].mxu0
      %v1633 = vadd.f32 0.0, %v1632
      %v1634 = vpop.f32.mrb[0].mxu0
      %1635 = vmatprep.mubr.f32.mxu0 0.0
      %1636 = vmatmul.mubr.f32.gmra.mrb[0].mxu0 %v1540
      %v1637 = vpop.f32.mrb[0].mxu0
      %v1638 = vadd.f32 0.0, %v1637
      %v1639 = vpop.f32.mrb[0].mxu0
      %1640 = vmatprep.mubr.f32.mxu0 0.0
      %1641 = vmatmul.mubr.f32.gmra.mrb[0].mxu0 %v1543
      %v1642 = vpop.f32.mrb[0].mxu0
      %v1643 = vadd.f32 0.0, %v1642
      %v1644 = vpop.f32.mrb[0].mxu0
      %1645 = vmatprep.mubr.f32.mxu0 0.0
      %1646 = vmatmul.mubr.f32.gmra.mrb[0].mxu0 %v1546
      %v1647 = vpop.f32.mrb[0].mxu0
      %v1648 = vadd.f32 0.0, %v1647
      %v1649 = vpop.f32.mrb[0].mxu0
      %1650 = vmatprep.mubr.f32.mxu0 0.0
      %1651 = vmatmul.mubr.f32.gmra.mrb[0].mxu0 %v1549
      %v1652 = vpop.f32.mrb[0].mxu0
      %v1653 = vadd.f32 0.0, %v1652
      %v1654 = vpop.f32.mrb[0].mxu0
      %1655 = vdwg.mxu0
      %v1656 = vmul.f32 %v1618, %v1247
      %v1657 = vmul.f32 %v1623, %v1252
      %v1658 = vmul.f32 %v1628, %v1257
      %v1659 = vmul.f32 %v1633, %v1262
      %v1660 = vmul.f32 %v1638, %v1267
      %v1661 = vmul.f32 %v1643, %v1272
      %v1662 = vmul.f32 %v1648, %v1277
      %v1663 = vmul.f32 %v1653, %v1282
      %v1665 = vsel %vm522, %v1656, 0
      %v1668 = vsel %vm522, %v1657, 0
      %v1671 = vsel %vm522, %v1658, 0
      %v1674 = vsel %vm522, %v1659, 0
      %v1677 = vsel %vm522, %v1660, 0
      %v1680 = vsel %vm522, %v1661, 0
      %v1683 = vsel %vm522, %v1662, 0
      %v1686 = vsel %vm522, %v1663, 0
      %1688 = vmatprep.subr.mxu0 0.0
      %1689 = vmatpush1.msra.mxu0 %v364
      %1690 = vmatprep.subr.mxu0 0.0
      %1691 = vmatpush1.msra.mxu0 %v365
      %1692 = vmatprep.subr.mxu0 0.0
      %1693 = vmatpush1.msra.mxu0 %v366
      %1694 = vmatprep.subr.mxu0 0.0
      %1695 = vmatpush1.msra.mxu0 %v367
      %1696 = vmatprep.subr.mxu0 0.0
      %1697 = vmatpush1.msra.mxu0 %v368
      %1698 = vmatprep.subr.mxu0 0.0
      %1699 = vmatpush1.msra.mxu0 %v369
      %1700 = vmatprep.subr.mxu0 0.0
      %1701 = vmatpush1.msra.mxu0 %v370
      %1702 = vmatprep.subr.mxu0 0.0
      %1703 = vmatpush1.msra.mxu0 %v371
      %1704 = vmatprep.subr.mxu0 0.0
      %1705 = vmatpush1.msra.mxu0 0.0
      %1706 = vmatprep.subr.mxu0 0.0
      %1707 = vmatpush1.msra.mxu0 0.0
      %1708 = vmatprep.subr.mxu0 0.0
      %1709 = vmatpush1.msra.mxu0 0.0
      %1710 = vmatprep.subr.mxu0 0.0
      %1711 = vmatpush1.msra.mxu0 0.0
      %1712 = vmatprep.subr.mxu0 0.0
      %1713 = vmatpush1.msra.mxu0 0.0
      %1714 = vmatprep.subr.mxu0 0.0
      %1715 = vmatpush1.msra.mxu0 0.0
      %1716 = vmatprep.subr.mxu0 0.0
      %1717 = vmatpush1.msra.mxu0 0.0
      %1718 = vmatprep.subr.mxu0 0.0
      %1719 = vmatpush1.msra.mxu0 0.0
      %1720 = vmatprep.subr.mxu0 0.0
      %1721 = vmatpush1.msra.mxu0 0.0
      %1722 = vmatprep.subr.mxu0 0.0
      %1723 = vmatpush1.msra.mxu0 0.0
      %1724 = vmatprep.subr.mxu0 0.0
      %1725 = vmatpush1.msra.mxu0 0.0
      %1726 = vmatprep.subr.mxu0 0.0
      %1727 = vmatpush1.msra.mxu0 0.0
      %1728 = vmatprep.subr.mxu0 0.0
      %1729 = vmatpush1.msra.mxu0 0.0
      %1730 = vmatprep.subr.mxu0 0.0
      %1731 = vmatpush1.msra.mxu0 0.0
      %1732 = vmatprep.subr.mxu0 0.0
      %1733 = vmatpush1.msra.mxu0 0.0
      %1734 = vmatprep.subr.mxu0 0.0
      %1735 = vmatpush1.msra.mxu0 0.0
      %1736 = vmatprep.subr.mxu0 0.0
      %1737 = vmatpush1.msra.mxu0 0.0
      %1738 = vmatprep.subr.mxu0 0.0
      %1739 = vmatpush1.msra.mxu0 0.0
      %1740 = vmatprep.subr.mxu0 0.0
      %1741 = vmatpush1.msra.mxu0 0.0
      %1742 = vmatprep.subr.mxu0 0.0
      %1743 = vmatpush1.msra.mxu0 0.0
      %1744 = vmatprep.subr.mxu0 0.0
      %1745 = vmatpush1.msra.mxu0 0.0
      %1746 = vmatprep.subr.mxu0 0.0
      %1747 = vmatpush1.msra.mxu0 0.0
      %1748 = vmatprep.subr.mxu0 0.0
      %1749 = vmatpush1.msra.mxu0 0.0
      %1750 = vmatprep.subr.mxu0 0.0
      %1751 = vmatpush1.msra.mxu0 0.0
      %1752 = vmatprep.mubr.f32.mxu0 0.0
      %1753 = vmatmul.mubr.f32.gmra.mrb[0].mxu0 %v1665
      %v1754 = vpop.f32.mrb[0].mxu0
      %v1755 = vadd.f32 0.0, %v1754
      %v1756 = vpop.f32.mrb[0].mxu0
      %1757 = vmatprep.mubr.f32.mxu0 0.0
      %1758 = vmatmul.mubr.f32.gmra.mrb[0].mxu0 %v1668
      %v1759 = vpop.f32.mrb[0].mxu0
      %v1760 = vadd.f32 0.0, %v1759
      %v1761 = vpop.f32.mrb[0].mxu0
      %1762 = vmatprep.mubr.f32.mxu0 0.0
      %1763 = vmatmul.mubr.f32.gmra.mrb[0].mxu0 %v1671
      %v1764 = vpop.f32.mrb[0].mxu0
      %v1765 = vadd.f32 0.0, %v1764
      %v1766 = vpop.f32.mrb[0].mxu0
      %1767 = vmatprep.mubr.f32.mxu0 0.0
      %1768 = vmatmul.mubr.f32.gmra.mrb[0].mxu0 %v1674
      %v1769 = vpop.f32.mrb[0].mxu0
      %v1770 = vadd.f32 0.0, %v1769
      %v1771 = vpop.f32.mrb[0].mxu0
      %1772 = vmatprep.mubr.f32.mxu0 0.0
      %1773 = vmatmul.mubr.f32.gmra.mrb[0].mxu0 %v1677
      %v1774 = vpop.f32.mrb[0].mxu0
      %v1775 = vadd.f32 0.0, %v1774
      %v1776 = vpop.f32.mrb[0].mxu0
      %1777 = vmatprep.mubr.f32.mxu0 0.0
      %1778 = vmatmul.mubr.f32.gmra.mrb[0].mxu0 %v1680
      %v1779 = vpop.f32.mrb[0].mxu0
      %v1780 = vadd.f32 0.0, %v1779
      %v1781 = vpop.f32.mrb[0].mxu0
      %1782 = vmatprep.mubr.f32.mxu0 0.0
      %1783 = vmatmul.mubr.f32.gmra.mrb[0].mxu0 %v1683
      %v1784 = vpop.f32.mrb[0].mxu0
      %v1785 = vadd.f32 0.0, %v1784
      %v1786 = vpop.f32.mrb[0].mxu0
      %1787 = vmatprep.mubr.f32.mxu0 0.0
      %1788 = vmatmul.mubr.f32.gmra.mrb[0].mxu0 %v1686
      %v1789 = vpop.f32.mrb[0].mxu0
      %v1790 = vadd.f32 0.0, %v1789
      %v1791 = vpop.f32.mrb[0].mxu0
      %1792 = vdwg.mxu0
      %v1794 = vlaneseq
      %v1795 = vshrl.u32 %v1794, 7
      %v1796 = vsub.s32 0, %v1795
      %v1797 = vrot.slane %v374, %v1796
      %v1800 = vsel %vm606, %v1755, 0
      %v1803 = vsel %vm606, %v1760, 0
      %v1806 = vsel %vm606, %v1765, 0
      %v1809 = vsel %vm606, %v1770, 0
      %v1812 = vsel %vm606, %v1775, 0
      %v1815 = vsel %vm606, %v1780, 0
      %v1818 = vsel %vm606, %v1785, 0
      %v1821 = vsel %vm606, %v1790, 0
      %vm1823 = vcmask 1042432
      %v1825 = vsel %vm1823, %v373, 0
      %1827 = vmatprep.subr.mxu0 0.0
      %1828 = vmatpush1.msra.mxu0 %v1825
      %1829 = vmatprep.subr.mxu0 0.0
      %1830 = vmatpush1.msra.mxu0 0.0
      %1831 = vmatprep.subr.mxu0 0.0
      %1832 = vmatpush1.msra.mxu0 0.0
      %1833 = vmatprep.subr.mxu0 0.0
      %1834 = vmatpush1.msra.mxu0 0.0
      %1835 = vmatprep.subr.mxu0 0.0
      %1836 = vmatpush1.msra.mxu0 0.0
      %1837 = vmatprep.subr.mxu0 0.0
      %1838 = vmatpush1.msra.mxu0 0.0
      %1839 = vmatprep.subr.mxu0 0.0
      %1840 = vmatpush1.msra.mxu0 0.0
      %1841 = vmatprep.subr.mxu0 0.0
      %1842 = vmatpush1.msra.mxu0 0.0
      %1843 = vmatprep.subr.mxu0 0.0
      %1844 = vmatpush1.msra.mxu0 0.0
      %1845 = vmatprep.subr.mxu0 0.0
      %1846 = vmatpush1.msra.mxu0 0.0
      %1847 = vmatprep.subr.mxu0 0.0
      %1848 = vmatpush1.msra.mxu0 0.0
      %1849 = vmatprep.subr.mxu0 0.0
      %1850 = vmatpush1.msra.mxu0 0.0
      %1851 = vmatprep.subr.mxu0 0.0
      %1852 = vmatpush1.msra.mxu0 0.0
      %1853 = vmatprep.subr.mxu0 0.0
      %1854 = vmatpush1.msra.mxu0 0.0
      %1855 = vmatprep.subr.mxu0 0.0
      %1856 = vmatpush1.msra.mxu0 0.0
      %1857 = vmatprep.subr.mxu0 0.0
      %1858 = vmatpush1.msra.mxu0 0.0
      %1859 = vmatprep.subr.mxu0 0.0
      %1860 = vmatpush1.msra.mxu0 0.0
      %1861 = vmatprep.subr.mxu0 0.0
      %1862 = vmatpush1.msra.mxu0 0.0
      %1863 = vmatprep.subr.mxu0 0.0
      %1864 = vmatpush1.msra.mxu0 0.0
      %1865 = vmatprep.subr.mxu0 0.0
      %1866 = vmatpush1.msra.mxu0 0.0
      %1867 = vmatprep.subr.mxu0 0.0
      %1868 = vmatpush1.msra.mxu0 0.0
      %1869 = vmatprep.subr.mxu0 0.0
      %1870 = vmatpush1.msra.mxu0 0.0
      %1871 = vmatprep.subr.mxu0 0.0
      %1872 = vmatpush1.msra.mxu0 0.0
      %1873 = vmatprep.subr.mxu0 0.0
      %1874 = vmatpush1.msra.mxu0 0.0
      %1875 = vmatprep.subr.mxu0 0.0
      %1876 = vmatpush1.msra.mxu0 0.0
      %1877 = vmatprep.subr.mxu0 0.0
      %1878 = vmatpush1.msra.mxu0 0.0
      %1879 = vmatprep.subr.mxu0 0.0
      %1880 = vmatpush1.msra.mxu0 0.0
      %1881 = vmatprep.subr.mxu0 0.0
      %1882 = vmatpush1.msra.mxu0 0.0
      %1883 = vmatprep.subr.mxu0 0.0
      %1884 = vmatpush1.msra.mxu0 0.0
      %1885 = vmatprep.subr.mxu0 0.0
      %1886 = vmatpush1.msra.mxu0 0.0
      %1887 = vmatprep.subr.mxu0 0.0
      %1888 = vmatpush1.msra.mxu0 0.0
      %1889 = vmatprep.subr.mxu0 0.0
      %1890 = vmatpush1.msra.mxu0 0.0
      %1891 = vmatprep.mubr.f32.mxu0 0.0
      %1892 = vmatmul.mubr.f32.gmra.mrb[0].mxu0 %v1800
      %v1893 = vpop.f32.mrb[0].mxu0
      %v1894 = vadd.f32 %v1797, %v1893
      %v1895 = vpop.f32.mrb[0].mxu0
      %1896 = vmatprep.mubr.f32.mxu0 0.0
      %1897 = vmatmul.mubr.f32.gmra.mrb[0].mxu0 %v1803
      %v1898 = vpop.f32.mrb[0].mxu0
      %v1899 = vadd.f32 %v1797, %v1898
      %v1900 = vpop.f32.mrb[0].mxu0
      %1901 = vmatprep.mubr.f32.mxu0 0.0
      %1902 = vmatmul.mubr.f32.gmra.mrb[0].mxu0 %v1806
      %v1903 = vpop.f32.mrb[0].mxu0
      %v1904 = vadd.f32 %v1797, %v1903
      %v1905 = vpop.f32.mrb[0].mxu0
      %1906 = vmatprep.mubr.f32.mxu0 0.0
      %1907 = vmatmul.mubr.f32.gmra.mrb[0].mxu0 %v1809
      %v1908 = vpop.f32.mrb[0].mxu0
      %v1909 = vadd.f32 %v1797, %v1908
      %v1910 = vpop.f32.mrb[0].mxu0
      %1911 = vmatprep.mubr.f32.mxu0 0.0
      %1912 = vmatmul.mubr.f32.gmra.mrb[0].mxu0 %v1812
      %v1913 = vpop.f32.mrb[0].mxu0
      %v1914 = vadd.f32 %v1797, %v1913
      %v1915 = vpop.f32.mrb[0].mxu0
      %1916 = vmatprep.mubr.f32.mxu0 0.0
      %1917 = vmatmul.mubr.f32.gmra.mrb[0].mxu0 %v1815
      %v1918 = vpop.f32.mrb[0].mxu0
      %v1919 = vadd.f32 %v1797, %v1918
      %v1920 = vpop.f32.mrb[0].mxu0
      %1921 = vmatprep.mubr.f32.mxu0 0.0
      %1922 = vmatmul.mubr.f32.gmra.mrb[0].mxu0 %v1818
      %v1923 = vpop.f32.mrb[0].mxu0
      %v1924 = vadd.f32 %v1797, %v1923
      %v1925 = vpop.f32.mrb[0].mxu0
      %1926 = vmatprep.mubr.f32.mxu0 0.0
      %1927 = vmatmul.mubr.f32.gmra.mrb[0].mxu0 %v1821
      %v1928 = vpop.f32.mrb[0].mxu0
      %v1929 = vadd.f32 %v1797, %v1928
      %v1930 = vpop.f32.mrb[0].mxu0
      %1931 = vdwg.mxu0
      %v1932 = vmax.f32 %v1894, 0.0
      %v1933 = vmax.f32 %v1899, 0.0
      %v1934 = vmax.f32 %v1904, 0.0
      %v1935 = vmax.f32 %v1909, 0.0
      %v1936 = vmax.f32 %v1914, 0.0
      %v1937 = vmax.f32 %v1919, 0.0
      %v1938 = vmax.f32 %v1924, 0.0
      %v1939 = vmax.f32 %v1929, 0.0
      %1940 = vxpose.xlu0.b32.start [1/16] %v482, 128
      %1941 = vxpose.xlu0.b32.cont [2/16] %v483, 128
      %1942 = vxpose.xlu0.b32.cont [3/16] %v484, 128
      %1943 = vxpose.xlu0.b32.cont [4/16] %v485, 128
      %1944 = vxpose.xlu0.b32.cont [5/16] %v486, 128
      %1945 = vxpose.xlu0.b32.cont [6/16] %v487, 128
      %1946 = vxpose.xlu0.b32.cont [7/16] %v488, 128
      %1947 = vxpose.xlu0.b32.cont [8/16] %v489, 128
      %1948 = vxpose.xlu0.b32.cont [9/16] 0.0, 128
      %1949 = vxpose.xlu0.b32.cont [10/16] 0.0, 128
      %1950 = vxpose.xlu0.b32.cont [11/16] 0.0, 128
      %1951 = vxpose.xlu0.b32.cont [12/16] 0.0, 128
      %1952 = vxpose.xlu0.b32.cont [13/16] 0.0, 128
      %1953 = vxpose.xlu0.b32.cont [14/16] 0.0, 128
      %1954 = vxpose.xlu0.b32.cont [15/16] 0.0, 128
      %1955 = vxpose.xlu0.b32.end [16/16] 0.0, 128
      %v1956 = vpop.trf.xlu0
      %v1957 = vpop.trf.xlu0
      %v1958 = vpop.trf.xlu0
      %v1959 = vpop.trf.xlu0
      %v1960 = vpop.trf.xlu0
      %v1961 = vpop.trf.xlu0
      %v1962 = vpop.trf.xlu0
      %v1963 = vpop.trf.xlu0
      %v1964 = vpop.trf.xlu0
      %v1965 = vpop.trf.xlu0
      %v1966 = vpop.trf.xlu0
      %v1967 = vpop.trf.xlu0
      %v1968 = vpop.trf.xlu0
      %v1969 = vpop.trf.xlu0
      %v1970 = vpop.trf.xlu0
      %v1971 = vpop.trf.xlu0
      %v1973 = vsel %vm522, %v1956, 0
      %1975 = vmatprep.subr.mxu0 0.0
      %1976 = vmatpush1.msra.mxu0 %v1932
      %1977 = vmatprep.subr.mxu0 0.0
      %1978 = vmatpush1.msra.mxu0 %v1933
      %1979 = vmatprep.subr.mxu0 0.0
      %1980 = vmatpush1.msra.mxu0 %v1934
      %1981 = vmatprep.subr.mxu0 0.0
      %1982 = vmatpush1.msra.mxu0 %v1935
      %1983 = vmatprep.subr.mxu0 0.0
      %1984 = vmatpush1.msra.mxu0 %v1936
      %1985 = vmatprep.subr.mxu0 0.0
      %1986 = vmatpush1.msra.mxu0 %v1937
      %1987 = vmatprep.subr.mxu0 0.0
      %1988 = vmatpush1.msra.mxu0 %v1938
      %1989 = vmatprep.subr.mxu0 0.0
      %1990 = vmatpush1.msra.mxu0 %v1939
      %1991 = vmatprep.subr.mxu0 0.0
      %1992 = vmatpush1.msra.mxu0 0.0
      %1993 = vmatprep.subr.mxu0 0.0
      %1994 = vmatpush1.msra.mxu0 0.0
      %1995 = vmatprep.subr.mxu0 0.0
      %1996 = vmatpush1.msra.mxu0 0.0
      %1997 = vmatprep.subr.mxu0 0.0
      %1998 = vmatpush1.msra.mxu0 0.0
      %1999 = vmatprep.subr.mxu0 0.0
      %2000 = vmatpush1.msra.mxu0 0.0
      %2001 = vmatprep.subr.mxu0 0.0
      %2002 = vmatpush1.msra.mxu0 0.0
      %2003 = vmatprep.subr.mxu0 0.0
      %2004 = vmatpush1.msra.mxu0 0.0
      %2005 = vmatprep.subr.mxu0 0.0
      %2006 = vmatpush1.msra.mxu0 0.0
      %2007 = vmatprep.subr.mxu0 0.0
      %2008 = vmatpush1.msra.mxu0 0.0
      %2009 = vmatprep.subr.mxu0 0.0
      %2010 = vmatpush1.msra.mxu0 0.0
      %2011 = vmatprep.subr.mxu0 0.0
      %2012 = vmatpush1.msra.mxu0 0.0
      %2013 = vmatprep.subr.mxu0 0.0
      %2014 = vmatpush1.msra.mxu0 0.0
      %2015 = vmatprep.subr.mxu0 0.0
      %2016 = vmatpush1.msra.mxu0 0.0
      %2017 = vmatprep.subr.mxu0 0.0
      %2018 = vmatpush1.msra.mxu0 0.0
      %2019 = vmatprep.subr.mxu0 0.0
      %2020 = vmatpush1.msra.mxu0 0.0
      %2021 = vmatprep.subr.mxu0 0.0
      %2022 = vmatpush1.msra.mxu0 0.0
      %2023 = vmatprep.subr.mxu0 0.0
      %2024 = vmatpush1.msra.mxu0 0.0
      %2025 = vmatprep.subr.mxu0 0.0
      %2026 = vmatpush1.msra.mxu0 0.0
      %2027 = vmatprep.subr.mxu0 0.0
      %2028 = vmatpush1.msra.mxu0 0.0
      %2029 = vmatprep.subr.mxu0 0.0
      %2030 = vmatpush1.msra.mxu0 0.0
      %2031 = vmatprep.subr.mxu0 0.0
      %2032 = vmatpush1.msra.mxu0 0.0
      %2033 = vmatprep.subr.mxu0 0.0
      %2034 = vmatpush1.msra.mxu0 0.0
      %2035 = vmatprep.subr.mxu0 0.0
      %2036 = vmatpush1.msra.mxu0 0.0
      %2037 = vmatprep.subr.mxu0 0.0
      %2038 = vmatpush1.msra.mxu0 0.0
      %2039 = vmatprep.mubr.f32.mxu0 0.0
      %2040 = vmatmul.mubr.f32.gmra.mrb[0].mxu0 %v1973
      %v2041 = vpop.f32.mrb[0].mxu0
      %v2042 = vadd.f32 0.0, %v2041
      %v2043 = vpop.f32.mrb[0].mxu0
      %2044 = vdwg.mxu0
      %v2045 = vmul.f32 %v2042, 0.0625
      %v2047 = vlaneseq
      %v2048 = vshrl.u32 %v2047, 7
      %v2049 = vsub.s32 0, %v2048
      %v2050 = vrot.slane %v376, %v2049
      %2052 = vmatprep.subr.mxu0 0.0
      %2053 = vmatpush1.xpose.msra.mxu0 %v375
      %2054 = vmatprep.subr.mxu0 0.0
      %2055 = vmatpush1.xpose.msra.mxu0 0.0
      %2056 = vmatprep.subr.mxu0 0.0
      %2057 = vmatpush1.xpose.msra.mxu0 0.0
      %2058 = vmatprep.subr.mxu0 0.0
      %2059 = vmatpush1.xpose.msra.mxu0 0.0
      %2060 = vmatprep.subr.mxu0 0.0
      %2061 = vmatpush1.xpose.msra.mxu0 0.0
      %2062 = vmatprep.subr.mxu0 0.0
      %2063 = vmatpush1.xpose.msra.mxu0 0.0
      %2064 = vmatprep.subr.mxu0 0.0
      %2065 = vmatpush1.xpose.msra.mxu0 0.0
      %2066 = vmatprep.subr.mxu0 0.0
      %2067 = vmatpush1.xpose.msra.mxu0 0.0
      %2068 = vmatprep.subr.mxu0 0.0
      %2069 = vmatpush1.xpose.msra.mxu0 0.0
      %2070 = vmatprep.subr.mxu0 0.0
      %2071 = vmatpush1.xpose.msra.mxu0 0.0
      %2072 = vmatprep.subr.mxu0 0.0
      %2073 = vmatpush1.xpose.msra.mxu0 0.0
      %2074 = vmatprep.subr.mxu0 0.0
      %2075 = vmatpush1.xpose.msra.mxu0 0.0
      %2076 = vmatprep.subr.mxu0 0.0
      %2077 = vmatpush1.xpose.msra.mxu0 0.0
      %2078 = vmatprep.subr.mxu0 0.0
      %2079 = vmatpush1.xpose.msra.mxu0 0.0
      %2080 = vmatprep.subr.mxu0 0.0
      %2081 = vmatpush1.xpose.msra.mxu0 0.0
      %2082 = vmatprep.subr.mxu0 0.0
      %2083 = vmatpush1.xpose.msra.mxu0 0.0
      %2084 = vmatprep.subr.mxu0 0.0
      %2085 = vmatpush1.xpose.msra.mxu0 0.0
      %2086 = vmatprep.subr.mxu0 0.0
      %2087 = vmatpush1.xpose.msra.mxu0 0.0
      %2088 = vmatprep.subr.mxu0 0.0
      %2089 = vmatpush1.xpose.msra.mxu0 0.0
      %2090 = vmatprep.subr.mxu0 0.0
      %2091 = vmatpush1.xpose.msra.mxu0 0.0
      %2092 = vmatprep.subr.mxu0 0.0
      %2093 = vmatpush1.xpose.msra.mxu0 0.0
      %2094 = vmatprep.subr.mxu0 0.0
      %2095 = vmatpush1.xpose.msra.mxu0 0.0
      %2096 = vmatprep.subr.mxu0 0.0
      %2097 = vmatpush1.xpose.msra.mxu0 0.0
      %2098 = vmatprep.subr.mxu0 0.0
      %2099 = vmatpush1.xpose.msra.mxu0 0.0
      %2100 = vmatprep.subr.mxu0 0.0
      %2101 = vmatpush1.xpose.msra.mxu0 0.0
      %2102 = vmatprep.subr.mxu0 0.0
      %2103 = vmatpush1.xpose.msra.mxu0 0.0
      %2104 = vmatprep.subr.mxu0 0.0
      %2105 = vmatpush1.xpose.msra.mxu0 0.0
      %2106 = vmatprep.subr.mxu0 0.0
      %2107 = vmatpush1.xpose.msra.mxu0 0.0
      %2108 = vmatprep.subr.mxu0 0.0
      %2109 = vmatpush1.xpose.msra.mxu0 0.0
      %2110 = vmatprep.subr.mxu0 0.0
      %2111 = vmatpush1.xpose.msra.mxu0 0.0
      %2112 = vmatprep.subr.mxu0 0.0
      %2113 = vmatpush1.xpose.msra.mxu0 0.0
      %2114 = vmatprep.subr.mxu0 0.0
      %2115 = vmatpush1.xpose.msra.mxu0 0.0
      %2116 = vmatprep.mubr.f32.mxu0 0.0
      %2117 = vmatmul.mubr.f32.gmra.mrb[0].mxu0 %v2045
      %v2118 = vpop.f32.mrb[0].mxu0
      %v2119 = vadd.f32 %v2050, %v2118
      %v2120 = vpop.f32.mrb[0].mxu0
      %2121 = vdwg.mxu0
      %vm2122 = vcmask 27648
      %2123 = vst.msk [vmem:[%s355] sm:$0xf] %vm2122, %v2119
      %v2125 = vsel %vm606, %v1384, 0
      %v2128 = vsel %vm606, %v1389, 0
      %v2131 = vsel %vm606, %v1394, 0
      %v2134 = vsel %vm606, %v1399, 0
      %v2137 = vsel %vm606, %v1404, 0
      %v2140 = vsel %vm606, %v1409, 0
      %v2143 = vsel %vm606, %v1414, 0
      %v2146 = vsel %vm606, %v1419, 0
      %2148 = vmatprep.subr.mxu0 0.0
      %2149 = vmatpush1.msra.mxu0 %v1825
      %2150 = vmatprep.subr.mxu0 0.0
      %2151 = vmatpush1.msra.mxu0 0.0
      %2152 = vmatprep.subr.mxu0 0.0
      %2153 = vmatpush1.msra.mxu0 0.0
      %2154 = vmatprep.subr.mxu0 0.0
      %2155 = vmatpush1.msra.mxu0 0.0
      %2156 = vmatprep.subr.mxu0 0.0
      %2157 = vmatpush1.msra.mxu0 0.0
      %2158 = vmatprep.subr.mxu0 0.0
      %2159 = vmatpush1.msra.mxu0 0.0
      %2160 = vmatprep.subr.mxu0 0.0
      %2161 = vmatpush1.msra.mxu0 0.0
      %2162 = vmatprep.subr.mxu0 0.0
      %2163 = vmatpush1.msra.mxu0 0.0
      %2164 = vmatprep.subr.mxu0 0.0
      %2165 = vmatpush1.msra.mxu0 0.0
      %2166 = vmatprep.subr.mxu0 0.0
      %2167 = vmatpush1.msra.mxu0 0.0
      %2168 = vmatprep.subr.mxu0 0.0
      %2169 = vmatpush1.msra.mxu0 0.0
      %2170 = vmatprep.subr.mxu0 0.0
      %2171 = vmatpush1.msra.mxu0 0.0
      %2172 = vmatprep.subr.mxu0 0.0
      %2173 = vmatpush1.msra.mxu0 0.0
      %2174 = vmatprep.subr.mxu0 0.0
      %2175 = vmatpush1.msra.mxu0 0.0
      %2176 = vmatprep.subr.mxu0 0.0
      %2177 = vmatpush1.msra.mxu0 0.0
      %2178 = vmatprep.subr.mxu0 0.0
      %2179 = vmatpush1.msra.mxu0 0.0
      %2180 = vmatprep.subr.mxu0 0.0
      %2181 = vmatpush1.msra.mxu0 0.0
      %2182 = vmatprep.subr.mxu0 0.0
      %2183 = vmatpush1.msra.mxu0 0.0
      %2184 = vmatprep.subr.mxu0 0.0
      %2185 = vmatpush1.msra.mxu0 0.0
      %2186 = vmatprep.subr.mxu0 0.0
      %2187 = vmatpush1.msra.mxu0 0.0
      %2188 = vmatprep.subr.mxu0 0.0
      %2189 = vmatpush1.msra.mxu0 0.0
      %2190 = vmatprep.subr.mxu0 0.0
      %2191 = vmatpush1.msra.mxu0 0.0
      %2192 = vmatprep.subr.mxu0 0.0
      %2193 = vmatpush1.msra.mxu0 0.0
      %2194 = vmatprep.subr.mxu0 0.0
      %2195 = vmatpush1.msra.mxu0 0.0
      %2196 = vmatprep.subr.mxu0 0.0
      %2197 = vmatpush1.msra.mxu0 0.0
      %2198 = vmatprep.subr.mxu0 0.0
      %2199 = vmatpush1.msra.mxu0 0.0
      %2200 = vmatprep.subr.mxu0 0.0
      %2201 = vmatpush1.msra.mxu0 0.0
      %2202 = vmatprep.subr.mxu0 0.0
      %2203 = vmatpush1.msra.mxu0 0.0
      %2204 = vmatprep.subr.mxu0 0.0
      %2205 = vmatpush1.msra.mxu0 0.0
      %2206 = vmatprep.subr.mxu0 0.0
      %2207 = vmatpush1.msra.mxu0 0.0
      %2208 = vmatprep.subr.mxu0 0.0
      %2209 = vmatpush1.msra.mxu0 0.0
      %2210 = vmatprep.subr.mxu0 0.0
      %2211 = vmatpush1.msra.mxu0 0.0
      %2212 = vmatprep.mubr.f32.mxu0 0.0
      %2213 = vmatmul.mubr.f32.gmra.mrb[0].mxu0 %v2125
      %v2214 = vpop.f32.mrb[0].mxu0
      %v2215 = vadd.f32 %v1797, %v2214
      %v2216 = vpop.f32.mrb[0].mxu0
      %2217 = vmatprep.mubr.f32.mxu0 0.0
      %2218 = vmatmul.mubr.f32.gmra.mrb[0].mxu0 %v2128
      %v2219 = vpop.f32.mrb[0].mxu0
      %v2220 = vadd.f32 %v1797, %v2219
      %v2221 = vpop.f32.mrb[0].mxu0
      %2222 = vmatprep.mubr.f32.mxu0 0.0
      %2223 = vmatmul.mubr.f32.gmra.mrb[0].mxu0 %v2131
      %v2224 = vpop.f32.mrb[0].mxu0
      %v2225 = vadd.f32 %v1797, %v2224
      %v2226 = vpop.f32.mrb[0].mxu0
      %2227 = vmatprep.mubr.f32.mxu0 0.0
      %2228 = vmatmul.mubr.f32.gmra.mrb[0].mxu0 %v2134
      %v2229 = vpop.f32.mrb[0].mxu0
      %v2230 = vadd.f32 %v1797, %v2229
      %v2231 = vpop.f32.mrb[0].mxu0
      %2232 = vmatprep.mubr.f32.mxu0 0.0
      %2233 = vmatmul.mubr.f32.gmra.mrb[0].mxu0 %v2137
      %v2234 = vpop.f32.mrb[0].mxu0
      %v2235 = vadd.f32 %v1797, %v2234
      %v2236 = vpop.f32.mrb[0].mxu0
      %2237 = vmatprep.mubr.f32.mxu0 0.0
      %2238 = vmatmul.mubr.f32.gmra.mrb[0].mxu0 %v2140
      %v2239 = vpop.f32.mrb[0].mxu0
      %v2240 = vadd.f32 %v1797, %v2239
      %v2241 = vpop.f32.mrb[0].mxu0
      %2242 = vmatprep.mubr.f32.mxu0 0.0
      %2243 = vmatmul.mubr.f32.gmra.mrb[0].mxu0 %v2143
      %v2244 = vpop.f32.mrb[0].mxu0
      %v2245 = vadd.f32 %v1797, %v2244
      %v2246 = vpop.f32.mrb[0].mxu0
      %2247 = vmatprep.mubr.f32.mxu0 0.0
      %2248 = vmatmul.mubr.f32.gmra.mrb[0].mxu0 %v2146
      %v2249 = vpop.f32.mrb[0].mxu0
      %v2250 = vadd.f32 %v1797, %v2249
      %v2251 = vpop.f32.mrb[0].mxu0
      %2252 = vdwg.mxu0
      %v2253 = vmax.f32 %v2215, 0.0
      %v2254 = vmax.f32 %v2220, 0.0
      %v2255 = vmax.f32 %v2225, 0.0
      %v2256 = vmax.f32 %v2230, 0.0
      %v2257 = vmax.f32 %v2235, 0.0
      %v2258 = vmax.f32 %v2240, 0.0
      %v2259 = vmax.f32 %v2245, 0.0
      %v2260 = vmax.f32 %v2250, 0.0
      %2261 = vmatprep.subr.mxu0 0.0
      %2262 = vmatpush1.msra.mxu0 %v2253
      %2263 = vmatprep.subr.mxu0 0.0
      %2264 = vmatpush1.msra.mxu0 %v2254
      %2265 = vmatprep.subr.mxu0 0.0
      %2266 = vmatpush1.msra.mxu0 %v2255
      %2267 = vmatprep.subr.mxu0 0.0
      %2268 = vmatpush1.msra.mxu0 %v2256
      %2269 = vmatprep.subr.mxu0 0.0
      %2270 = vmatpush1.msra.mxu0 %v2257
      %2271 = vmatprep.subr.mxu0 0.0
      %2272 = vmatpush1.msra.mxu0 %v2258
      %2273 = vmatprep.subr.mxu0 0.0
      %2274 = vmatpush1.msra.mxu0 %v2259
      %2275 = vmatprep.subr.mxu0 0.0
      %2276 = vmatpush1.msra.mxu0 %v2260
      %2277 = vmatprep.subr.mxu0 0.0
      %2278 = vmatpush1.msra.mxu0 0.0
      %2279 = vmatprep.subr.mxu0 0.0
      %2280 = vmatpush1.msra.mxu0 0.0
      %2281 = vmatprep.subr.mxu0 0.0
      %2282 = vmatpush1.msra.mxu0 0.0
      %2283 = vmatprep.subr.mxu0 0.0
      %2284 = vmatpush1.msra.mxu0 0.0
      %2285 = vmatprep.subr.mxu0 0.0
      %2286 = vmatpush1.msra.mxu0 0.0
      %2287 = vmatprep.subr.mxu0 0.0
      %2288 = vmatpush1.msra.mxu0 0.0
      %2289 = vmatprep.subr.mxu0 0.0
      %2290 = vmatpush1.msra.mxu0 0.0
      %2291 = vmatprep.subr.mxu0 0.0
      %2292 = vmatpush1.msra.mxu0 0.0
      %2293 = vmatprep.subr.mxu0 0.0
      %2294 = vmatpush1.msra.mxu0 0.0
      %2295 = vmatprep.subr.mxu0 0.0
      %2296 = vmatpush1.msra.mxu0 0.0
      %2297 = vmatprep.subr.mxu0 0.0
      %2298 = vmatpush1.msra.mxu0 0.0
      %2299 = vmatprep.subr.mxu0 0.0
      %2300 = vmatpush1.msra.mxu0 0.0
      %2301 = vmatprep.subr.mxu0 0.0
      %2302 = vmatpush1.msra.mxu0 0.0
      %2303 = vmatprep.subr.mxu0 0.0
      %2304 = vmatpush1.msra.mxu0 0.0
      %2305 = vmatprep.subr.mxu0 0.0
      %2306 = vmatpush1.msra.mxu0 0.0
      %2307 = vmatprep.subr.mxu0 0.0
      %2308 = vmatpush1.msra.mxu0 0.0
      %2309 = vmatprep.subr.mxu0 0.0
      %2310 = vmatpush1.msra.mxu0 0.0
      %2311 = vmatprep.subr.mxu0 0.0
      %2312 = vmatpush1.msra.mxu0 0.0
      %2313 = vmatprep.subr.mxu0 0.0
      %2314 = vmatpush1.msra.mxu0 0.0
      %2315 = vmatprep.subr.mxu0 0.0
      %2316 = vmatpush1.msra.mxu0 0.0
      %2317 = vmatprep.subr.mxu0 0.0
      %2318 = vmatpush1.msra.mxu0 0.0
      %2319 = vmatprep.subr.mxu0 0.0
      %2320 = vmatpush1.msra.mxu0 0.0
      %2321 = vmatprep.subr.mxu0 0.0
      %2322 = vmatpush1.msra.mxu0 0.0
      %2323 = vmatprep.subr.mxu0 0.0
      %2324 = vmatpush1.msra.mxu0 0.0
      %2325 = vmatprep.mubr.f32.mxu0 0.0
      %2326 = vmatmul.mubr.f32.gmra.mrb[0].mxu0 %v1973
      %v2327 = vpop.f32.mrb[0].mxu0
      %v2328 = vadd.f32 0.0, %v2327
      %v2329 = vpop.f32.mrb[0].mxu0
      %2330 = vdwg.mxu0
      %v2331 = vmul.f32 %v2328, 0.0625
      %2332 = vmatprep.subr.mxu0 0.0
      %2333 = vmatpush1.xpose.msra.mxu0 %v375
      %2334 = vmatprep.subr.mxu0 0.0
      %2335 = vmatpush1.xpose.msra.mxu0 0.0
      %2336 = vmatprep.subr.mxu0 0.0
      %2337 = vmatpush1.xpose.msra.mxu0 0.0
      %2338 = vmatprep.subr.mxu0 0.0
      %2339 = vmatpush1.xpose.msra.mxu0 0.0
      %2340 = vmatprep.subr.mxu0 0.0
      %2341 = vmatpush1.xpose.msra.mxu0 0.0
      %2342 = vmatprep.subr.mxu0 0.0
      %2343 = vmatpush1.xpose.msra.mxu0 0.0
      %2344 = vmatprep.subr.mxu0 0.0
      %2345 = vmatpush1.xpose.msra.mxu0 0.0
      %2346 = vmatprep.subr.mxu0 0.0
      %2347 = vmatpush1.xpose.msra.mxu0 0.0
      %2348 = vmatprep.subr.mxu0 0.0
      %2349 = vmatpush1.xpose.msra.mxu0 0.0
      %2350 = vmatprep.subr.mxu0 0.0
      %2351 = vmatpush1.xpose.msra.mxu0 0.0
      %2352 = vmatprep.subr.mxu0 0.0
      %2353 = vmatpush1.xpose.msra.mxu0 0.0
      %2354 = vmatprep.subr.mxu0 0.0
      %2355 = vmatpush1.xpose.msra.mxu0 0.0
      %2356 = vmatprep.subr.mxu0 0.0
      %2357 = vmatpush1.xpose.msra.mxu0 0.0
      %2358 = vmatprep.subr.mxu0 0.0
      %2359 = vmatpush1.xpose.msra.mxu0 0.0
      %2360 = vmatprep.subr.mxu0 0.0
      %2361 = vmatpush1.xpose.msra.mxu0 0.0
      %2362 = vmatprep.subr.mxu0 0.0
      %2363 = vmatpush1.xpose.msra.mxu0 0.0
      %2364 = vmatprep.subr.mxu0 0.0
      %2365 = vmatpush1.xpose.msra.mxu0 0.0
      %2366 = vmatprep.subr.mxu0 0.0
      %2367 = vmatpush1.xpose.msra.mxu0 0.0
      %2368 = vmatprep.subr.mxu0 0.0
      %2369 = vmatpush1.xpose.msra.mxu0 0.0
      %2370 = vmatprep.subr.mxu0 0.0
      %2371 = vmatpush1.xpose.msra.mxu0 0.0
      %2372 = vmatprep.subr.mxu0 0.0
      %2373 = vmatpush1.xpose.msra.mxu0 0.0
      %2374 = vmatprep.subr.mxu0 0.0
      %2375 = vmatpush1.xpose.msra.mxu0 0.0
      %2376 = vmatprep.subr.mxu0 0.0
      %2377 = vmatpush1.xpose.msra.mxu0 0.0
      %2378 = vmatprep.subr.mxu0 0.0
      %2379 = vmatpush1.xpose.msra.mxu0 0.0
      %2380 = vmatprep.subr.mxu0 0.0
      %2381 = vmatpush1.xpose.msra.mxu0 0.0
      %2382 = vmatprep.subr.mxu0 0.0
      %2383 = vmatpush1.xpose.msra.mxu0 0.0
      %2384 = vmatprep.subr.mxu0 0.0
      %2385 = vmatpush1.xpose.msra.mxu0 0.0
      %2386 = vmatprep.subr.mxu0 0.0
      %2387 = vmatpush1.xpose.msra.mxu0 0.0
      %2388 = vmatprep.subr.mxu0 0.0
      %2389 = vmatpush1.xpose.msra.mxu0 0.0
      %2390 = vmatprep.subr.mxu0 0.0
      %2391 = vmatpush1.xpose.msra.mxu0 0.0
      %2392 = vmatprep.subr.mxu0 0.0
      %2393 = vmatpush1.xpose.msra.mxu0 0.0
      %2394 = vmatprep.subr.mxu0 0.0
      %2395 = vmatpush1.xpose.msra.mxu0 0.0
      %2396 = vmatprep.mubr.f32.mxu0 0.0
      %2397 = vmatmul.mubr.f32.gmra.mrb[0].mxu0 %v2331
      %v2398 = vpop.f32.mrb[0].mxu0
      %v2399 = vadd.f32 %v2050, %v2398
      %v2400 = vpop.f32.mrb[0].mxu0
      %2401 = vdwg.mxu0
      %v2402 = vsel %vm2122, %v2399, -inf
      %2403 = vmax.xlane.f32.xlu0 %v2402
      %v2404 = vpop.xlane.xlu0 %2403
      %v2405 = vsub.f32 %v2399, %v2404
      %v2406 = vmul.f32 %v2405, 1.442695
      %v2407 = vpow.pop %v2406
      %v2408 = vsel %vm2122, %v2407, 0.0
      %2409 = vadd.xlane.f32.xlu0 %v2408
      %v2410 = vpop.xlane.xlu0 %2409
      %v2411 = vrcp.pop %v2410
      %v2412 = vmul.f32 %v2407, %v2411
      %v2413 = vsub.f32 %v2412, %v372
      %v2414 = vmul.f32 %v2413, 0.25
      %2415 = vxpose.xlu0.b32.start [1/16] %v2414, 128
      %2416 = vxpose.xlu0.b32.cont [2/16] 0.0, 128
      %2417 = vxpose.xlu0.b32.cont [3/16] 0.0, 128
      %2418 = vxpose.xlu0.b32.cont [4/16] 0.0, 128
      %2419 = vxpose.xlu0.b32.cont [5/16] 0.0, 128
      %2420 = vxpose.xlu0.b32.cont [6/16] 0.0, 128
      %2421 = vxpose.xlu0.b32.cont [7/16] 0.0, 128
      %2422 = vxpose.xlu0.b32.cont [8/16] 0.0, 128
      %2423 = vxpose.xlu0.b32.cont [9/16] 0.0, 128
      %2424 = vxpose.xlu0.b32.cont [10/16] 0.0, 128
      %2425 = vxpose.xlu0.b32.cont [11/16] 0.0, 128
      %2426 = vxpose.xlu0.b32.cont [12/16] 0.0, 128
      %2427 = vxpose.xlu0.b32.cont [13/16] 0.0, 128
      %2428 = vxpose.xlu0.b32.cont [14/16] 0.0, 128
      %2429 = vxpose.xlu0.b32.cont [15/16] 0.0, 128
      %2430 = vxpose.xlu0.b32.end [16/16] 0.0, 128
      %v2431 = vpop.trf.xlu0
      %v2432 = vpop.trf.xlu0
      %v2433 = vpop.trf.xlu0
      %v2434 = vpop.trf.xlu0
      %v2435 = vpop.trf.xlu0
      %v2436 = vpop.trf.xlu0
      %v2437 = vpop.trf.xlu0
      %v2438 = vpop.trf.xlu0
      %v2439 = vpop.trf.xlu0
      %v2440 = vpop.trf.xlu0
      %v2441 = vpop.trf.xlu0
      %v2442 = vpop.trf.xlu0
      %v2443 = vpop.trf.xlu0
      %v2444 = vpop.trf.xlu0
      %v2445 = vpop.trf.xlu0
      %v2446 = vpop.trf.xlu0
      %v2448 = vsel %vm1155, %v2431, 0
      %vm2450 = vcmask 1043456
      %v2452 = vsel %vm2450, %v2331, 0
      %2454 = vmatprep.subr.mxu0 0.0
      %2455 = vmatpush1.msra.mxu0 %v2452
      %2456 = vmatprep.subr.mxu0 0.0
      %2457 = vmatpush1.msra.mxu0 0.0
      %2458 = vmatprep.subr.mxu0 0.0
      %2459 = vmatpush1.msra.mxu0 0.0
      %2460 = vmatprep.subr.mxu0 0.0
      %2461 = vmatpush1.msra.mxu0 0.0
      %2462 = vmatprep.subr.mxu0 0.0
      %2463 = vmatpush1.msra.mxu0 0.0
      %2464 = vmatprep.subr.mxu0 0.0
      %2465 = vmatpush1.msra.mxu0 0.0
      %2466 = vmatprep.subr.mxu0 0.0
      %2467 = vmatpush1.msra.mxu0 0.0
      %2468 = vmatprep.subr.mxu0 0.0
      %2469 = vmatpush1.msra.mxu0 0.0
      %2470 = vmatprep.subr.mxu0 0.0
      %2471 = vmatpush1.msra.mxu0 0.0
      %2472 = vmatprep.subr.mxu0 0.0
      %2473 = vmatpush1.msra.mxu0 0.0
      %2474 = vmatprep.subr.mxu0 0.0
      %2475 = vmatpush1.msra.mxu0 0.0
      %2476 = vmatprep.subr.mxu0 0.0
      %2477 = vmatpush1.msra.mxu0 0.0
      %2478 = vmatprep.subr.mxu0 0.0
      %2479 = vmatpush1.msra.mxu0 0.0
      %2480 = vmatprep.subr.mxu0 0.0
      %2481 = vmatpush1.msra.mxu0 0.0
      %2482 = vmatprep.subr.mxu0 0.0
      %2483 = vmatpush1.msra.mxu0 0.0
      %2484 = vmatprep.subr.mxu0 0.0
      %2485 = vmatpush1.msra.mxu0 0.0
      %2486 = vmatprep.subr.mxu0 0.0
      %2487 = vmatpush1.msra.mxu0 0.0
      %2488 = vmatprep.subr.mxu0 0.0
      %2489 = vmatpush1.msra.mxu0 0.0
      %2490 = vmatprep.subr.mxu0 0.0
      %2491 = vmatpush1.msra.mxu0 0.0
      %2492 = vmatprep.subr.mxu0 0.0
      %2493 = vmatpush1.msra.mxu0 0.0
      %2494 = vmatprep.subr.mxu0 0.0
      %2495 = vmatpush1.msra.mxu0 0.0
      %2496 = vmatprep.subr.mxu0 0.0
      %2497 = vmatpush1.msra.mxu0 0.0
      %2498 = vmatprep.subr.mxu0 0.0
      %2499 = vmatpush1.msra.mxu0 0.0
      %2500 = vmatprep.subr.mxu0 0.0
      %2501 = vmatpush1.msra.mxu0 0.0
      %2502 = vmatprep.subr.mxu0 0.0
      %2503 = vmatpush1.msra.mxu0 0.0
      %2504 = vmatprep.subr.mxu0 0.0
      %2505 = vmatpush1.msra.mxu0 0.0
      %2506 = vmatprep.subr.mxu0 0.0
      %2507 = vmatpush1.msra.mxu0 0.0
      %2508 = vmatprep.subr.mxu0 0.0
      %2509 = vmatpush1.msra.mxu0 0.0
      %2510 = vmatprep.subr.mxu0 0.0
      %2511 = vmatpush1.msra.mxu0 0.0
      %2512 = vmatprep.subr.mxu0 0.0
      %2513 = vmatpush1.msra.mxu0 0.0
      %2514 = vmatprep.subr.mxu0 0.0
      %2515 = vmatpush1.msra.mxu0 0.0
      %2516 = vmatprep.subr.mxu0 0.0
      %2517 = vmatpush1.msra.mxu0 0.0
      %2518 = vmatprep.mubr.f32.mxu0 0.0
      %2519 = vmatmul.mubr.f32.gmra.mrb[0].mxu0 %v2448
      %v2520 = vpop.f32.mrb[0].mxu0
      %v2521 = vadd.f32 0.0, %v2520
      %v2522 = vpop.f32.mrb[0].mxu0
      %2523 = vdwg.mxu0
      %v2524 = vsel %vm2122, %v2414, 0.0
      %v2525 = vrot.slane %v2524, 4
      %v2526 = vadd.f32 %v2524, %v2525
      %v2527 = vrot.slane %v2526, 2
      %v2528 = vadd.f32 %v2526, %v2527
      %v2529 = vrot.slane %v2528, 1
      %v2530 = vadd.f32 %v2528, %v2529
      %v2532 = vsel %vm1155, %v2414, 0
      %v2535 = vsel %vm2450, %v375, 0
      %2537 = vmatprep.subr.mxu0 0.0
      %2538 = vmatpush1.msra.mxu0 %v2535
      %2539 = vmatprep.subr.mxu0 0.0
      %2540 = vmatpush1.msra.mxu0 0.0
      %2541 = vmatprep.subr.mxu0 0.0
      %2542 = vmatpush1.msra.mxu0 0.0
      %2543 = vmatprep.subr.mxu0 0.0
      %2544 = vmatpush1.msra.mxu0 0.0
      %2545 = vmatprep.subr.mxu0 0.0
      %2546 = vmatpush1.msra.mxu0 0.0
      %2547 = vmatprep.subr.mxu0 0.0
      %2548 = vmatpush1.msra.mxu0 0.0
      %2549 = vmatprep.subr.mxu0 0.0
      %2550 = vmatpush1.msra.mxu0 0.0
      %2551 = vmatprep.subr.mxu0 0.0
      %2552 = vmatpush1.msra.mxu0 0.0
      %2553 = vmatprep.subr.mxu0 0.0
      %2554 = vmatpush1.msra.mxu0 0.0
      %2555 = vmatprep.subr.mxu0 0.0
      %2556 = vmatpush1.msra.mxu0 0.0
      %2557 = vmatprep.subr.mxu0 0.0
      %2558 = vmatpush1.msra.mxu0 0.0
      %2559 = vmatprep.subr.mxu0 0.0
      %2560 = vmatpush1.msra.mxu0 0.0
      %2561 = vmatprep.subr.mxu0 0.0
      %2562 = vmatpush1.msra.mxu0 0.0
      %2563 = vmatprep.subr.mxu0 0.0
      %2564 = vmatpush1.msra.mxu0 0.0
      %2565 = vmatprep.subr.mxu0 0.0
      %2566 = vmatpush1.msra.mxu0 0.0
      %2567 = vmatprep.subr.mxu0 0.0
      %2568 = vmatpush1.msra.mxu0 0.0
      %2569 = vmatprep.subr.mxu0 0.0
      %2570 = vmatpush1.msra.mxu0 0.0
      %2571 = vmatprep.subr.mxu0 0.0
      %2572 = vmatpush1.msra.mxu0 0.0
      %2573 = vmatprep.subr.mxu0 0.0
      %2574 = vmatpush1.msra.mxu0 0.0
      %2575 = vmatprep.subr.mxu0 0.0
      %2576 = vmatpush1.msra.mxu0 0.0
      %2577 = vmatprep.subr.mxu0 0.0
      %2578 = vmatpush1.msra.mxu0 0.0
      %2579 = vmatprep.subr.mxu0 0.0
      %2580 = vmatpush1.msra.mxu0 0.0
      %2581 = vmatprep.subr.mxu0 0.0
      %2582 = vmatpush1.msra.mxu0 0.0
      %2583 = vmatprep.subr.mxu0 0.0
      %2584 = vmatpush1.msra.mxu0 0.0
      %2585 = vmatprep.subr.mxu0 0.0
      %2586 = vmatpush1.msra.mxu0 0.0
      %2587 = vmatprep.subr.mxu0 0.0
      %2588 = vmatpush1.msra.mxu0 0.0
      %2589 = vmatprep.subr.mxu0 0.0
      %2590 = vmatpush1.msra.mxu0 0.0
      %2591 = vmatprep.subr.mxu0 0.0
      %2592 = vmatpush1.msra.mxu0 0.0
      %2593 = vmatprep.subr.mxu0 0.0
      %2594 = vmatpush1.msra.mxu0 0.0
      %2595 = vmatprep.subr.mxu0 0.0
      %2596 = vmatpush1.msra.mxu0 0.0
      %2597 = vmatprep.subr.mxu0 0.0
      %2598 = vmatpush1.msra.mxu0 0.0
      %2599 = vmatprep.subr.mxu0 0.0
      %2600 = vmatpush1.msra.mxu0 0.0
      %2601 = vmatprep.mubr.f32.mxu0 0.0
      %2602 = vmatmul.mubr.f32.gmra.mrb[0].mxu0 %v2532
      %v2603 = vpop.f32.mrb[0].mxu0
      %v2604 = vadd.f32 0.0, %v2603
      %v2605 = vpop.f32.mrb[0].mxu0
      %2606 = vdwg.mxu0
      %v2608 = vsel %vm2450, %v2604, 0
      %2610 = vmatprep.subr.mxu0 0.0
      %2611 = vmatpush1.msra.mxu0 %v2608
      %2612 = vmatprep.subr.mxu0 0.0
      %2613 = vmatpush1.msra.mxu0 0.0
      %2614 = vmatprep.subr.mxu0 0.0
      %2615 = vmatpush1.msra.mxu0 0.0
      %2616 = vmatprep.subr.mxu0 0.0
      %2617 = vmatpush1.msra.mxu0 0.0
      %2618 = vmatprep.subr.mxu0 0.0
      %2619 = vmatpush1.msra.mxu0 0.0
      %2620 = vmatprep.subr.mxu0 0.0
      %2621 = vmatpush1.msra.mxu0 0.0
      %2622 = vmatprep.subr.mxu0 0.0
      %2623 = vmatpush1.msra.mxu0 0.0
      %2624 = vmatprep.subr.mxu0 0.0
      %2625 = vmatpush1.msra.mxu0 0.0
      %2626 = vmatprep.subr.mxu0 0.0
      %2627 = vmatpush1.msra.mxu0 0.0
      %2628 = vmatprep.subr.mxu0 0.0
      %2629 = vmatpush1.msra.mxu0 0.0
      %2630 = vmatprep.subr.mxu0 0.0
      %2631 = vmatpush1.msra.mxu0 0.0
      %2632 = vmatprep.subr.mxu0 0.0
      %2633 = vmatpush1.msra.mxu0 0.0
      %2634 = vmatprep.subr.mxu0 0.0
      %2635 = vmatpush1.msra.mxu0 0.0
      %2636 = vmatprep.subr.mxu0 0.0
      %2637 = vmatpush1.msra.mxu0 0.0
      %2638 = vmatprep.subr.mxu0 0.0
      %2639 = vmatpush1.msra.mxu0 0.0
      %2640 = vmatprep.subr.mxu0 0.0
      %2641 = vmatpush1.msra.mxu0 0.0
      %2642 = vmatprep.subr.mxu0 0.0
      %2643 = vmatpush1.msra.mxu0 0.0
      %2644 = vmatprep.subr.mxu0 0.0
      %2645 = vmatpush1.msra.mxu0 0.0
      %2646 = vmatprep.subr.mxu0 0.0
      %2647 = vmatpush1.msra.mxu0 0.0
      %2648 = vmatprep.subr.mxu0 0.0
      %2649 = vmatpush1.msra.mxu0 0.0
      %2650 = vmatprep.subr.mxu0 0.0
      %2651 = vmatpush1.msra.mxu0 0.0
      %2652 = vmatprep.subr.mxu0 0.0
      %2653 = vmatpush1.msra.mxu0 0.0
      %2654 = vmatprep.subr.mxu0 0.0
      %2655 = vmatpush1.msra.mxu0 0.0
      %2656 = vmatprep.subr.mxu0 0.0
      %2657 = vmatpush1.msra.mxu0 0.0
      %2658 = vmatprep.subr.mxu0 0.0
      %2659 = vmatpush1.msra.mxu0 0.0
      %2660 = vmatprep.subr.mxu0 0.0
      %2661 = vmatpush1.msra.mxu0 0.0
      %2662 = vmatprep.subr.mxu0 0.0
      %2663 = vmatpush1.msra.mxu0 0.0
      %2664 = vmatprep.subr.mxu0 0.0
      %2665 = vmatpush1.msra.mxu0 0.0
      %2666 = vmatprep.subr.mxu0 0.0
      %2667 = vmatpush1.msra.mxu0 0.0
      %2668 = vmatprep.subr.mxu0 0.0
      %2669 = vmatpush1.msra.mxu0 0.0
      %2670 = vmatprep.subr.mxu0 0.0
      %2671 = vmatpush1.msra.mxu0 0.0
      %2672 = vmatprep.subr.mxu0 0.0
      %2673 = vmatpush1.msra.mxu0 0.0
      %2674 = vmatprep.mubr.f32.mxu0 0.0
      %2675 = vmatmul.mubr.f32.gmra.mrb[0].mxu0 %v1157
      %v2676 = vpop.f32.mrb[0].mxu0
      %v2677 = vadd.f32 0.0, %v2676
      %v2678 = vpop.f32.mrb[0].mxu0
      %2679 = vmatprep.mubr.f32.mxu0 0.0
      %2680 = vmatmul.mubr.f32.gmra.mrb[0].mxu0 %v1160
      %v2681 = vpop.f32.mrb[0].mxu0
      %v2682 = vadd.f32 0.0, %v2681
      %v2683 = vpop.f32.mrb[0].mxu0
      %2684 = vmatprep.mubr.f32.mxu0 0.0
      %2685 = vmatmul.mubr.f32.gmra.mrb[0].mxu0 %v1163
      %v2686 = vpop.f32.mrb[0].mxu0
      %v2687 = vadd.f32 0.0, %v2686
      %v2688 = vpop.f32.mrb[0].mxu0
      %2689 = vmatprep.mubr.f32.mxu0 0.0
      %2690 = vmatmul.mubr.f32.gmra.mrb[0].mxu0 %v1166
      %v2691 = vpop.f32.mrb[0].mxu0
      %v2692 = vadd.f32 0.0, %v2691
      %v2693 = vpop.f32.mrb[0].mxu0
      %2694 = vmatprep.mubr.f32.mxu0 0.0
      %2695 = vmatmul.mubr.f32.gmra.mrb[0].mxu0 %v1169
      %v2696 = vpop.f32.mrb[0].mxu0
      %v2697 = vadd.f32 0.0, %v2696
      %v2698 = vpop.f32.mrb[0].mxu0
      %2699 = vmatprep.mubr.f32.mxu0 0.0
      %2700 = vmatmul.mubr.f32.gmra.mrb[0].mxu0 %v1172
      %v2701 = vpop.f32.mrb[0].mxu0
      %v2702 = vadd.f32 0.0, %v2701
      %v2703 = vpop.f32.mrb[0].mxu0
      %2704 = vmatprep.mubr.f32.mxu0 0.0
      %2705 = vmatmul.mubr.f32.gmra.mrb[0].mxu0 %v1175
      %v2706 = vpop.f32.mrb[0].mxu0
      %v2707 = vadd.f32 0.0, %v2706
      %v2708 = vpop.f32.mrb[0].mxu0
      %2709 = vmatprep.mubr.f32.mxu0 0.0
      %2710 = vmatmul.mubr.f32.gmra.mrb[0].mxu0 %v1178
      %v2711 = vpop.f32.mrb[0].mxu0
      %v2712 = vadd.f32 0.0, %v2711
      %v2713 = vpop.f32.mrb[0].mxu0
      %2714 = vdwg.mxu0
      %v2715 = vmul.f32 %v2677, 0.0625
      %v2716 = vmul.f32 %v2682, 0.0625
      %v2717 = vmul.f32 %v2687, 0.0625
      %v2718 = vmul.f32 %v2692, 0.0625
      %v2719 = vmul.f32 %v2697, 0.0625
      %v2720 = vmul.f32 %v2702, 0.0625
      %v2721 = vmul.f32 %v2707, 0.0625
      %v2722 = vmul.f32 %v2712, 0.0625
      %vm2723 = vcmp.gt.f32.partialorder %v2215, 0.0
      %vm2724 = vcmp.gt.f32.partialorder %v2220, 0.0
      %vm2725 = vcmp.gt.f32.partialorder %v2225, 0.0
      %vm2726 = vcmp.gt.f32.partialorder %v2230, 0.0
      %vm2727 = vcmp.gt.f32.partialorder %v2235, 0.0
      %vm2728 = vcmp.gt.f32.partialorder %v2240, 0.0
      %vm2729 = vcmp.gt.f32.partialorder %v2245, 0.0
      %vm2730 = vcmp.gt.f32.partialorder %v2250, 0.0
      %v2731 = vsel %vm2723, %v2715, 0.0
      %v2732 = vsel %vm2724, %v2716, 0.0
      %v2733 = vsel %vm2725, %v2717, 0.0
      %v2734 = vsel %vm2726, %v2718, 0.0
      %v2735 = vsel %vm2727, %v2719, 0.0
      %v2736 = vsel %vm2728, %v2720, 0.0
      %v2737 = vsel %vm2729, %v2721, 0.0
      %v2738 = vsel %vm2730, %v2722, 0.0
      %2739 = vxpose.xlu0.b32.start [1/16] %v1384, 128
      %2740 = vxpose.xlu0.b32.cont [2/16] %v1389, 128
      %2741 = vxpose.xlu0.b32.cont [3/16] %v1394, 128
      %2742 = vxpose.xlu0.b32.cont [4/16] %v1399, 128
      %2743 = vxpose.xlu0.b32.cont [5/16] %v1404, 128
      %2744 = vxpose.xlu0.b32.cont [6/16] %v1409, 128
      %2745 = vxpose.xlu0.b32.cont [7/16] %v1414, 128
      %2746 = vxpose.xlu0.b32.cont [8/16] %v1419, 128
      %2747 = vxpose.xlu0.b32.cont [9/16] 0.0, 128
      %2748 = vxpose.xlu0.b32.cont [10/16] 0.0, 128
      %2749 = vxpose.xlu0.b32.cont [11/16] 0.0, 128
      %2750 = vxpose.xlu0.b32.cont [12/16] 0.0, 128
      %2751 = vxpose.xlu0.b32.cont [13/16] 0.0, 128
      %2752 = vxpose.xlu0.b32.cont [14/16] 0.0, 128
      %2753 = vxpose.xlu0.b32.cont [15/16] 0.0, 128
      %2754 = vxpose.xlu0.b32.end [16/16] 0.0, 128
      %v2755 = vpop.trf.xlu0
      %v2756 = vpop.trf.xlu0
      %v2757 = vpop.trf.xlu0
      %v2758 = vpop.trf.xlu0
      %v2759 = vpop.trf.xlu0
      %v2760 = vpop.trf.xlu0
      %v2761 = vpop.trf.xlu0
      %v2762 = vpop.trf.xlu0
      %v2763 = vpop.trf.xlu0
      %v2764 = vpop.trf.xlu0
      %v2765 = vpop.trf.xlu0
      %v2766 = vpop.trf.xlu0
      %v2767 = vpop.trf.xlu0
      %v2768 = vpop.trf.xlu0
      %v2769 = vpop.trf.xlu0
      %v2770 = vpop.trf.xlu0
      %v2772 = vsel %vm522, %v2755, 0
      %2774 = vmatprep.subr.mxu0 0.0
      %2775 = vmatpush1.msra.mxu0 %v2731
      %2776 = vmatprep.subr.mxu0 0.0
      %2777 = vmatpush1.msra.mxu0 %v2732
      %2778 = vmatprep.subr.mxu0 0.0
      %2779 = vmatpush1.msra.mxu0 %v2733
      %2780 = vmatprep.subr.mxu0 0.0
      %2781 = vmatpush1.msra.mxu0 %v2734
      %2782 = vmatprep.subr.mxu0 0.0
      %2783 = vmatpush1.msra.mxu0 %v2735
      %2784 = vmatprep.subr.mxu0 0.0
      %2785 = vmatpush1.msra.mxu0 %v2736
      %2786 = vmatprep.subr.mxu0 0.0
      %2787 = vmatpush1.msra.mxu0 %v2737
      %2788 = vmatprep.subr.mxu0 0.0
      %2789 = vmatpush1.msra.mxu0 %v2738
      %2790 = vmatprep.subr.mxu0 0.0
      %2791 = vmatpush1.msra.mxu0 0.0
      %2792 = vmatprep.subr.mxu0 0.0
      %2793 = vmatpush1.msra.mxu0 0.0
      %2794 = vmatprep.subr.mxu0 0.0
      %2795 = vmatpush1.msra.mxu0 0.0
      %2796 = vmatprep.subr.mxu0 0.0
      %2797 = vmatpush1.msra.mxu0 0.0
      %2798 = vmatprep.subr.mxu0 0.0
      %2799 = vmatpush1.msra.mxu0 0.0
      %2800 = vmatprep.subr.mxu0 0.0
      %2801 = vmatpush1.msra.mxu0 0.0
      %2802 = vmatprep.subr.mxu0 0.0
      %2803 = vmatpush1.msra.mxu0 0.0
      %2804 = vmatprep.subr.mxu0 0.0
      %2805 = vmatpush1.msra.mxu0 0.0
      %2806 = vmatprep.subr.mxu0 0.0
      %2807 = vmatpush1.msra.mxu0 0.0
      %2808 = vmatprep.subr.mxu0 0.0
      %2809 = vmatpush1.msra.mxu0 0.0
      %2810 = vmatprep.subr.mxu0 0.0
      %2811 = vmatpush1.msra.mxu0 0.0
      %2812 = vmatprep.subr.mxu0 0.0
      %2813 = vmatpush1.msra.mxu0 0.0
      %2814 = vmatprep.subr.mxu0 0.0
      %2815 = vmatpush1.msra.mxu0 0.0
      %2816 = vmatprep.subr.mxu0 0.0
      %2817 = vmatpush1.msra.mxu0 0.0
      %2818 = vmatprep.subr.mxu0 0.0
      %2819 = vmatpush1.msra.mxu0 0.0
      %2820 = vmatprep.subr.mxu0 0.0
      %2821 = vmatpush1.msra.mxu0 0.0
      %2822 = vmatprep.subr.mxu0 0.0
      %2823 = vmatpush1.msra.mxu0 0.0
      %2824 = vmatprep.subr.mxu0 0.0
      %2825 = vmatpush1.msra.mxu0 0.0
      %2826 = vmatprep.subr.mxu0 0.0
      %2827 = vmatpush1.msra.mxu0 0.0
      %2828 = vmatprep.subr.mxu0 0.0
      %2829 = vmatpush1.msra.mxu0 0.0
      %2830 = vmatprep.subr.mxu0 0.0
      %2831 = vmatpush1.msra.mxu0 0.0
      %2832 = vmatprep.subr.mxu0 0.0
      %2833 = vmatpush1.msra.mxu0 0.0
      %2834 = vmatprep.subr.mxu0 0.0
      %2835 = vmatpush1.msra.mxu0 0.0
      %2836 = vmatprep.subr.mxu0 0.0
      %2837 = vmatpush1.msra.mxu0 0.0
      %2838 = vmatprep.mubr.f32.mxu0 0.0
      %2839 = vmatmul.mubr.f32.gmra.mrb[0].mxu0 %v2772
      %v2840 = vpop.f32.mrb[0].mxu0
      %v2841 = vadd.f32 0.0, %v2840
      %v2842 = vpop.f32.mrb[0].mxu0
      %2843 = vdwg.mxu0
      %v2844 = vadd.f32 %v2731, %v2732
      %v2845 = vadd.f32 %v2844, %v2733
      %v2846 = vadd.f32 %v2845, %v2734
      %v2847 = vadd.f32 %v2846, %v2735
      %v2848 = vadd.f32 %v2847, %v2736
      %v2849 = vadd.f32 %v2848, %v2737
      %v2850 = vadd.f32 %v2849, %v2738
      %v2851 = vrot.slane %v2850, 4
      %v2852 = vadd.f32 %v2850, %v2851
      %v2853 = vrot.slane %v2852, 2
      %v2854 = vadd.f32 %v2852, %v2853
      %v2855 = vrot.slane %v2854, 1
      %v2856 = vadd.f32 %v2854, %v2855
      %v2857 = vmul.f32 %v2841, 0.001
      %v2858 = vsub.f32 %v373, %v2857
      %v2859 = vmul.f32 %v2856, 0.001
      %v2860 = vsub.f32 %v374, %v2859
      %v2861 = vmul.f32 %v2521, 0.001
      %v2862 = vsub.f32 %v375, %v2861
      %v2863 = vmul.f32 %v2530, 0.001
      %v2864 = vsub.f32 %v376, %v2863
      %v2866 = vlaneseq
      %v2867 = vshrl.u32 %v2866, 7
      %v2868 = vsub.s32 0, %v2867
      %v2869 = vrot.slane %v2860, %v2868
      %v2872 = vsel %vm1823, %v2858, 0
      %2874 = vmatprep.subr.mxu0 0.0
      %2875 = vmatpush1.msra.mxu0 %v2872
      %2876 = vmatprep.subr.mxu0 0.0
      %2877 = vmatpush1.msra.mxu0 0.0
      %2878 = vmatprep.subr.mxu0 0.0
      %2879 = vmatpush1.msra.mxu0 0.0
      %2880 = vmatprep.subr.mxu0 0.0
      %2881 = vmatpush1.msra.mxu0 0.0
      %2882 = vmatprep.subr.mxu0 0.0
      %2883 = vmatpush1.msra.mxu0 0.0
      %2884 = vmatprep.subr.mxu0 0.0
      %2885 = vmatpush1.msra.mxu0 0.0
      %2886 = vmatprep.subr.mxu0 0.0
      %2887 = vmatpush1.msra.mxu0 0.0
      %2888 = vmatprep.subr.mxu0 0.0
      %2889 = vmatpush1.msra.mxu0 0.0
      %2890 = vmatprep.subr.mxu0 0.0
      %2891 = vmatpush1.msra.mxu0 0.0
      %2892 = vmatprep.subr.mxu0 0.0
      %2893 = vmatpush1.msra.mxu0 0.0
      %2894 = vmatprep.subr.mxu0 0.0
      %2895 = vmatpush1.msra.mxu0 0.0
      %2896 = vmatprep.subr.mxu0 0.0
      %2897 = vmatpush1.msra.mxu0 0.0
      %2898 = vmatprep.subr.mxu0 0.0
      %2899 = vmatpush1.msra.mxu0 0.0
      %2900 = vmatprep.subr.mxu0 0.0
      %2901 = vmatpush1.msra.mxu0 0.0
      %2902 = vmatprep.subr.mxu0 0.0
      %2903 = vmatpush1.msra.mxu0 0.0
      %2904 = vmatprep.subr.mxu0 0.0
      %2905 = vmatpush1.msra.mxu0 0.0
      %2906 = vmatprep.subr.mxu0 0.0
      %2907 = vmatpush1.msra.mxu0 0.0
      %2908 = vmatprep.subr.mxu0 0.0
      %2909 = vmatpush1.msra.mxu0 0.0
      %2910 = vmatprep.subr.mxu0 0.0
      %2911 = vmatpush1.msra.mxu0 0.0
      %2912 = vmatprep.subr.mxu0 0.0
      %2913 = vmatpush1.msra.mxu0 0.0
      %2914 = vmatprep.subr.mxu0 0.0
      %2915 = vmatpush1.msra.mxu0 0.0
      %2916 = vmatprep.subr.mxu0 0.0
      %2917 = vmatpush1.msra.mxu0 0.0
      %2918 = vmatprep.subr.mxu0 0.0
      %2919 = vmatpush1.msra.mxu0 0.0
      %2920 = vmatprep.subr.mxu0 0.0
      %2921 = vmatpush1.msra.mxu0 0.0
      %2922 = vmatprep.subr.mxu0 0.0
      %2923 = vmatpush1.msra.mxu0 0.0
      %2924 = vmatprep.subr.mxu0 0.0
      %2925 = vmatpush1.msra.mxu0 0.0
      %2926 = vmatprep.subr.mxu0 0.0
      %2927 = vmatpush1.msra.mxu0 0.0
      %2928 = vmatprep.subr.mxu0 0.0
      %2929 = vmatpush1.msra.mxu0 0.0
      %2930 = vmatprep.subr.mxu0 0.0
      %2931 = vmatpush1.msra.mxu0 0.0
      %2932 = vmatprep.subr.mxu0 0.0
      %2933 = vmatpush1.msra.mxu0 0.0
      %2934 = vmatprep.subr.mxu0 0.0
      %2935 = vmatpush1.msra.mxu0 0.0
      %2936 = vmatprep.subr.mxu0 0.0
      %2937 = vmatpush1.msra.mxu0 0.0
      %2938 = vmatprep.mubr.f32.mxu0 0.0
      %2939 = vmatmul.mubr.f32.gmra.mrb[0].mxu0 %v1800
      %v2940 = vpop.f32.mrb[0].mxu0
      %v2941 = vadd.f32 %v2869, %v2940
      %v2942 = vpop.f32.mrb[0].mxu0
      %2943 = vmatprep.mubr.f32.mxu0 0.0
      %2944 = vmatmul.mubr.f32.gmra.mrb[0].mxu0 %v1803
      %v2945 = vpop.f32.mrb[0].mxu0
      %v2946 = vadd.f32 %v2869, %v2945
      %v2947 = vpop.f32.mrb[0].mxu0
      %2948 = vmatprep.mubr.f32.mxu0 0.0
      %2949 = vmatmul.mubr.f32.gmra.mrb[0].mxu0 %v1806
      %v2950 = vpop.f32.mrb[0].mxu0
      %v2951 = vadd.f32 %v2869, %v2950
      %v2952 = vpop.f32.mrb[0].mxu0
      %2953 = vmatprep.mubr.f32.mxu0 0.0
      %2954 = vmatmul.mubr.f32.gmra.mrb[0].mxu0 %v1809
      %v2955 = vpop.f32.mrb[0].mxu0
      %v2956 = vadd.f32 %v2869, %v2955
      %v2957 = vpop.f32.mrb[0].mxu0
      %2958 = vmatprep.mubr.f32.mxu0 0.0
      %2959 = vmatmul.mubr.f32.gmra.mrb[0].mxu0 %v1812
      %v2960 = vpop.f32.mrb[0].mxu0
      %v2961 = vadd.f32 %v2869, %v2960
      %v2962 = vpop.f32.mrb[0].mxu0
      %2963 = vmatprep.mubr.f32.mxu0 0.0
      %2964 = vmatmul.mubr.f32.gmra.mrb[0].mxu0 %v1815
      %v2965 = vpop.f32.mrb[0].mxu0
      %v2966 = vadd.f32 %v2869, %v2965
      %v2967 = vpop.f32.mrb[0].mxu0
      %2968 = vmatprep.mubr.f32.mxu0 0.0
      %2969 = vmatmul.mubr.f32.gmra.mrb[0].mxu0 %v1818
      %v2970 = vpop.f32.mrb[0].mxu0
      %v2971 = vadd.f32 %v2869, %v2970
      %v2972 = vpop.f32.mrb[0].mxu0
      %2973 = vmatprep.mubr.f32.mxu0 0.0
      %2974 = vmatmul.mubr.f32.gmra.mrb[0].mxu0 %v1821
      %v2975 = vpop.f32.mrb[0].mxu0
      %v2976 = vadd.f32 %v2869, %v2975
      %v2977 = vpop.f32.mrb[0].mxu0
      %2978 = vdwg.mxu0
      %v2979 = vmax.f32 %v2941, 0.0
      %v2980 = vmax.f32 %v2946, 0.0
      %v2981 = vmax.f32 %v2951, 0.0
      %v2982 = vmax.f32 %v2956, 0.0
      %v2983 = vmax.f32 %v2961, 0.0
      %v2984 = vmax.f32 %v2966, 0.0
      %v2985 = vmax.f32 %v2971, 0.0
      %v2986 = vmax.f32 %v2976, 0.0
      %2987 = vmatprep.subr.mxu0 0.0
      %2988 = vmatpush1.msra.mxu0 %v2979
      %2989 = vmatprep.subr.mxu0 0.0
      %2990 = vmatpush1.msra.mxu0 %v2980
      %2991 = vmatprep.subr.mxu0 0.0
      %2992 = vmatpush1.msra.mxu0 %v2981
      %2993 = vmatprep.subr.mxu0 0.0
      %2994 = vmatpush1.msra.mxu0 %v2982
      %2995 = vmatprep.subr.mxu0 0.0
      %2996 = vmatpush1.msra.mxu0 %v2983
      %2997 = vmatprep.subr.mxu0 0.0
      %2998 = vmatpush1.msra.mxu0 %v2984
      %2999 = vmatprep.subr.mxu0 0.0
      %3000 = vmatpush1.msra.mxu0 %v2985
      %3001 = vmatprep.subr.mxu0 0.0
      %3002 = vmatpush1.msra.mxu0 %v2986
      %3003 = vmatprep.subr.mxu0 0.0
      %3004 = vmatpush1.msra.mxu0 0.0
      %3005 = vmatprep.subr.mxu0 0.0
      %3006 = vmatpush1.msra.mxu0 0.0
      %3007 = vmatprep.subr.mxu0 0.0
      %3008 = vmatpush1.msra.mxu0 0.0
      %3009 = vmatprep.subr.mxu0 0.0
      %3010 = vmatpush1.msra.mxu0 0.0
      %3011 = vmatprep.subr.mxu0 0.0
      %3012 = vmatpush1.msra.mxu0 0.0
      %3013 = vmatprep.subr.mxu0 0.0
      %3014 = vmatpush1.msra.mxu0 0.0
      %3015 = vmatprep.subr.mxu0 0.0
      %3016 = vmatpush1.msra.mxu0 0.0
      %3017 = vmatprep.subr.mxu0 0.0
      %3018 = vmatpush1.msra.mxu0 0.0
      %3019 = vmatprep.subr.mxu0 0.0
      %3020 = vmatpush1.msra.mxu0 0.0
      %3021 = vmatprep.subr.mxu0 0.0
      %3022 = vmatpush1.msra.mxu0 0.0
      %3023 = vmatprep.subr.mxu0 0.0
      %3024 = vmatpush1.msra.mxu0 0.0
      %3025 = vmatprep.subr.mxu0 0.0
      %3026 = vmatpush1.msra.mxu0 0.0
      %3027 = vmatprep.subr.mxu0 0.0
      %3028 = vmatpush1.msra.mxu0 0.0
      %3029 = vmatprep.subr.mxu0 0.0
      %3030 = vmatpush1.msra.mxu0 0.0
      %3031 = vmatprep.subr.mxu0 0.0
      %3032 = vmatpush1.msra.mxu0 0.0
      %3033 = vmatprep.subr.mxu0 0.0
      %3034 = vmatpush1.msra.mxu0 0.0
      %3035 = vmatprep.subr.mxu0 0.0
      %3036 = vmatpush1.msra.mxu0 0.0
      %3037 = vmatprep.subr.mxu0 0.0
      %3038 = vmatpush1.msra.mxu0 0.0
      %3039 = vmatprep.subr.mxu0 0.0
      %3040 = vmatpush1.msra.mxu0 0.0
      %3041 = vmatprep.subr.mxu0 0.0
      %3042 = vmatpush1.msra.mxu0 0.0
      %3043 = vmatprep.subr.mxu0 0.0
      %3044 = vmatpush1.msra.mxu0 0.0
      %3045 = vmatprep.subr.mxu0 0.0
      %3046 = vmatpush1.msra.mxu0 0.0
      %3047 = vmatprep.subr.mxu0 0.0
      %3048 = vmatpush1.msra.mxu0 0.0
      %3049 = vmatprep.subr.mxu0 0.0
      %3050 = vmatpush1.msra.mxu0 0.0
      %3051 = vmatprep.mubr.f32.mxu0 0.0
      %3052 = vmatmul.mubr.f32.gmra.mrb[0].mxu0 %v1973
      %v3053 = vpop.f32.mrb[0].mxu0
      %v3054 = vadd.f32 0.0, %v3053
      %v3055 = vpop.f32.mrb[0].mxu0
      %3056 = vdwg.mxu0
      %v3057 = vmul.f32 %v3054, 0.0625
      %v3059 = vlaneseq
      %v3060 = vshrl.u32 %v3059, 7
      %v3061 = vsub.s32 0, %v3060
      %v3062 = vrot.slane %v2864, %v3061
      %3064 = vmatprep.subr.mxu0 0.0
      %3065 = vmatpush1.xpose.msra.mxu0 %v2862
      %3066 = vmatprep.subr.mxu0 0.0
      %3067 = vmatpush1.xpose.msra.mxu0 0.0
      %3068 = vmatprep.subr.mxu0 0.0
      %3069 = vmatpush1.xpose.msra.mxu0 0.0
      %3070 = vmatprep.subr.mxu0 0.0
      %3071 = vmatpush1.xpose.msra.mxu0 0.0
      %3072 = vmatprep.subr.mxu0 0.0
      %3073 = vmatpush1.xpose.msra.mxu0 0.0
      %3074 = vmatprep.subr.mxu0 0.0
      %3075 = vmatpush1.xpose.msra.mxu0 0.0
      %3076 = vmatprep.subr.mxu0 0.0
      %3077 = vmatpush1.xpose.msra.mxu0 0.0
      %3078 = vmatprep.subr.mxu0 0.0
      %3079 = vmatpush1.xpose.msra.mxu0 0.0
      %3080 = vmatprep.subr.mxu0 0.0
      %3081 = vmatpush1.xpose.msra.mxu0 0.0
      %3082 = vmatprep.subr.mxu0 0.0
      %3083 = vmatpush1.xpose.msra.mxu0 0.0
      %3084 = vmatprep.subr.mxu0 0.0
      %3085 = vmatpush1.xpose.msra.mxu0 0.0
      %3086 = vmatprep.subr.mxu0 0.0
      %3087 = vmatpush1.xpose.msra.mxu0 0.0
      %3088 = vmatprep.subr.mxu0 0.0
      %3089 = vmatpush1.xpose.msra.mxu0 0.0
      %3090 = vmatprep.subr.mxu0 0.0
      %3091 = vmatpush1.xpose.msra.mxu0 0.0
      %3092 = vmatprep.subr.mxu0 0.0
      %3093 = vmatpush1.xpose.msra.mxu0 0.0
      %3094 = vmatprep.subr.mxu0 0.0
      %3095 = vmatpush1.xpose.msra.mxu0 0.0
      %3096 = vmatprep.subr.mxu0 0.0
      %3097 = vmatpush1.xpose.msra.mxu0 0.0
      %3098 = vmatprep.subr.mxu0 0.0
      %3099 = vmatpush1.xpose.msra.mxu0 0.0
      %3100 = vmatprep.subr.mxu0 0.0
      %3101 = vmatpush1.xpose.msra.mxu0 0.0
      %3102 = vmatprep.subr.mxu0 0.0
      %3103 = vmatpush1.xpose.msra.mxu0 0.0
      %3104 = vmatprep.subr.mxu0 0.0
      %3105 = vmatpush1.xpose.msra.mxu0 0.0
      %3106 = vmatprep.subr.mxu0 0.0
      %3107 = vmatpush1.xpose.msra.mxu0 0.0
      %3108 = vmatprep.subr.mxu0 0.0
      %3109 = vmatpush1.xpose.msra.mxu0 0.0
      %3110 = vmatprep.subr.mxu0 0.0
      %3111 = vmatpush1.xpose.msra.mxu0 0.0
      %3112 = vmatprep.subr.mxu0 0.0
      %3113 = vmatpush1.xpose.msra.mxu0 0.0
      %3114 = vmatprep.subr.mxu0 0.0
      %3115 = vmatpush1.xpose.msra.mxu0 0.0
      %3116 = vmatprep.subr.mxu0 0.0
      %3117 = vmatpush1.xpose.msra.mxu0 0.0
      %3118 = vmatprep.subr.mxu0 0.0
      %3119 = vmatpush1.xpose.msra.mxu0 0.0
      %3120 = vmatprep.subr.mxu0 0.0
      %3121 = vmatpush1.xpose.msra.mxu0 0.0
      %3122 = vmatprep.subr.mxu0 0.0
      %3123 = vmatpush1.xpose.msra.mxu0 0.0
      %3124 = vmatprep.subr.mxu0 0.0
      %3125 = vmatpush1.xpose.msra.mxu0 0.0
      %3126 = vmatprep.subr.mxu0 0.0
      %3127 = vmatpush1.xpose.msra.mxu0 0.0
      %3128 = vmatprep.mubr.f32.mxu0 0.0
      %3129 = vmatmul.mubr.f32.gmra.mrb[0].mxu0 %v3057
      %v3130 = vpop.f32.mrb[0].mxu0
      %v3131 = vadd.f32 %v3062, %v3130
      %v3132 = vpop.f32.mrb[0].mxu0
      %3133 = vdwg.mxu0
      %s3134 = scalar_lea.vmem %s355, 4
      %3135 = vst.msk [vmem:[%s3134] sm:$0xf] %vm2122, %v3131
      %3136 = vmatprep.subr.mxu0 0.0
      %3137 = vmatpush1.msra.mxu0 %v2872
      %3138 = vmatprep.subr.mxu0 0.0
      %3139 = vmatpush1.msra.mxu0 0.0
      %3140 = vmatprep.subr.mxu0 0.0
      %3141 = vmatpush1.msra.mxu0 0.0
      %3142 = vmatprep.subr.mxu0 0.0
      %3143 = vmatpush1.msra.mxu0 0.0
      %3144 = vmatprep.subr.mxu0 0.0
      %3145 = vmatpush1.msra.mxu0 0.0
      %3146 = vmatprep.subr.mxu0 0.0
      %3147 = vmatpush1.msra.mxu0 0.0
      %3148 = vmatprep.subr.mxu0 0.0
      %3149 = vmatpush1.msra.mxu0 0.0
      %3150 = vmatprep.subr.mxu0 0.0
      %3151 = vmatpush1.msra.mxu0 0.0
      %3152 = vmatprep.subr.mxu0 0.0
      %3153 = vmatpush1.msra.mxu0 0.0
      %3154 = vmatprep.subr.mxu0 0.0
      %3155 = vmatpush1.msra.mxu0 0.0
      %3156 = vmatprep.subr.mxu0 0.0
      %3157 = vmatpush1.msra.mxu0 0.0
      %3158 = vmatprep.subr.mxu0 0.0
      %3159 = vmatpush1.msra.mxu0 0.0
      %3160 = vmatprep.subr.mxu0 0.0
      %3161 = vmatpush1.msra.mxu0 0.0
      %3162 = vmatprep.subr.mxu0 0.0
      %3163 = vmatpush1.msra.mxu0 0.0
      %3164 = vmatprep.subr.mxu0 0.0
      %3165 = vmatpush1.msra.mxu0 0.0
      %3166 = vmatprep.subr.mxu0 0.0
      %3167 = vmatpush1.msra.mxu0 0.0
      %3168 = vmatprep.subr.mxu0 0.0
      %3169 = vmatpush1.msra.mxu0 0.0
      %3170 = vmatprep.subr.mxu0 0.0
      %3171 = vmatpush1.msra.mxu0 0.0
      %3172 = vmatprep.subr.mxu0 0.0
      %3173 = vmatpush1.msra.mxu0 0.0
      %3174 = vmatprep.subr.mxu0 0.0
      %3175 = vmatpush1.msra.mxu0 0.0
      %3176 = vmatprep.subr.mxu0 0.0
      %3177 = vmatpush1.msra.mxu0 0.0
      %3178 = vmatprep.subr.mxu0 0.0
      %3179 = vmatpush1.msra.mxu0 0.0
      %3180 = vmatprep.subr.mxu0 0.0
      %3181 = vmatpush1.msra.mxu0 0.0
      %3182 = vmatprep.subr.mxu0 0.0
      %3183 = vmatpush1.msra.mxu0 0.0
      %3184 = vmatprep.subr.mxu0 0.0
      %3185 = vmatpush1.msra.mxu0 0.0
      %3186 = vmatprep.subr.mxu0 0.0
      %3187 = vmatpush1.msra.mxu0 0.0
      %3188 = vmatprep.subr.mxu0 0.0
      %3189 = vmatpush1.msra.mxu0 0.0
      %3190 = vmatprep.subr.mxu0 0.0
      %3191 = vmatpush1.msra.mxu0 0.0
      %3192 = vmatprep.subr.mxu0 0.0
      %3193 = vmatpush1.msra.mxu0 0.0
      %3194 = vmatprep.subr.mxu0 0.0
      %3195 = vmatpush1.msra.mxu0 0.0
      %3196 = vmatprep.subr.mxu0 0.0
      %3197 = vmatpush1.msra.mxu0 0.0
      %3198 = vmatprep.subr.mxu0 0.0
      %3199 = vmatpush1.msra.mxu0 0.0
      %3200 = vmatprep.mubr.f32.mxu0 0.0
      %3201 = vmatmul.mubr.f32.gmra.mrb[0].mxu0 %v2125
      %v3202 = vpop.f32.mrb[0].mxu0
      %v3203 = vadd.f32 %v2869, %v3202
      %v3204 = vpop.f32.mrb[0].mxu0
      %3205 = vmatprep.mubr.f32.mxu0 0.0
      %3206 = vmatmul.mubr.f32.gmra.mrb[0].mxu0 %v2128
      %v3207 = vpop.f32.mrb[0].mxu0
      %v3208 = vadd.f32 %v2869, %v3207
      %v3209 = vpop.f32.mrb[0].mxu0
      %3210 = vmatprep.mubr.f32.mxu0 0.0
      %3211 = vmatmul.mubr.f32.gmra.mrb[0].mxu0 %v2131
      %v3212 = vpop.f32.mrb[0].mxu0
      %v3213 = vadd.f32 %v2869, %v3212
      %v3214 = vpop.f32.mrb[0].mxu0
      %3215 = vmatprep.mubr.f32.mxu0 0.0
      %3216 = vmatmul.mubr.f32.gmra.mrb[0].mxu0 %v2134
      %v3217 = vpop.f32.mrb[0].mxu0
      %v3218 = vadd.f32 %v2869, %v3217
      %v3219 = vpop.f32.mrb[0].mxu0
      %3220 = vmatprep.mubr.f32.mxu0 0.0
      %3221 = vmatmul.mubr.f32.gmra.mrb[0].mxu0 %v2137
      %v3222 = vpop.f32.mrb[0].mxu0
      %v3223 = vadd.f32 %v2869, %v3222
      %v3224 = vpop.f32.mrb[0].mxu0
      %3225 = vmatprep.mubr.f32.mxu0 0.0
      %3226 = vmatmul.mubr.f32.gmra.mrb[0].mxu0 %v2140
      %v3227 = vpop.f32.mrb[0].mxu0
      %v3228 = vadd.f32 %v2869, %v3227
      %v3229 = vpop.f32.mrb[0].mxu0
      %3230 = vmatprep.mubr.f32.mxu0 0.0
      %3231 = vmatmul.mubr.f32.gmra.mrb[0].mxu0 %v2143
      %v3232 = vpop.f32.mrb[0].mxu0
      %v3233 = vadd.f32 %v2869, %v3232
      %v3234 = vpop.f32.mrb[0].mxu0
      %3235 = vmatprep.mubr.f32.mxu0 0.0
      %3236 = vmatmul.mubr.f32.gmra.mrb[0].mxu0 %v2146
      %v3237 = vpop.f32.mrb[0].mxu0
      %v3238 = vadd.f32 %v2869, %v3237
      %v3239 = vpop.f32.mrb[0].mxu0
      %3240 = vdwg.mxu0
      %v3241 = vmax.f32 %v3203, 0.0
      %v3242 = vmax.f32 %v3208, 0.0
      %v3243 = vmax.f32 %v3213, 0.0
      %v3244 = vmax.f32 %v3218, 0.0
      %v3245 = vmax.f32 %v3223, 0.0
      %v3246 = vmax.f32 %v3228, 0.0
      %v3247 = vmax.f32 %v3233, 0.0
      %v3248 = vmax.f32 %v3238, 0.0
      %3249 = vmatprep.subr.mxu0 0.0
      %3250 = vmatpush1.msra.mxu0 %v3241
      %3251 = vmatprep.subr.mxu0 0.0
      %3252 = vmatpush1.msra.mxu0 %v3242
      %3253 = vmatprep.subr.mxu0 0.0
      %3254 = vmatpush1.msra.mxu0 %v3243
      %3255 = vmatprep.subr.mxu0 0.0
      %3256 = vmatpush1.msra.mxu0 %v3244
      %3257 = vmatprep.subr.mxu0 0.0
      %3258 = vmatpush1.msra.mxu0 %v3245
      %3259 = vmatprep.subr.mxu0 0.0
      %3260 = vmatpush1.msra.mxu0 %v3246
      %3261 = vmatprep.subr.mxu0 0.0
      %3262 = vmatpush1.msra.mxu0 %v3247
      %3263 = vmatprep.subr.mxu0 0.0
      %3264 = vmatpush1.msra.mxu0 %v3248
      %3265 = vmatprep.subr.mxu0 0.0
      %3266 = vmatpush1.msra.mxu0 0.0
      %3267 = vmatprep.subr.mxu0 0.0
      %3268 = vmatpush1.msra.mxu0 0.0
      %3269 = vmatprep.subr.mxu0 0.0
      %3270 = vmatpush1.msra.mxu0 0.0
      %3271 = vmatprep.subr.mxu0 0.0
      %3272 = vmatpush1.msra.mxu0 0.0
      %3273 = vmatprep.subr.mxu0 0.0
      %3274 = vmatpush1.msra.mxu0 0.0
      %3275 = vmatprep.subr.mxu0 0.0
      %3276 = vmatpush1.msra.mxu0 0.0
      %3277 = vmatprep.subr.mxu0 0.0
      %3278 = vmatpush1.msra.mxu0 0.0
      %3279 = vmatprep.subr.mxu0 0.0
      %3280 = vmatpush1.msra.mxu0 0.0
      %3281 = vmatprep.subr.mxu0 0.0
      %3282 = vmatpush1.msra.mxu0 0.0
      %3283 = vmatprep.subr.mxu0 0.0
      %3284 = vmatpush1.msra.mxu0 0.0
      %3285 = vmatprep.subr.mxu0 0.0
      %3286 = vmatpush1.msra.mxu0 0.0
      %3287 = vmatprep.subr.mxu0 0.0
      %3288 = vmatpush1.msra.mxu0 0.0
      %3289 = vmatprep.subr.mxu0 0.0
      %3290 = vmatpush1.msra.mxu0 0.0
      %3291 = vmatprep.subr.mxu0 0.0
      %3292 = vmatpush1.msra.mxu0 0.0
      %3293 = vmatprep.subr.mxu0 0.0
      %3294 = vmatpush1.msra.mxu0 0.0
      %3295 = vmatprep.subr.mxu0 0.0
      %3296 = vmatpush1.msra.mxu0 0.0
      %3297 = vmatprep.subr.mxu0 0.0
      %3298 = vmatpush1.msra.mxu0 0.0
      %3299 = vmatprep.subr.mxu0 0.0
      %3300 = vmatpush1.msra.mxu0 0.0
      %3301 = vmatprep.subr.mxu0 0.0
      %3302 = vmatpush1.msra.mxu0 0.0
      %3303 = vmatprep.subr.mxu0 0.0
      %3304 = vmatpush1.msra.mxu0 0.0
      %3305 = vmatprep.subr.mxu0 0.0
      %3306 = vmatpush1.msra.mxu0 0.0
      %3307 = vmatprep.subr.mxu0 0.0
      %3308 = vmatpush1.msra.mxu0 0.0
      %3309 = vmatprep.subr.mxu0 0.0
      %3310 = vmatpush1.msra.mxu0 0.0
      %3311 = vmatprep.subr.mxu0 0.0
      %3312 = vmatpush1.msra.mxu0 0.0
      %3313 = vmatprep.mubr.f32.mxu0 0.0
      %3314 = vmatmul.mubr.f32.gmra.mrb[0].mxu0 %v1973
      %v3315 = vpop.f32.mrb[0].mxu0
      %v3316 = vadd.f32 0.0, %v3315
      %v3317 = vpop.f32.mrb[0].mxu0
      %3318 = vdwg.mxu0
      %v3319 = vmul.f32 %v3316, 0.0625
      %3320 = vmatprep.subr.mxu0 0.0
      %3321 = vmatpush1.xpose.msra.mxu0 %v2862
      %3322 = vmatprep.subr.mxu0 0.0
      %3323 = vmatpush1.xpose.msra.mxu0 0.0
      %3324 = vmatprep.subr.mxu0 0.0
      %3325 = vmatpush1.xpose.msra.mxu0 0.0
      %3326 = vmatprep.subr.mxu0 0.0
      %3327 = vmatpush1.xpose.msra.mxu0 0.0
      %3328 = vmatprep.subr.mxu0 0.0
      %3329 = vmatpush1.xpose.msra.mxu0 0.0
      %3330 = vmatprep.subr.mxu0 0.0
      %3331 = vmatpush1.xpose.msra.mxu0 0.0
      %3332 = vmatprep.subr.mxu0 0.0
      %3333 = vmatpush1.xpose.msra.mxu0 0.0
      %3334 = vmatprep.subr.mxu0 0.0
      %3335 = vmatpush1.xpose.msra.mxu0 0.0
      %3336 = vmatprep.subr.mxu0 0.0
      %3337 = vmatpush1.xpose.msra.mxu0 0.0
      %3338 = vmatprep.subr.mxu0 0.0
      %3339 = vmatpush1.xpose.msra.mxu0 0.0
      %3340 = vmatprep.subr.mxu0 0.0
      %3341 = vmatpush1.xpose.msra.mxu0 0.0
      %3342 = vmatprep.subr.mxu0 0.0
      %3343 = vmatpush1.xpose.msra.mxu0 0.0
      %3344 = vmatprep.subr.mxu0 0.0
      %3345 = vmatpush1.xpose.msra.mxu0 0.0
      %3346 = vmatprep.subr.mxu0 0.0
      %3347 = vmatpush1.xpose.msra.mxu0 0.0
      %3348 = vmatprep.subr.mxu0 0.0
      %3349 = vmatpush1.xpose.msra.mxu0 0.0
      %3350 = vmatprep.subr.mxu0 0.0
      %3351 = vmatpush1.xpose.msra.mxu0 0.0
      %3352 = vmatprep.subr.mxu0 0.0
      %3353 = vmatpush1.xpose.msra.mxu0 0.0
      %3354 = vmatprep.subr.mxu0 0.0
      %3355 = vmatpush1.xpose.msra.mxu0 0.0
      %3356 = vmatprep.subr.mxu0 0.0
      %3357 = vmatpush1.xpose.msra.mxu0 0.0
      %3358 = vmatprep.subr.mxu0 0.0
      %3359 = vmatpush1.xpose.msra.mxu0 0.0
      %3360 = vmatprep.subr.mxu0 0.0
      %3361 = vmatpush1.xpose.msra.mxu0 0.0
      %3362 = vmatprep.subr.mxu0 0.0
      %3363 = vmatpush1.xpose.msra.mxu0 0.0
      %3364 = vmatprep.subr.mxu0 0.0
      %3365 = vmatpush1.xpose.msra.mxu0 0.0
      %3366 = vmatprep.subr.mxu0 0.0
      %3367 = vmatpush1.xpose.msra.mxu0 0.0
      %3368 = vmatprep.subr.mxu0 0.0
      %3369 = vmatpush1.xpose.msra.mxu0 0.0
      %3370 = vmatprep.subr.mxu0 0.0
      %3371 = vmatpush1.xpose.msra.mxu0 0.0
      %3372 = vmatprep.subr.mxu0 0.0
      %3373 = vmatpush1.xpose.msra.mxu0 0.0
      %3374 = vmatprep.subr.mxu0 0.0
      %3375 = vmatpush1.xpose.msra.mxu0 0.0
      %3376 = vmatprep.subr.mxu0 0.0
      %3377 = vmatpush1.xpose.msra.mxu0 0.0
      %3378 = vmatprep.subr.mxu0 0.0
      %3379 = vmatpush1.xpose.msra.mxu0 0.0
      %3380 = vmatprep.subr.mxu0 0.0
      %3381 = vmatpush1.xpose.msra.mxu0 0.0
      %3382 = vmatprep.subr.mxu0 0.0
      %3383 = vmatpush1.xpose.msra.mxu0 0.0
      %3384 = vmatprep.mubr.f32.mxu0 0.0
      %3385 = vmatmul.mubr.f32.gmra.mrb[0].mxu0 %v3319
      %v3386 = vpop.f32.mrb[0].mxu0
      %v3387 = vadd.f32 %v3062, %v3386
      %v3388 = vpop.f32.mrb[0].mxu0
      %3389 = vdwg.mxu0
      %v3390 = vsel %vm2122, %v3387, -inf
      %3391 = vmax.xlane.f32.xlu0 %v3390
      %v3392 = vpop.xlane.xlu0 %3391
      %v3393 = vsub.f32 %v3387, %v3392
      %v3394 = vmul.f32 %v3393, 1.442695
      %v3395 = vpow.pop %v3394
      %v3396 = vsel %vm2122, %v3395, 0.0
      %3397 = vadd.xlane.f32.xlu0 %v3396
      %v3398 = vpop.xlane.xlu0 %3397
      %v3399 = vrcp.pop %v3398
      %v3400 = vmul.f32 %v3395, %v3399
      %v3401 = vsub.f32 %v3400, %v372
      %v3402 = vmul.f32 %v3401, 0.25
      %3403 = vxpose.xlu0.b32.start [1/16] %v3402, 128
      %3404 = vxpose.xlu0.b32.cont [2/16] 0.0, 128
      %3405 = vxpose.xlu0.b32.cont [3/16] 0.0, 128
      %3406 = vxpose.xlu0.b32.cont [4/16] 0.0, 128
      %3407 = vxpose.xlu0.b32.cont [5/16] 0.0, 128
      %3408 = vxpose.xlu0.b32.cont [6/16] 0.0, 128
      %3409 = vxpose.xlu0.b32.cont [7/16] 0.0, 128
      %3410 = vxpose.xlu0.b32.cont [8/16] 0.0, 128
      %3411 = vxpose.xlu0.b32.cont [9/16] 0.0, 128
      %3412 = vxpose.xlu0.b32.cont [10/16] 0.0, 128
      %3413 = vxpose.xlu0.b32.cont [11/16] 0.0, 128
      %3414 = vxpose.xlu0.b32.cont [12/16] 0.0, 128
      %3415 = vxpose.xlu0.b32.cont [13/16] 0.0, 128
      %3416 = vxpose.xlu0.b32.cont [14/16] 0.0, 128
      %3417 = vxpose.xlu0.b32.cont [15/16] 0.0, 128
      %3418 = vxpose.xlu0.b32.end [16/16] 0.0, 128
      %v3419 = vpop.trf.xlu0
      %v3420 = vpop.trf.xlu0
      %v3421 = vpop.trf.xlu0
      %v3422 = vpop.trf.xlu0
      %v3423 = vpop.trf.xlu0
      %v3424 = vpop.trf.xlu0
      %v3425 = vpop.trf.xlu0
      %v3426 = vpop.trf.xlu0
      %v3427 = vpop.trf.xlu0
      %v3428 = vpop.trf.xlu0
      %v3429 = vpop.trf.xlu0
      %v3430 = vpop.trf.xlu0
      %v3431 = vpop.trf.xlu0
      %v3432 = vpop.trf.xlu0
      %v3433 = vpop.trf.xlu0
      %v3434 = vpop.trf.xlu0
      %v3436 = vsel %vm1155, %v3419, 0
      %v3439 = vsel %vm2450, %v3319, 0
      %3441 = vmatprep.subr.mxu0 0.0
      %3442 = vmatpush1.msra.mxu0 %v3439
      %3443 = vmatprep.subr.mxu0 0.0
      %3444 = vmatpush1.msra.mxu0 0.0
      %3445 = vmatprep.subr.mxu0 0.0
      %3446 = vmatpush1.msra.mxu0 0.0
      %3447 = vmatprep.subr.mxu0 0.0
      %3448 = vmatpush1.msra.mxu0 0.0
      %3449 = vmatprep.subr.mxu0 0.0
      %3450 = vmatpush1.msra.mxu0 0.0
      %3451 = vmatprep.subr.mxu0 0.0
      %3452 = vmatpush1.msra.mxu0 0.0
      %3453 = vmatprep.subr.mxu0 0.0
      %3454 = vmatpush1.msra.mxu0 0.0
      %3455 = vmatprep.subr.mxu0 0.0
      %3456 = vmatpush1.msra.mxu0 0.0
      %3457 = vmatprep.subr.mxu0 0.0
      %3458 = vmatpush1.msra.mxu0 0.0
      %3459 = vmatprep.subr.mxu0 0.0
      %3460 = vmatpush1.msra.mxu0 0.0
      %3461 = vmatprep.subr.mxu0 0.0
      %3462 = vmatpush1.msra.mxu0 0.0
      %3463 = vmatprep.subr.mxu0 0.0
      %3464 = vmatpush1.msra.mxu0 0.0
      %3465 = vmatprep.subr.mxu0 0.0
      %3466 = vmatpush1.msra.mxu0 0.0
      %3467 = vmatprep.subr.mxu0 0.0
      %3468 = vmatpush1.msra.mxu0 0.0
      %3469 = vmatprep.subr.mxu0 0.0
      %3470 = vmatpush1.msra.mxu0 0.0
      %3471 = vmatprep.subr.mxu0 0.0
      %3472 = vmatpush1.msra.mxu0 0.0
      %3473 = vmatprep.subr.mxu0 0.0
      %3474 = vmatpush1.msra.mxu0 0.0
      %3475 = vmatprep.subr.mxu0 0.0
      %3476 = vmatpush1.msra.mxu0 0.0
      %3477 = vmatprep.subr.mxu0 0.0
      %3478 = vmatpush1.msra.mxu0 0.0
      %3479 = vmatprep.subr.mxu0 0.0
      %3480 = vmatpush1.msra.mxu0 0.0
      %3481 = vmatprep.subr.mxu0 0.0
      %3482 = vmatpush1.msra.mxu0 0.0
      %3483 = vmatprep.subr.mxu0 0.0
      %3484 = vmatpush1.msra.mxu0 0.0
      %3485 = vmatprep.subr.mxu0 0.0
      %3486 = vmatpush1.msra.mxu0 0.0
      %3487 = vmatprep.subr.mxu0 0.0
      %3488 = vmatpush1.msra.mxu0 0.0
      %3489 = vmatprep.subr.mxu0 0.0
      %3490 = vmatpush1.msra.mxu0 0.0
      %3491 = vmatprep.subr.mxu0 0.0
      %3492 = vmatpush1.msra.mxu0 0.0
      %3493 = vmatprep.subr.mxu0 0.0
      %3494 = vmatpush1.msra.mxu0 0.0
      %3495 = vmatprep.subr.mxu0 0.0
      %3496 = vmatpush1.msra.mxu0 0.0
      %3497 = vmatprep.subr.mxu0 0.0
      %3498 = vmatpush1.msra.mxu0 0.0
      %3499 = vmatprep.subr.mxu0 0.0
      %3500 = vmatpush1.msra.mxu0 0.0
      %3501 = vmatprep.subr.mxu0 0.0
      %3502 = vmatpush1.msra.mxu0 0.0
      %3503 = vmatprep.subr.mxu0 0.0
      %3504 = vmatpush1.msra.mxu0 0.0
      %3505 = vmatprep.mubr.f32.mxu0 0.0
      %3506 = vmatmul.mubr.f32.gmra.mrb[0].mxu0 %v3436
      %v3507 = vpop.f32.mrb[0].mxu0
      %v3508 = vadd.f32 0.0, %v3507
      %v3509 = vpop.f32.mrb[0].mxu0
      %3510 = vdwg.mxu0
      %v3511 = vsel %vm2122, %v3402, 0.0
      %v3512 = vrot.slane %v3511, 4
      %v3513 = vadd.f32 %v3511, %v3512
      %v3514 = vrot.slane %v3513, 2
      %v3515 = vadd.f32 %v3513, %v3514
      %v3516 = vrot.slane %v3515, 1
      %v3517 = vadd.f32 %v3515, %v3516
      %v3519 = vsel %vm1155, %v3402, 0
      %v3522 = vsel %vm2450, %v2862, 0
      %3524 = vmatprep.subr.mxu0 0.0
      %3525 = vmatpush1.msra.mxu0 %v3522
      %3526 = vmatprep.subr.mxu0 0.0
      %3527 = vmatpush1.msra.mxu0 0.0
      %3528 = vmatprep.subr.mxu0 0.0
      %3529 = vmatpush1.msra.mxu0 0.0
      %3530 = vmatprep.subr.mxu0 0.0
      %3531 = vmatpush1.msra.mxu0 0.0
      %3532 = vmatprep.subr.mxu0 0.0
      %3533 = vmatpush1.msra.mxu0 0.0
      %3534 = vmatprep.subr.mxu0 0.0
      %3535 = vmatpush1.msra.mxu0 0.0
      %3536 = vmatprep.subr.mxu0 0.0
      %3537 = vmatpush1.msra.mxu0 0.0
      %3538 = vmatprep.subr.mxu0 0.0
      %3539 = vmatpush1.msra.mxu0 0.0
      %3540 = vmatprep.subr.mxu0 0.0
      %3541 = vmatpush1.msra.mxu0 0.0
      %3542 = vmatprep.subr.mxu0 0.0
      %3543 = vmatpush1.msra.mxu0 0.0
      %3544 = vmatprep.subr.mxu0 0.0
      %3545 = vmatpush1.msra.mxu0 0.0
      %3546 = vmatprep.subr.mxu0 0.0
      %3547 = vmatpush1.msra.mxu0 0.0
      %3548 = vmatprep.subr.mxu0 0.0
      %3549 = vmatpush1.msra.mxu0 0.0
      %3550 = vmatprep.subr.mxu0 0.0
      %3551 = vmatpush1.msra.mxu0 0.0
      %3552 = vmatprep.subr.mxu0 0.0
      %3553 = vmatpush1.msra.mxu0 0.0
      %3554 = vmatprep.subr.mxu0 0.0
      %3555 = vmatpush1.msra.mxu0 0.0
      %3556 = vmatprep.subr.mxu0 0.0
      %3557 = vmatpush1.msra.mxu0 0.0
      %3558 = vmatprep.subr.mxu0 0.0
      %3559 = vmatpush1.msra.mxu0 0.0
      %3560 = vmatprep.subr.mxu0 0.0
      %3561 = vmatpush1.msra.mxu0 0.0
      %3562 = vmatprep.subr.mxu0 0.0
      %3563 = vmatpush1.msra.mxu0 0.0
      %3564 = vmatprep.subr.mxu0 0.0
      %3565 = vmatpush1.msra.mxu0 0.0
      %3566 = vmatprep.subr.mxu0 0.0
      %3567 = vmatpush1.msra.mxu0 0.0
      %3568 = vmatprep.subr.mxu0 0.0
      %3569 = vmatpush1.msra.mxu0 0.0
      %3570 = vmatprep.subr.mxu0 0.0
      %3571 = vmatpush1.msra.mxu0 0.0
      %3572 = vmatprep.subr.mxu0 0.0
      %3573 = vmatpush1.msra.mxu0 0.0
      %3574 = vmatprep.subr.mxu0 0.0
      %3575 = vmatpush1.msra.mxu0 0.0
      %3576 = vmatprep.subr.mxu0 0.0
      %3577 = vmatpush1.msra.mxu0 0.0
      %3578 = vmatprep.subr.mxu0 0.0
      %3579 = vmatpush1.msra.mxu0 0.0
      %3580 = vmatprep.subr.mxu0 0.0
      %3581 = vmatpush1.msra.mxu0 0.0
      %3582 = vmatprep.subr.mxu0 0.0
      %3583 = vmatpush1.msra.mxu0 0.0
      %3584 = vmatprep.subr.mxu0 0.0
      %3585 = vmatpush1.msra.mxu0 0.0
      %3586 = vmatprep.subr.mxu0 0.0
      %3587 = vmatpush1.msra.mxu0 0.0
      %3588 = vmatprep.mubr.f32.mxu0 0.0
      %3589 = vmatmul.mubr.f32.gmra.mrb[0].mxu0 %v3519
      %v3590 = vpop.f32.mrb[0].mxu0
      %v3591 = vadd.f32 0.0, %v3590
      %v3592 = vpop.f32.mrb[0].mxu0
      %3593 = vdwg.mxu0
      %v3595 = vsel %vm2450, %v3591, 0
      %3597 = vmatprep.subr.mxu0 0.0
      %3598 = vmatpush1.msra.mxu0 %v3595
      %3599 = vmatprep.subr.mxu0 0.0
      %3600 = vmatpush1.msra.mxu0 0.0
      %3601 = vmatprep.subr.mxu0 0.0
      %3602 = vmatpush1.msra.mxu0 0.0
      %3603 = vmatprep.subr.mxu0 0.0
      %3604 = vmatpush1.msra.mxu0 0.0
      %3605 = vmatprep.subr.mxu0 0.0
      %3606 = vmatpush1.msra.mxu0 0.0
      %3607 = vmatprep.subr.mxu0 0.0
      %3608 = vmatpush1.msra.mxu0 0.0
      %3609 = vmatprep.subr.mxu0 0.0
      %3610 = vmatpush1.msra.mxu0 0.0
      %3611 = vmatprep.subr.mxu0 0.0
      %3612 = vmatpush1.msra.mxu0 0.0
      %3613 = vmatprep.subr.mxu0 0.0
      %3614 = vmatpush1.msra.mxu0 0.0
      %3615 = vmatprep.subr.mxu0 0.0
      %3616 = vmatpush1.msra.mxu0 0.0
      %3617 = vmatprep.subr.mxu0 0.0
      %3618 = vmatpush1.msra.mxu0 0.0
      %3619 = vmatprep.subr.mxu0 0.0
      %3620 = vmatpush1.msra.mxu0 0.0
      %3621 = vmatprep.subr.mxu0 0.0
      %3622 = vmatpush1.msra.mxu0 0.0
      %3623 = vmatprep.subr.mxu0 0.0
      %3624 = vmatpush1.msra.mxu0 0.0
      %3625 = vmatprep.subr.mxu0 0.0
      %3626 = vmatpush1.msra.mxu0 0.0
      %3627 = vmatprep.subr.mxu0 0.0
      %3628 = vmatpush1.msra.mxu0 0.0
      %3629 = vmatprep.subr.mxu0 0.0
      %3630 = vmatpush1.msra.mxu0 0.0
      %3631 = vmatprep.subr.mxu0 0.0
      %3632 = vmatpush1.msra.mxu0 0.0
      %3633 = vmatprep.subr.mxu0 0.0
      %3634 = vmatpush1.msra.mxu0 0.0
      %3635 = vmatprep.subr.mxu0 0.0
      %3636 = vmatpush1.msra.mxu0 0.0
      %3637 = vmatprep.subr.mxu0 0.0
      %3638 = vmatpush1.msra.mxu0 0.0
      %3639 = vmatprep.subr.mxu0 0.0
      %3640 = vmatpush1.msra.mxu0 0.0
      %3641 = vmatprep.subr.mxu0 0.0
      %3642 = vmatpush1.msra.mxu0 0.0
      %3643 = vmatprep.subr.mxu0 0.0
      %3644 = vmatpush1.msra.mxu0 0.0
      %3645 = vmatprep.subr.mxu0 0.0
      %3646 = vmatpush1.msra.mxu0 0.0
      %3647 = vmatprep.subr.mxu0 0.0
      %3648 = vmatpush1.msra.mxu0 0.0
      %3649 = vmatprep.subr.mxu0 0.0
      %3650 = vmatpush1.msra.mxu0 0.0
      %3651 = vmatprep.subr.mxu0 0.0
      %3652 = vmatpush1.msra.mxu0 0.0
      %3653 = vmatprep.subr.mxu0 0.0
      %3654 = vmatpush1.msra.mxu0 0.0
      %3655 = vmatprep.subr.mxu0 0.0
      %3656 = vmatpush1.msra.mxu0 0.0
      %3657 = vmatprep.subr.mxu0 0.0
      %3658 = vmatpush1.msra.mxu0 0.0
      %3659 = vmatprep.subr.mxu0 0.0
      %3660 = vmatpush1.msra.mxu0 0.0
      %3661 = vmatprep.mubr.f32.mxu0 0.0
      %3662 = vmatmul.mubr.f32.gmra.mrb[0].mxu0 %v1157
      %v3663 = vpop.f32.mrb[0].mxu0
      %v3664 = vadd.f32 0.0, %v3663
      %v3665 = vpop.f32.mrb[0].mxu0
      %3666 = vmatprep.mubr.f32.mxu0 0.0
      %3667 = vmatmul.mubr.f32.gmra.mrb[0].mxu0 %v1160
      %v3668 = vpop.f32.mrb[0].mxu0
      %v3669 = vadd.f32 0.0, %v3668
      %v3670 = vpop.f32.mrb[0].mxu0
      %3671 = vmatprep.mubr.f32.mxu0 0.0
      %3672 = vmatmul.mubr.f32.gmra.mrb[0].mxu0 %v1163
      %v3673 = vpop.f32.mrb[0].mxu0
      %v3674 = vadd.f32 0.0, %v3673
      %v3675 = vpop.f32.mrb[0].mxu0
      %3676 = vmatprep.mubr.f32.mxu0 0.0
      %3677 = vmatmul.mubr.f32.gmra.mrb[0].mxu0 %v1166
      %v3678 = vpop.f32.mrb[0].mxu0
      %v3679 = vadd.f32 0.0, %v3678
      %v3680 = vpop.f32.mrb[0].mxu0
      %3681 = vmatprep.mubr.f32.mxu0 0.0
      %3682 = vmatmul.mubr.f32.gmra.mrb[0].mxu0 %v1169
      %v3683 = vpop.f32.mrb[0].mxu0
      %v3684 = vadd.f32 0.0, %v3683
      %v3685 = vpop.f32.mrb[0].mxu0
      %3686 = vmatprep.mubr.f32.mxu0 0.0
      %3687 = vmatmul.mubr.f32.gmra.mrb[0].mxu0 %v1172
      %v3688 = vpop.f32.mrb[0].mxu0
      %v3689 = vadd.f32 0.0, %v3688
      %v3690 = vpop.f32.mrb[0].mxu0
      %3691 = vmatprep.mubr.f32.mxu0 0.0
      %3692 = vmatmul.mubr.f32.gmra.mrb[0].mxu0 %v1175
      %v3693 = vpop.f32.mrb[0].mxu0
      %v3694 = vadd.f32 0.0, %v3693
      %v3695 = vpop.f32.mrb[0].mxu0
      %3696 = vmatprep.mubr.f32.mxu0 0.0
      %3697 = vmatmul.mubr.f32.gmra.mrb[0].mxu0 %v1178
      %v3698 = vpop.f32.mrb[0].mxu0
      %v3699 = vadd.f32 0.0, %v3698
      %v3700 = vpop.f32.mrb[0].mxu0
      %3701 = vdwg.mxu0
      %v3702 = vmul.f32 %v3664, 0.0625
      %v3703 = vmul.f32 %v3669, 0.0625
      %v3704 = vmul.f32 %v3674, 0.0625
      %v3705 = vmul.f32 %v3679, 0.0625
      %v3706 = vmul.f32 %v3684, 0.0625
      %v3707 = vmul.f32 %v3689, 0.0625
      %v3708 = vmul.f32 %v3694, 0.0625
      %v3709 = vmul.f32 %v3699, 0.0625
      %vm3710 = vcmp.gt.f32.partialorder %v3203, 0.0
      %vm3711 = vcmp.gt.f32.partialorder %v3208, 0.0
      %vm3712 = vcmp.gt.f32.partialorder %v3213, 0.0
      %vm3713 = vcmp.gt.f32.partialorder %v3218, 0.0
      %vm3714 = vcmp.gt.f32.partialorder %v3223, 0.0
      %vm3715 = vcmp.gt.f32.partialorder %v3228, 0.0
      %vm3716 = vcmp.gt.f32.partialorder %v3233, 0.0
      %vm3717 = vcmp.gt.f32.partialorder %v3238, 0.0
      %v3718 = vsel %vm3710, %v3702, 0.0
      %v3719 = vsel %vm3711, %v3703, 0.0
      %v3720 = vsel %vm3712, %v3704, 0.0
      %v3721 = vsel %vm3713, %v3705, 0.0
      %v3722 = vsel %vm3714, %v3706, 0.0
      %v3723 = vsel %vm3715, %v3707, 0.0
      %v3724 = vsel %vm3716, %v3708, 0.0
      %v3725 = vsel %vm3717, %v3709, 0.0
      %3726 = vmatprep.subr.mxu0 0.0
      %3727 = vmatpush1.msra.mxu0 %v3718
      %3728 = vmatprep.subr.mxu0 0.0
      %3729 = vmatpush1.msra.mxu0 %v3719
      %3730 = vmatprep.subr.mxu0 0.0
      %3731 = vmatpush1.msra.mxu0 %v3720
      %3732 = vmatprep.subr.mxu0 0.0
      %3733 = vmatpush1.msra.mxu0 %v3721
      %3734 = vmatprep.subr.mxu0 0.0
      %3735 = vmatpush1.msra.mxu0 %v3722
      %3736 = vmatprep.subr.mxu0 0.0
      %3737 = vmatpush1.msra.mxu0 %v3723
      %3738 = vmatprep.subr.mxu0 0.0
      %3739 = vmatpush1.msra.mxu0 %v3724
      %3740 = vmatprep.subr.mxu0 0.0
      %3741 = vmatpush1.msra.mxu0 %v3725
      %3742 = vmatprep.subr.mxu0 0.0
      %3743 = vmatpush1.msra.mxu0 0.0
      %3744 = vmatprep.subr.mxu0 0.0
      %3745 = vmatpush1.msra.mxu0 0.0
      %3746 = vmatprep.subr.mxu0 0.0
      %3747 = vmatpush1.msra.mxu0 0.0
      %3748 = vmatprep.subr.mxu0 0.0
      %3749 = vmatpush1.msra.mxu0 0.0
      %3750 = vmatprep.subr.mxu0 0.0
      %3751 = vmatpush1.msra.mxu0 0.0
      %3752 = vmatprep.subr.mxu0 0.0
      %3753 = vmatpush1.msra.mxu0 0.0
      %3754 = vmatprep.subr.mxu0 0.0
      %3755 = vmatpush1.msra.mxu0 0.0
      %3756 = vmatprep.subr.mxu0 0.0
      %3757 = vmatpush1.msra.mxu0 0.0
      %3758 = vmatprep.subr.mxu0 0.0
      %3759 = vmatpush1.msra.mxu0 0.0
      %3760 = vmatprep.subr.mxu0 0.0
      %3761 = vmatpush1.msra.mxu0 0.0
      %3762 = vmatprep.subr.mxu0 0.0
      %3763 = vmatpush1.msra.mxu0 0.0
      %3764 = vmatprep.subr.mxu0 0.0
      %3765 = vmatpush1.msra.mxu0 0.0
      %3766 = vmatprep.subr.mxu0 0.0
      %3767 = vmatpush1.msra.mxu0 0.0
      %3768 = vmatprep.subr.mxu0 0.0
      %3769 = vmatpush1.msra.mxu0 0.0
      %3770 = vmatprep.subr.mxu0 0.0
      %3771 = vmatpush1.msra.mxu0 0.0
      %3772 = vmatprep.subr.mxu0 0.0
      %3773 = vmatpush1.msra.mxu0 0.0
      %3774 = vmatprep.subr.mxu0 0.0
      %3775 = vmatpush1.msra.mxu0 0.0
      %3776 = vmatprep.subr.mxu0 0.0
      %3777 = vmatpush1.msra.mxu0 0.0
      %3778 = vmatprep.subr.mxu0 0.0
      %3779 = vmatpush1.msra.mxu0 0.0
      %3780 = vmatprep.subr.mxu0 0.0
      %3781 = vmatpush1.msra.mxu0 0.0
      %3782 = vmatprep.subr.mxu0 0.0
      %3783 = vmatpush1.msra.mxu0 0.0
      %3784 = vmatprep.subr.mxu0 0.0
      %3785 = vmatpush1.msra.mxu0 0.0
      %3786 = vmatprep.subr.mxu0 0.0
      %3787 = vmatpush1.msra.mxu0 0.0
      %3788 = vmatprep.subr.mxu0 0.0
      %3789 = vmatpush1.msra.mxu0 0.0
      %3790 = vmatprep.mubr.f32.mxu0 0.0
      %3791 = vmatmul.mubr.f32.gmra.mrb[0].mxu0 %v2772
      %v3792 = vpop.f32.mrb[0].mxu0
      %v3793 = vadd.f32 0.0, %v3792
      %v3794 = vpop.f32.mrb[0].mxu0
      %3795 = vdwg.mxu0
      %v3796 = vadd.f32 %v3718, %v3719
      %v3797 = vadd.f32 %v3796, %v3720
      %v3798 = vadd.f32 %v3797, %v3721
      %v3799 = vadd.f32 %v3798, %v3722
      %v3800 = vadd.f32 %v3799, %v3723
      %v3801 = vadd.f32 %v3800, %v3724
      %v3802 = vadd.f32 %v3801, %v3725
      %v3803 = vrot.slane %v3802, 4
      %v3804 = vadd.f32 %v3802, %v3803
      %v3805 = vrot.slane %v3804, 2
      %v3806 = vadd.f32 %v3804, %v3805
      %v3807 = vrot.slane %v3806, 1
      %v3808 = vadd.f32 %v3806, %v3807
      %v3809 = vmul.f32 %v3793, 0.001
      %v3810 = vsub.f32 %v2858, %v3809
      %v3811 = vmul.f32 %v3808, 0.001
      %v3812 = vsub.f32 %v2860, %v3811
      %v3813 = vmul.f32 %v3508, 0.001
      %v3814 = vsub.f32 %v2862, %v3813
      %v3815 = vmul.f32 %v3517, 0.001
      %v3816 = vsub.f32 %v2864, %v3815
      %v3818 = vlaneseq
      %v3819 = vshrl.u32 %v3818, 7
      %v3820 = vsub.s32 0, %v3819
      %v3821 = vrot.slane %v3812, %v3820
      %v3824 = vsel %vm1823, %v3810, 0
      %3826 = vmatprep.subr.mxu0 0.0
      %3827 = vmatpush1.msra.mxu0 %v3824
      %3828 = vmatprep.subr.mxu0 0.0
      %3829 = vmatpush1.msra.mxu0 0.0
      %3830 = vmatprep.subr.mxu0 0.0
      %3831 = vmatpush1.msra.mxu0 0.0
      %3832 = vmatprep.subr.mxu0 0.0
      %3833 = vmatpush1.msra.mxu0 0.0
      %3834 = vmatprep.subr.mxu0 0.0
      %3835 = vmatpush1.msra.mxu0 0.0
      %3836 = vmatprep.subr.mxu0 0.0
      %3837 = vmatpush1.msra.mxu0 0.0
      %3838 = vmatprep.subr.mxu0 0.0
      %3839 = vmatpush1.msra.mxu0 0.0
      %3840 = vmatprep.subr.mxu0 0.0
      %3841 = vmatpush1.msra.mxu0 0.0
      %3842 = vmatprep.subr.mxu0 0.0
      %3843 = vmatpush1.msra.mxu0 0.0
      %3844 = vmatprep.subr.mxu0 0.0
      %3845 = vmatpush1.msra.mxu0 0.0
      %3846 = vmatprep.subr.mxu0 0.0
      %3847 = vmatpush1.msra.mxu0 0.0
      %3848 = vmatprep.subr.mxu0 0.0
      %3849 = vmatpush1.msra.mxu0 0.0
      %3850 = vmatprep.subr.mxu0 0.0
      %3851 = vmatpush1.msra.mxu0 0.0
      %3852 = vmatprep.subr.mxu0 0.0
      %3853 = vmatpush1.msra.mxu0 0.0
      %3854 = vmatprep.subr.mxu0 0.0
      %3855 = vmatpush1.msra.mxu0 0.0
      %3856 = vmatprep.subr.mxu0 0.0
      %3857 = vmatpush1.msra.mxu0 0.0
      %3858 = vmatprep.subr.mxu0 0.0
      %3859 = vmatpush1.msra.mxu0 0.0
      %3860 = vmatprep.subr.mxu0 0.0
      %3861 = vmatpush1.msra.mxu0 0.0
      %3862 = vmatprep.subr.mxu0 0.0
      %3863 = vmatpush1.msra.mxu0 0.0
      %3864 = vmatprep.subr.mxu0 0.0
      %3865 = vmatpush1.msra.mxu0 0.0
      %3866 = vmatprep.subr.mxu0 0.0
      %3867 = vmatpush1.msra.mxu0 0.0
      %3868 = vmatprep.subr.mxu0 0.0
      %3869 = vmatpush1.msra.mxu0 0.0
      %3870 = vmatprep.subr.mxu0 0.0
      %3871 = vmatpush1.msra.mxu0 0.0
      %3872 = vmatprep.subr.mxu0 0.0
      %3873 = vmatpush1.msra.mxu0 0.0
      %3874 = vmatprep.subr.mxu0 0.0
      %3875 = vmatpush1.msra.mxu0 0.0
      %3876 = vmatprep.subr.mxu0 0.0
      %3877 = vmatpush1.msra.mxu0 0.0
      %3878 = vmatprep.subr.mxu0 0.0
      %3879 = vmatpush1.msra.mxu0 0.0
      %3880 = vmatprep.subr.mxu0 0.0
      %3881 = vmatpush1.msra.mxu0 0.0
      %3882 = vmatprep.subr.mxu0 0.0
      %3883 = vmatpush1.msra.mxu0 0.0
      %3884 = vmatprep.subr.mxu0 0.0
      %3885 = vmatpush1.msra.mxu0 0.0
      %3886 = vmatprep.subr.mxu0 0.0
      %3887 = vmatpush1.msra.mxu0 0.0
      %3888 = vmatprep.subr.mxu0 0.0
      %3889 = vmatpush1.msra.mxu0 0.0
      %3890 = vmatprep.mubr.f32.mxu0 0.0
      %3891 = vmatmul.mubr.f32.gmra.mrb[0].mxu0 %v1800
      %v3892 = vpop.f32.mrb[0].mxu0
      %v3893 = vadd.f32 %v3821, %v3892
      %v3894 = vpop.f32.mrb[0].mxu0
      %3895 = vmatprep.mubr.f32.mxu0 0.0
      %3896 = vmatmul.mubr.f32.gmra.mrb[0].mxu0 %v1803
      %v3897 = vpop.f32.mrb[0].mxu0
      %v3898 = vadd.f32 %v3821, %v3897
      %v3899 = vpop.f32.mrb[0].mxu0
      %3900 = vmatprep.mubr.f32.mxu0 0.0
      %3901 = vmatmul.mubr.f32.gmra.mrb[0].mxu0 %v1806
      %v3902 = vpop.f32.mrb[0].mxu0
      %v3903 = vadd.f32 %v3821, %v3902
      %v3904 = vpop.f32.mrb[0].mxu0
      %3905 = vmatprep.mubr.f32.mxu0 0.0
      %3906 = vmatmul.mubr.f32.gmra.mrb[0].mxu0 %v1809
      %v3907 = vpop.f32.mrb[0].mxu0
      %v3908 = vadd.f32 %v3821, %v3907
      %v3909 = vpop.f32.mrb[0].mxu0
      %3910 = vmatprep.mubr.f32.mxu0 0.0
      %3911 = vmatmul.mubr.f32.gmra.mrb[0].mxu0 %v1812
      %v3912 = vpop.f32.mrb[0].mxu0
      %v3913 = vadd.f32 %v3821, %v3912
      %v3914 = vpop.f32.mrb[0].mxu0
      %3915 = vmatprep.mubr.f32.mxu0 0.0
      %3916 = vmatmul.mubr.f32.gmra.mrb[0].mxu0 %v1815
      %v3917 = vpop.f32.mrb[0].mxu0
      %v3918 = vadd.f32 %v3821, %v3917
      %v3919 = vpop.f32.mrb[0].mxu0
      %3920 = vmatprep.mubr.f32.mxu0 0.0
      %3921 = vmatmul.mubr.f32.gmra.mrb[0].mxu0 %v1818
      %v3922 = vpop.f32.mrb[0].mxu0
      %v3923 = vadd.f32 %v3821, %v3922
      %v3924 = vpop.f32.mrb[0].mxu0
      %3925 = vmatprep.mubr.f32.mxu0 0.0
      %3926 = vmatmul.mubr.f32.gmra.mrb[0].mxu0 %v1821
      %v3927 = vpop.f32.mrb[0].mxu0
      %v3928 = vadd.f32 %v3821, %v3927
      %v3929 = vpop.f32.mrb[0].mxu0
      %3930 = vdwg.mxu0
      %v3931 = vmax.f32 %v3893, 0.0
      %v3932 = vmax.f32 %v3898, 0.0
      %v3933 = vmax.f32 %v3903, 0.0
      %v3934 = vmax.f32 %v3908, 0.0
      %v3935 = vmax.f32 %v3913, 0.0
      %v3936 = vmax.f32 %v3918, 0.0
      %v3937 = vmax.f32 %v3923, 0.0
      %v3938 = vmax.f32 %v3928, 0.0
      %3939 = vmatprep.subr.mxu0 0.0
      %3940 = vmatpush1.msra.mxu0 %v3931
      %3941 = vmatprep.subr.mxu0 0.0
      %3942 = vmatpush1.msra.mxu0 %v3932
      %3943 = vmatprep.subr.mxu0 0.0
      %3944 = vmatpush1.msra.mxu0 %v3933
      %3945 = vmatprep.subr.mxu0 0.0
      %3946 = vmatpush1.msra.mxu0 %v3934
      %3947 = vmatprep.subr.mxu0 0.0
      %3948 = vmatpush1.msra.mxu0 %v3935
      %3949 = vmatprep.subr.mxu0 0.0
      %3950 = vmatpush1.msra.mxu0 %v3936
      %3951 = vmatprep.subr.mxu0 0.0
      %3952 = vmatpush1.msra.mxu0 %v3937
      %3953 = vmatprep.subr.mxu0 0.0
      %3954 = vmatpush1.msra.mxu0 %v3938
      %3955 = vmatprep.subr.mxu0 0.0
      %3956 = vmatpush1.msra.mxu0 0.0
      %3957 = vmatprep.subr.mxu0 0.0
      %3958 = vmatpush1.msra.mxu0 0.0
      %3959 = vmatprep.subr.mxu0 0.0
      %3960 = vmatpush1.msra.mxu0 0.0
      %3961 = vmatprep.subr.mxu0 0.0
      %3962 = vmatpush1.msra.mxu0 0.0
      %3963 = vmatprep.subr.mxu0 0.0
      %3964 = vmatpush1.msra.mxu0 0.0
      %3965 = vmatprep.subr.mxu0 0.0
      %3966 = vmatpush1.msra.mxu0 0.0
      %3967 = vmatprep.subr.mxu0 0.0
      %3968 = vmatpush1.msra.mxu0 0.0
      %3969 = vmatprep.subr.mxu0 0.0
      %3970 = vmatpush1.msra.mxu0 0.0
      %3971 = vmatprep.subr.mxu0 0.0
      %3972 = vmatpush1.msra.mxu0 0.0
      %3973 = vmatprep.subr.mxu0 0.0
      %3974 = vmatpush1.msra.mxu0 0.0
      %3975 = vmatprep.subr.mxu0 0.0
      %3976 = vmatpush1.msra.mxu0 0.0
      %3977 = vmatprep.subr.mxu0 0.0
      %3978 = vmatpush1.msra.mxu0 0.0
      %3979 = vmatprep.subr.mxu0 0.0
      %3980 = vmatpush1.msra.mxu0 0.0
      %3981 = vmatprep.subr.mxu0 0.0
      %3982 = vmatpush1.msra.mxu0 0.0
      %3983 = vmatprep.subr.mxu0 0.0
      %3984 = vmatpush1.msra.mxu0 0.0
      %3985 = vmatprep.subr.mxu0 0.0
      %3986 = vmatpush1.msra.mxu0 0.0
      %3987 = vmatprep.subr.mxu0 0.0
      %3988 = vmatpush1.msra.mxu0 0.0
      %3989 = vmatprep.subr.mxu0 0.0
      %3990 = vmatpush1.msra.mxu0 0.0
      %3991 = vmatprep.subr.mxu0 0.0
      %3992 = vmatpush1.msra.mxu0 0.0
      %3993 = vmatprep.subr.mxu0 0.0
      %3994 = vmatpush1.msra.mxu0 0.0
      %3995 = vmatprep.subr.mxu0 0.0
      %3996 = vmatpush1.msra.mxu0 0.0
      %3997 = vmatprep.subr.mxu0 0.0
      %3998 = vmatpush1.msra.mxu0 0.0
      %3999 = vmatprep.subr.mxu0 0.0
      %4000 = vmatpush1.msra.mxu0 0.0
      %4001 = vmatprep.subr.mxu0 0.0
      %4002 = vmatpush1.msra.mxu0 0.0
      %4003 = vmatprep.mubr.f32.mxu0 0.0
      %4004 = vmatmul.mubr.f32.gmra.mrb[0].mxu0 %v1973
      %v4005 = vpop.f32.mrb[0].mxu0
      %v4006 = vadd.f32 0.0, %v4005
      %v4007 = vpop.f32.mrb[0].mxu0
      %4008 = vdwg.mxu0
      %v4009 = vmul.f32 %v4006, 0.0625
      %v4011 = vlaneseq
      %v4012 = vshrl.u32 %v4011, 7
      %v4013 = vsub.s32 0, %v4012
      %v4014 = vrot.slane %v3816, %v4013
      %4016 = vmatprep.subr.mxu0 0.0
      %4017 = vmatpush1.xpose.msra.mxu0 %v3814
      %4018 = vmatprep.subr.mxu0 0.0
      %4019 = vmatpush1.xpose.msra.mxu0 0.0
      %4020 = vmatprep.subr.mxu0 0.0
      %4021 = vmatpush1.xpose.msra.mxu0 0.0
      %4022 = vmatprep.subr.mxu0 0.0
      %4023 = vmatpush1.xpose.msra.mxu0 0.0
      %4024 = vmatprep.subr.mxu0 0.0
      %4025 = vmatpush1.xpose.msra.mxu0 0.0
      %4026 = vmatprep.subr.mxu0 0.0
      %4027 = vmatpush1.xpose.msra.mxu0 0.0
      %4028 = vmatprep.subr.mxu0 0.0
      %4029 = vmatpush1.xpose.msra.mxu0 0.0
      %4030 = vmatprep.subr.mxu0 0.0
      %4031 = vmatpush1.xpose.msra.mxu0 0.0
      %4032 = vmatprep.subr.mxu0 0.0
      %4033 = vmatpush1.xpose.msra.mxu0 0.0
      %4034 = vmatprep.subr.mxu0 0.0
      %4035 = vmatpush1.xpose.msra.mxu0 0.0
      %4036 = vmatprep.subr.mxu0 0.0
      %4037 = vmatpush1.xpose.msra.mxu0 0.0
      %4038 = vmatprep.subr.mxu0 0.0
      %4039 = vmatpush1.xpose.msra.mxu0 0.0
      %4040 = vmatprep.subr.mxu0 0.0
      %4041 = vmatpush1.xpose.msra.mxu0 0.0
      %4042 = vmatprep.subr.mxu0 0.0
      %4043 = vmatpush1.xpose.msra.mxu0 0.0
      %4044 = vmatprep.subr.mxu0 0.0
      %4045 = vmatpush1.xpose.msra.mxu0 0.0
      %4046 = vmatprep.subr.mxu0 0.0
      %4047 = vmatpush1.xpose.msra.mxu0 0.0
      %4048 = vmatprep.subr.mxu0 0.0
      %4049 = vmatpush1.xpose.msra.mxu0 0.0
      %4050 = vmatprep.subr.mxu0 0.0
      %4051 = vmatpush1.xpose.msra.mxu0 0.0
      %4052 = vmatprep.subr.mxu0 0.0
      %4053 = vmatpush1.xpose.msra.mxu0 0.0
      %4054 = vmatprep.subr.mxu0 0.0
      %4055 = vmatpush1.xpose.msra.mxu0 0.0
      %4056 = vmatprep.subr.mxu0 0.0
      %4057 = vmatpush1.xpose.msra.mxu0 0.0
      %4058 = vmatprep.subr.mxu0 0.0
      %4059 = vmatpush1.xpose.msra.mxu0 0.0
      %4060 = vmatprep.subr.mxu0 0.0
      %4061 = vmatpush1.xpose.msra.mxu0 0.0
      %4062 = vmatprep.subr.mxu0 0.0
      %4063 = vmatpush1.xpose.msra.mxu0 0.0
      %4064 = vmatprep.subr.mxu0 0.0
      %4065 = vmatpush1.xpose.msra.mxu0 0.0
      %4066 = vmatprep.subr.mxu0 0.0
      %4067 = vmatpush1.xpose.msra.mxu0 0.0
      %4068 = vmatprep.subr.mxu0 0.0
      %4069 = vmatpush1.xpose.msra.mxu0 0.0
      %4070 = vmatprep.subr.mxu0 0.0
      %4071 = vmatpush1.xpose.msra.mxu0 0.0
      %4072 = vmatprep.subr.mxu0 0.0
      %4073 = vmatpush1.xpose.msra.mxu0 0.0
      %4074 = vmatprep.subr.mxu0 0.0
      %4075 = vmatpush1.xpose.msra.mxu0 0.0
      %4076 = vmatprep.subr.mxu0 0.0
      %4077 = vmatpush1.xpose.msra.mxu0 0.0
      %4078 = vmatprep.subr.mxu0 0.0
      %4079 = vmatpush1.xpose.msra.mxu0 0.0
      %4080 = vmatprep.mubr.f32.mxu0 0.0
      %4081 = vmatmul.mubr.f32.gmra.mrb[0].mxu0 %v4009
      %v4082 = vpop.f32.mrb[0].mxu0
      %v4083 = vadd.f32 %v4014, %v4082
      %v4084 = vpop.f32.mrb[0].mxu0
      %4085 = vdwg.mxu0
      %s4086 = scalar_lea.vmem %s355, 8
      %4087 = vst.msk [vmem:[%s4086] sm:$0xf] %vm2122, %v4083
      %p4088 = scmp.lt.s32.totalorder %s20, 1
      %s4089 = scalar_select %p4088, %s20, 1
      %s4090 = smul.addr %s4089, 2
      %s4091 = smul.addr %s4090, 8
      %s4092 = scalar_lea.vmem %s7, %s4091
      %p4093 = scmp.lt.s32.totalorder %s20, 1
      %s4094 = scalar_select %p4093, %s20, 1
      %s4095 = smul.addr %s4094, 3
      %s4096 = smul.addr %s4095, 4
      %s4097 = scalar_lea.vmem %s8, %s4096
      // Predicated region
      $region49: #{_meta_forward.1} parent=47 // pred_check
        %p4098 = pneg %p200
      $region50: #{_meta_forward.1} parent=47 // pred_check_branch
        %4100 = sbr.rel (%p4098) target = $region52
      $region51: #{_meta_forward.1} parent=47 // pred_region
        _
      $region52: #{_meta_forward.1} parent=47 // pred_fallthru
        _
      // Predicated region
      $region53: #{_meta_forward.1} parent=47 // pred_check
        %p4101 = pneg %p226
      $region54: #{_meta_forward.1} parent=47 // pred_check_branch
        %4103 = sbr.rel (%p4101) target = $region56
      $region55: #{_meta_forward.1} parent=47 // pred_region
        _
      $region56: #{_meta_forward.1} parent=47 // pred_fallthru
        _
    $region48: #{_meta_forward.1} parent=5 // pred_fallthru
      _
    %p4104 = scmp.le.s32.totalorder 2, %s15
    // Predicated region
    $region57: #{_meta_forward.1} parent=5 // pred_check
      %p4105 = pneg %p4104
    $region58: #{_meta_forward.1} parent=5 // pred_check_branch
      %4107 = sbr.rel (%p4105) target = $region60
    $region59: #{_meta_forward.1} parent=5 // pred_region
      %s4108 = ssub.s32 %s15, 2
      // Predicated region
      $region61: #{_meta_forward.1} parent=59 // pred_check
        %p4109 = pneg %p206
      $region62: #{_meta_forward.1} parent=59 // pred_check_branch
        %4111 = sbr.rel (%p4109) target = $region64
      $region63: #{_meta_forward.1} parent=59 // pred_region
        %p4112 = scmp.lt.s32.totalorder %s21, 1
        %s4113 = scalar_select %p4112, %s21, 1
        %s4114 = smul.addr %s4113, 2
        %s4115 = smul.addr %s4114, 8
        %s4116 = scalar_lea.vmem %s7, %s4115
      $region64: #{_meta_forward.1} parent=59 // pred_fallthru
        _
      // Predicated region
      $region65: #{_meta_forward.1} parent=59 // pred_check
        %p4117 = pneg %p232
      $region66: #{_meta_forward.1} parent=59 // pred_check_branch
        %4119 = sbr.rel (%p4117) target = $region68
      $region67: #{_meta_forward.1} parent=59 // pred_region
        %p4120 = scmp.lt.s32.totalorder %s21, 1
        %s4121 = scalar_select %p4120, %s21, 1
        %s4122 = smul.addr %s4121, 3
        %s4123 = smul.addr %s4122, 4
        %s4124 = scalar_lea.vmem %s8, %s4123
      $region68: #{_meta_forward.1} parent=59 // pred_fallthru
        _
    $region60: #{_meta_forward.1} parent=5 // pred_fallthru
      _
  $region6: #{_meta_forward.1} parent=0 // loop_footer
    %s19 = sadd.s32 1, %s15
  $region7: #{_meta_forward.1} parent=0 // loop_footer_branch
    %14 = sbr.rel target = $region3
  $region8: #{_meta_forward.1} parent=0 // loop_exit
    _

</llo_original>
